<compile_context>
chip_gen: v6e
topology: v6e:2x2x1
jax: 0.10.0
libtpu: 0.0.40
codegen_flags: <defaults>
</compile_context>

<pallas_src>
import functools

import jax
import jax.numpy as jnp
from jax.experimental import pallas as pl
from jax.experimental.pallas import tpu as pltpu

EPS = 1e-5
EXPANSION = 4
LANE = 128


def _round_up(v, m):
    return (v + m - 1) // m * m


def _pad2d(a, rows, cols):
    return jnp.pad(a, ((0, rows - a.shape[0]), (0, cols - a.shape[1])))


def _bn_train(h, gamma, beta, inv_n, relu):
    """Training-mode BatchNorm, folded into one FMA sweep.

    Stats (sum, sum-of-squares) are computed in one traversal, then the
    normalization is expressed as per-channel scale/shift vectors so the
    (n, C) sweep is a single h*scale + shift (maps to FMA on the VPU).
    """
    s = jnp.sum(h, axis=0, keepdims=True)
    ss = jnp.sum(h * h, axis=0, keepdims=True)
    mean = s * inv_n
    var = ss * inv_n - mean * mean                 # E[h^2] - mean^2
    scale = gamma * jax.lax.rsqrt(var + EPS)       # [1, C]  (EUP rsqrt)
    shift = beta - mean * scale                    # [1, C]
    y = h * scale + shift
    if relu:
        y = jnp.maximum(y, 0.0)
    return y


def bottleneck_kernel(B, H, W,
                      x_ref, w1_ref, g1_ref, b1_ref,
                      w2_ref, g2_ref, b2_ref,
                      w3_ref, g3_ref, b3_ref,
                      out_ref, pad_ref, col_ref):
    Cp = w1_ref.shape[1]                     # lane-padded width
    n = H * W * B
    inv_n = 1.0 / n

    x = x_ref[...]                           # [n, Cin_p], f32 (kept for residual)

    # ---- conv1 (1x1) -> bn1 -> relu : bf16 MXU operands, f32 accumulate ----
    h = jnp.dot(x.astype(jnp.bfloat16), w1_ref[...],
                preferred_element_type=jnp.float32)
    h = _bn_train(h, g1_ref[...], b1_ref[...], inv_n, relu=True)
    h16 = h.astype(jnp.bfloat16)

    # ---- conv2 (3x3, stride=1, pad=1) -> bn2 -> relu -----------------------
    # bf16 zero-padded scratch (H+2, W+2, B, Cp); zero ONLY the halo, the
    # interior is overwritten by the store just below.
    zrow = jnp.zeros((1, W + 2, B, Cp), pad_ref.dtype)
    pad_ref[0:1, :, :, :] = zrow
    pad_ref[H + 1:H + 2, :, :, :] = zrow
    zcol = jnp.zeros((H, 1, B, Cp), pad_ref.dtype)
    pad_ref[1:H + 1, 0:1, :, :] = zcol
    pad_ref[1:H + 1, W + 1:W + 2, :, :] = zcol
    pad_ref[1:H + 1, 1:W + 1, :, :] = h16.reshape(H, W, B, Cp)

    # Pack the nine shifted windows once into an im2col buffer (n, 9*Cp);
    # the centre tap is a dense copy straight from h16 (no strided re-read).
    for kh in range(3):
        for kw in range(3):
            t = kh * 3 + kw
            if kh == 1 and kw == 1:
                col_ref[:, t * Cp:(t + 1) * Cp] = h16
            else:
                col_ref[:, t * Cp:(t + 1) * Cp] = (
                    pad_ref[kh:kh + H, kw:kw + W, :, :].reshape(n, Cp))
    # ... and do ONE wide-K matmul against w2 reshaped to (9*Cp, Cp).
    h = jnp.dot(col_ref[...], w2_ref[...], preferred_element_type=jnp.float32)
    h = _bn_train(h, g2_ref[...], b2_ref[...], inv_n, relu=True)

    # ---- conv3 (1x1) -> bn3 -------------------------------------------------
    h = jnp.dot(h.astype(jnp.bfloat16), w3_ref[...],
                preferred_element_type=jnp.float32)
    h = _bn_train(h, g3_ref[...], b3_ref[...], inv_n, relu=False)

    # ---- residual add (identity, downsample=None) + relu --------------------
    out_ref[...] = jnp.maximum(h + x, 0.0)


def bottleneck_forward(x_nchw, params):
    B, Cin, H, W = x_nchw.shape
    width = params["w1"].shape[1]
    Cout = params["w3"].shape[1]
    assert Cin == Cout, "identity residual needs inplanes == planes*expansion"

    n = H * W * B
    assert n % 8 == 0, "H*W*B must be a multiple of 8 (sublane-dense rows)"

    # Lane-dense channel padding (explicit zeros; padded channels stay exactly
    # zero through conv/BN/ReLU/residual and are sliced off at the end).
    Cin_p = _round_up(Cin, LANE)
    Wd_p = _round_up(width, LANE)
    Cout_p = _round_up(Cout, LANE)
    assert Cin_p == Cout_p

    # NCHW -> (H, W, B, C) -> [(H*W*B), C]
    x_flat = jnp.transpose(x_nchw, (2, 3, 0, 1)).reshape(n, Cin)
    x_flat = _pad2d(x_flat, n, Cin_p)

    # Weights: pad to lane multiples, pre-cast to bf16 (MXU-native).
    w1 = _pad2d(params["w1"], Cin_p, Wd_p).astype(jnp.bfloat16)
    w2 = jnp.pad(params["w2"],
                 ((0, 0), (0, Wd_p - width), (0, Wd_p - width)))
    w2 = w2.reshape(9 * Wd_p, Wd_p).astype(jnp.bfloat16)
    w3 = _pad2d(params["w3"], Wd_p, Cout_p).astype(jnp.bfloat16)

    # BN affine params stay f32.
    g1 = _pad2d(params["g1"], 1, Wd_p)
    b1 = _pad2d(params["b1"], 1, Wd_p)
    g2 = _pad2d(params["g2"], 1, Wd_p)
    b2 = _pad2d(params["b2"], 1, Wd_p)
    g3 = _pad2d(params["g3"], 1, Cout_p)
    b3 = _pad2d(params["b3"], 1, Cout_p)

    # Scoped-VMEM limit sized from the actual buffers (with headroom),
    # clamped to v7x's 64 MiB physical VMEM.
    bytes_live = (
        n * Cin_p * 4                              # x (f32)
        + n * Cout_p * 4                           # out (f32)
        + (Cin_p * Wd_p + 9 * Wd_p * Wd_p + Wd_p * Cout_p) * 2   # bf16 weights
        + 6 * max(Wd_p, Cout_p) * 4                # gammas / betas
        + (H + 2) * (W + 2) * B * Wd_p * 2         # pad scratch (bf16)
        + n * 9 * Wd_p * 2                         # im2col scratch (bf16)
        + 3 * n * max(Wd_p, Cout_p) * 4            # live f32 intermediates
    )
    vmem_limit = int(min(max(2 * bytes_live + (4 << 20), 32 << 20), 64 << 20))

    kernel = functools.partial(bottleneck_kernel, B, H, W)
    out_flat = pl.pallas_call(
        kernel,
        out_shape=jax.ShapeDtypeStruct((n, Cout_p), jnp.float32),
        in_specs=[pl.BlockSpec(memory_space=pltpu.MemorySpace.VMEM)] * 10,
        out_specs=pl.BlockSpec(memory_space=pltpu.MemorySpace.VMEM),
        scratch_shapes=[
            pltpu.VMEM((H + 2, W + 2, B, Wd_p), jnp.bfloat16),   # padded conv2 input
            pltpu.VMEM((n, 9 * Wd_p), jnp.bfloat16),             # im2col buffer
        ],
        compiler_params=pltpu.CompilerParams(vmem_limit_bytes=vmem_limit),
    )(x_flat, w1, g1, b1, w2, g2, b2, w3, g3, b3)

    # [(H*W*B), Cout_p] -> drop channel padding -> (H, W, B, Cout) -> NCHW
    out_flat = out_flat[:, :Cout]
    return jnp.transpose(out_flat.reshape(H, W, B, Cout), (2, 3, 0, 1))


def init_params(key, inplanes, planes, base_width=64, groups=1):
    width = int(planes * (base_width / 64.0)) * groups
    out_planes = planes * EXPANSION
    ks = jax.random.split(key, 9)
    s = 0.1
    return dict(
        w1=s * jax.random.normal(ks[0], (inplanes, width), jnp.float32),
        w2=s * jax.random.normal(ks[1], (9, width, width), jnp.float32),
        w3=s * jax.random.normal(ks[2], (width, out_planes), jnp.float32),
        g1=1.0 + 0.1 * jax.random.normal(ks[3], (1, width), jnp.float32),
        b1=0.1 * jax.random.normal(ks[4], (1, width), jnp.float32),
        g2=1.0 + 0.1 * jax.random.normal(ks[5], (1, width), jnp.float32),
        b2=0.1 * jax.random.normal(ks[6], (1, width), jnp.float32),
        g3=1.0 + 0.1 * jax.random.normal(ks[7], (1, out_planes), jnp.float32),
        b3=0.1 * jax.random.normal(ks[8], (1, out_planes), jnp.float32),
    )


def ref_forward(x, p):
    """Pure-JAX f32 reference mirroring the PyTorch Bottleneck forward (NCHW)."""
    width = p["w1"].shape[1]

    def bn(h, g, b):
        mean = h.mean(axis=(0, 2, 3), keepdims=True)
        var = ((h - mean) ** 2).mean(axis=(0, 2, 3), keepdims=True)
        return ((h - mean) * jax.lax.rsqrt(var + EPS)
                * g.reshape(1, -1, 1, 1) + b.reshape(1, -1, 1, 1))

    dn = ("NCHW", "OIHW", "NCHW")
    prec = jax.lax.Precision.HIGHEST
    w1 = p["w1"].T[:, :, None, None]                                # OIHW
    w2 = p["w2"].reshape(3, 3, width, width).transpose(3, 2, 0, 1)  # OIHW
    w3 = p["w3"].T[:, :, None, None]

    h = jax.lax.conv_general_dilated(x, w1, (1, 1), "VALID",
                                     dimension_numbers=dn, precision=prec)
    h = jax.nn.relu(bn(h, p["g1"], p["b1"]))
    h = jax.lax.conv_general_dilated(h, w2, (1, 1), ((1, 1), (1, 1)),
                                     dimension_numbers=dn, precision=prec)
    h = jax.nn.relu(bn(h, p["g2"], p["b2"]))
    h = jax.lax.conv_general_dilated(h, w3, (1, 1), "VALID",
                                     dimension_numbers=dn, precision=prec)
    h = bn(h, p["g3"], p["b3"])
    return jax.nn.relu(h + x)


if __name__ == "__main__":
    key = jax.random.PRNGKey(0)
    kx, kp = jax.random.split(key)

    # Bottleneck(inplanes=16, planes=4): width=4, out_channels=16 (== inplanes)
    B, inplanes, planes, H, W = 2, 16, 4, 8, 8
    x = jax.random.normal(kx, (B, inplanes, H, W), jnp.float32)
    params = init_params(kp, inplanes, planes)

    out = jax.block_until_ready(bottleneck_forward(x, params))
    ref = jax.block_until_ready(ref_forward(x, params))

    assert out.shape == (B, planes * EXPANSION, H, W)
    max_err = float(jnp.max(jnp.abs(out - ref)))
    # bf16 MXU operands (f32 accumulation) => slightly looser tolerance than
    # a pure-f32 comparison.
    assert jnp.allclose(out, ref, rtol=3e-2, atol=3e-2), (
        f"max abs err {max_err}")

    print("KERNEL_OK")
</pallas_src>

<mosaic_0001>
module attributes {stable_mosaic.version = 11 : i64} {
  func.func @bottleneck_kernel(%arg0: memref<128x128xf32, #tpu.memory_space<vmem>>, %arg1: memref<128x128xbf16, #tpu.memory_space<vmem>>, %arg2: memref<1x128xf32, #tpu.memory_space<vmem>>, %arg3: memref<1x128xf32, #tpu.memory_space<vmem>>, %arg4: memref<1152x128xbf16, #tpu.memory_space<vmem>>, %arg5: memref<1x128xf32, #tpu.memory_space<vmem>>, %arg6: memref<1x128xf32, #tpu.memory_space<vmem>>, %arg7: memref<128x128xbf16, #tpu.memory_space<vmem>>, %arg8: memref<1x128xf32, #tpu.memory_space<vmem>>, %arg9: memref<1x128xf32, #tpu.memory_space<vmem>>, %arg10: memref<128x128xf32, #tpu.memory_space<vmem>>, %arg11: memref<10x10x2x128xbf16, #tpu.memory_space<vmem>>, %arg12: memref<128x1152xbf16, #tpu.memory_space<vmem>>) attributes {dimension_semantics = [], scalar_prefetch = 0 : i64, scratch_operands = 2 : i64, tpu.core_type = #tpu.core_type<tc>} {
    %c0 = arith.constant 0 : index
    %c0_0 = arith.constant 0 : index
    %0 = vector.load %arg0[%c0, %c0_0] : memref<128x128xf32, #tpu.memory_space<vmem>>, vector<128x128xf32>
    %1 = arith.truncf %0 : vector<128x128xf32> to vector<128x128xbf16>
    %c0_1 = arith.constant 0 : index
    %c0_2 = arith.constant 0 : index
    %2 = vector.load %arg1[%c0_1, %c0_2] : memref<128x128xbf16, #tpu.memory_space<vmem>>, vector<128x128xbf16>
    %cst = arith.constant dense<0.000000e+00> : vector<128x128xf32>
    %3 = tpu.matmul %1, %2, %cst {dimension_numbers = #tpu.dot_dimension_numbers<[1], [0], [0], [1], [0, 0, 1, 1], [], []>} : vector<128x128xbf16>, vector<128x128xbf16>, vector<128x128xf32> -> vector<128x128xf32>
    %c0_3 = arith.constant 0 : index
    %c0_4 = arith.constant 0 : index
    %4 = vector.load %arg2[%c0_3, %c0_4] : memref<1x128xf32, #tpu.memory_space<vmem>>, vector<1x128xf32>
    %c0_5 = arith.constant 0 : index
    %c0_6 = arith.constant 0 : index
    %5 = vector.load %arg3[%c0_5, %c0_6] : memref<1x128xf32, #tpu.memory_space<vmem>>, vector<1x128xf32>
    %cst_7 = arith.constant dense<0.000000e+00> : vector<128xf32>
    %6 = vector.multi_reduction <add>, %3, %cst_7 [0] : vector<128x128xf32> to vector<128xf32>
    %7 = vector.shape_cast %6 : vector<128xf32> to vector<1x128xf32>
    %8 = arith.mulf %3, %3 : vector<128x128xf32>
    %cst_8 = arith.constant dense<0.000000e+00> : vector<128xf32>
    %9 = vector.multi_reduction <add>, %8, %cst_8 [0] : vector<128x128xf32> to vector<128xf32>
    %10 = vector.shape_cast %9 : vector<128xf32> to vector<1x128xf32>
    %cst_9 = arith.constant 7.812500e-03 : f32
    %11 = vector.broadcast %cst_9 : f32 to vector<1x128xf32>
    %12 = arith.mulf %7, %11 : vector<1x128xf32>
    %cst_10 = arith.constant 7.812500e-03 : f32
    %13 = vector.broadcast %cst_10 : f32 to vector<1x128xf32>
    %14 = arith.mulf %10, %13 : vector<1x128xf32>
    %15 = arith.mulf %12, %12 : vector<1x128xf32>
    %16 = arith.subf %14, %15 : vector<1x128xf32>
    %cst_11 = arith.constant 9.99999974E-6 : f32
    %17 = vector.broadcast %cst_11 : f32 to vector<1x128xf32>
    %18 = arith.addf %16, %17 : vector<1x128xf32>
    %19 = math.rsqrt %18 : vector<1x128xf32>
    %20 = arith.mulf %4, %19 : vector<1x128xf32>
    %21 = arith.mulf %12, %20 : vector<1x128xf32>
    %22 = arith.subf %5, %21 : vector<1x128xf32>
    %23 = vector.broadcast %20 : vector<1x128xf32> to vector<128x128xf32>
    %24 = arith.mulf %3, %23 : vector<128x128xf32>
    %25 = vector.broadcast %22 : vector<1x128xf32> to vector<128x128xf32>
    %26 = arith.addf %24, %25 : vector<128x128xf32>
    %cst_12 = arith.constant 0.000000e+00 : f32
    %27 = vector.broadcast %cst_12 : f32 to vector<128x128xf32>
    %28 = arith.maximumf %26, %27 : vector<128x128xf32>
    %29 = arith.truncf %28 : vector<128x128xf32> to vector<128x128xbf16>
    %cst_13 = arith.constant 0.000000e+00 : bf16
    %30 = vector.broadcast %cst_13 : bf16 to vector<1x10x2x128xbf16>
    %c0_14 = arith.constant 0 : index
    %c0_15 = arith.constant 0 : index
    %c0_16 = arith.constant 0 : index
    %c0_17 = arith.constant 0 : index
    %31 = vector.load %arg11[%c0_14, %c0_15, %c0_16, %c0_17] : memref<10x10x2x128xbf16, #tpu.memory_space<vmem>>, vector<1x10x2x128xbf16>
    tpu.vector_store %arg11[%c0_14, %c0_15, %c0_16, %c0_17], %30 {strides = array<i32>} : memref<10x10x2x128xbf16, #tpu.memory_space<vmem>>, vector<1x10x2x128xbf16>,
    %c9 = arith.constant 9 : index
    %c0_18 = arith.constant 0 : index
    %c0_19 = arith.constant 0 : index
    %c0_20 = arith.constant 0 : index
    %32 = vector.load %arg11[%c9, %c0_18, %c0_19, %c0_20] : memref<10x10x2x128xbf16, #tpu.memory_space<vmem>>, vector<1x10x2x128xbf16>
    tpu.vector_store %arg11[%c9, %c0_18, %c0_19, %c0_20], %30 {strides = array<i32>} : memref<10x10x2x128xbf16, #tpu.memory_space<vmem>>, vector<1x10x2x128xbf16>,
    %cst_21 = arith.constant 0.000000e+00 : bf16
    %33 = vector.broadcast %cst_21 : bf16 to vector<8x1x2x128xbf16>
    %c1 = arith.constant 1 : index
    %c0_22 = arith.constant 0 : index
    %c0_23 = arith.constant 0 : index
    %c0_24 = arith.constant 0 : index
    %34 = vector.load %arg11[%c1, %c0_22, %c0_23, %c0_24] : memref<10x10x2x128xbf16, #tpu.memory_space<vmem>>, vector<8x1x2x128xbf16>
    tpu.vector_store %arg11[%c1, %c0_22, %c0_23, %c0_24], %33 {strides = array<i32>} : memref<10x10x2x128xbf16, #tpu.memory_space<vmem>>, vector<8x1x2x128xbf16>,
    %c1_25 = arith.constant 1 : index
    %c9_26 = arith.constant 9 : index
    %c0_27 = arith.constant 0 : index
    %c0_28 = arith.constant 0 : index
    %35 = vector.load %arg11[%c1_25, %c9_26, %c0_27, %c0_28] : memref<10x10x2x128xbf16, #tpu.memory_space<vmem>>, vector<8x1x2x128xbf16>
    tpu.vector_store %arg11[%c1_25, %c9_26, %c0_27, %c0_28], %33 {strides = array<i32>} : memref<10x10x2x128xbf16, #tpu.memory_space<vmem>>, vector<8x1x2x128xbf16>,
    %36 = vector.shape_cast %29 : vector<128x128xbf16> to vector<8x8x2x128xbf16>
    %c1_29 = arith.constant 1 : index
    %c1_30 = arith.constant 1 : index
    %c0_31 = arith.constant 0 : index
    %c0_32 = arith.constant 0 : index
    %37 = vector.load %arg11[%c1_29, %c1_30, %c0_31, %c0_32] : memref<10x10x2x128xbf16, #tpu.memory_space<vmem>>, vector<8x8x2x128xbf16>
    tpu.vector_store %arg11[%c1_29, %c1_30, %c0_31, %c0_32], %36 {strides = array<i32>} : memref<10x10x2x128xbf16, #tpu.memory_space<vmem>>, vector<8x8x2x128xbf16>,
    %c0_33 = arith.constant 0 : index
    %c0_34 = arith.constant 0 : index
    %c0_35 = arith.constant 0 : index
    %c0_36 = arith.constant 0 : index
    %38 = vector.load %arg11[%c0_33, %c0_34, %c0_35, %c0_36] : memref<10x10x2x128xbf16, #tpu.memory_space<vmem>>, vector<8x8x2x128xbf16>
    %39 = vector.shape_cast %38 : vector<8x8x2x128xbf16> to vector<128x128xbf16>
    %c0_37 = arith.constant 0 : index
    %c0_38 = arith.constant 0 : index
    %40 = vector.load %arg12[%c0_37, %c0_38] : memref<128x1152xbf16, #tpu.memory_space<vmem>>, vector<128x128xbf16>
    tpu.vector_store %arg12[%c0_37, %c0_38], %39 {strides = array<i32>} : memref<128x1152xbf16, #tpu.memory_space<vmem>>, vector<128x128xbf16>,
    %c0_39 = arith.constant 0 : index
    %c1_40 = arith.constant 1 : index
    %c0_41 = arith.constant 0 : index
    %c0_42 = arith.constant 0 : index
    %41 = vector.load %arg11[%c0_39, %c1_40, %c0_41, %c0_42] : memref<10x10x2x128xbf16, #tpu.memory_space<vmem>>, vector<8x8x2x128xbf16>
    %42 = vector.shape_cast %41 : vector<8x8x2x128xbf16> to vector<128x128xbf16>
    %c0_43 = arith.constant 0 : index
    %c128 = arith.constant 128 : index
    %43 = vector.load %arg12[%c0_43, %c128] : memref<128x1152xbf16, #tpu.memory_space<vmem>>, vector<128x128xbf16>
    tpu.vector_store %arg12[%c0_43, %c128], %42 {strides = array<i32>} : memref<128x1152xbf16, #tpu.memory_space<vmem>>, vector<128x128xbf16>,
    %c0_44 = arith.constant 0 : index
    %c2 = arith.constant 2 : index
    %c0_45 = arith.constant 0 : index
    %c0_46 = arith.constant 0 : index
    %44 = vector.load %arg11[%c0_44, %c2, %c0_45, %c0_46] : memref<10x10x2x128xbf16, #tpu.memory_space<vmem>>, vector<8x8x2x128xbf16>
    %45 = vector.shape_cast %44 : vector<8x8x2x128xbf16> to vector<128x128xbf16>
    %c0_47 = arith.constant 0 : index
    %c256 = arith.constant 256 : index
    %46 = vector.load %arg12[%c0_47, %c256] : memref<128x1152xbf16, #tpu.memory_space<vmem>>, vector<128x128xbf16>
    tpu.vector_store %arg12[%c0_47, %c256], %45 {strides = array<i32>} : memref<128x1152xbf16, #tpu.memory_space<vmem>>, vector<128x128xbf16>,
    %c1_48 = arith.constant 1 : index
    %c0_49 = arith.constant 0 : index
    %c0_50 = arith.constant 0 : index
    %c0_51 = arith.constant 0 : index
    %47 = vector.load %arg11[%c1_48, %c0_49, %c0_50, %c0_51] : memref<10x10x2x128xbf16, #tpu.memory_space<vmem>>, vector<8x8x2x128xbf16>
    %48 = vector.shape_cast %47 : vector<8x8x2x128xbf16> to vector<128x128xbf16>
    %c0_52 = arith.constant 0 : index
    %c384 = arith.constant 384 : index
    %49 = vector.load %arg12[%c0_52, %c384] : memref<128x1152xbf16, #tpu.memory_space<vmem>>, vector<128x128xbf16>
    tpu.vector_store %arg12[%c0_52, %c384], %48 {strides = array<i32>} : memref<128x1152xbf16, #tpu.memory_space<vmem>>, vector<128x128xbf16>,
    %c0_53 = arith.constant 0 : index
    %c512 = arith.constant 512 : index
    %50 = vector.load %arg12[%c0_53, %c512] : memref<128x1152xbf16, #tpu.memory_space<vmem>>, vector<128x128xbf16>
    tpu.vector_store %arg12[%c0_53, %c512], %29 {strides = array<i32>} : memref<128x1152xbf16, #tpu.memory_space<vmem>>, vector<128x128xbf16>,
    %c1_54 = arith.constant 1 : index
    %c2_55 = arith.constant 2 : index
    %c0_56 = arith.constant 0 : index
    %c0_57 = arith.constant 0 : index
    %51 = vector.load %arg11[%c1_54, %c2_55, %c0_56, %c0_57] : memref<10x10x2x128xbf16, #tpu.memory_space<vmem>>, vector<8x8x2x128xbf16>
    %52 = vector.shape_cast %51 : vector<8x8x2x128xbf16> to vector<128x128xbf16>
    %c0_58 = arith.constant 0 : index
    %c640 = arith.constant 640 : index
    %53 = vector.load %arg12[%c0_58, %c640] : memref<128x1152xbf16, #tpu.memory_space<vmem>>, vector<128x128xbf16>
    tpu.vector_store %arg12[%c0_58, %c640], %52 {strides = array<i32>} : memref<128x1152xbf16, #tpu.memory_space<vmem>>, vector<128x128xbf16>,
    %c2_59 = arith.constant 2 : index
    %c0_60 = arith.constant 0 : index
    %c0_61 = arith.constant 0 : index
    %c0_62 = arith.constant 0 : index
    %54 = vector.load %arg11[%c2_59, %c0_60, %c0_61, %c0_62] : memref<10x10x2x128xbf16, #tpu.memory_space<vmem>>, vector<8x8x2x128xbf16>
    %55 = vector.shape_cast %54 : vector<8x8x2x128xbf16> to vector<128x128xbf16>
    %c0_63 = arith.constant 0 : index
    %c768 = arith.constant 768 : index
    %56 = vector.load %arg12[%c0_63, %c768] : memref<128x1152xbf16, #tpu.memory_space<vmem>>, vector<128x128xbf16>
    tpu.vector_store %arg12[%c0_63, %c768], %55 {strides = array<i32>} : memref<128x1152xbf16, #tpu.memory_space<vmem>>, vector<128x128xbf16>,
    %c2_64 = arith.constant 2 : index
    %c1_65 = arith.constant 1 : index
    %c0_66 = arith.constant 0 : index
    %c0_67 = arith.constant 0 : index
    %57 = vector.load %arg11[%c2_64, %c1_65, %c0_66, %c0_67] : memref<10x10x2x128xbf16, #tpu.memory_space<vmem>>, vector<8x8x2x128xbf16>
    %58 = vector.shape_cast %57 : vector<8x8x2x128xbf16> to vector<128x128xbf16>
    %c0_68 = arith.constant 0 : index
    %c896 = arith.constant 896 : index
    %59 = vector.load %arg12[%c0_68, %c896] : memref<128x1152xbf16, #tpu.memory_space<vmem>>, vector<128x128xbf16>
    tpu.vector_store %arg12[%c0_68, %c896], %58 {strides = array<i32>} : memref<128x1152xbf16, #tpu.memory_space<vmem>>, vector<128x128xbf16>,
    %c2_69 = arith.constant 2 : index
    %c2_70 = arith.constant 2 : index
    %c0_71 = arith.constant 0 : index
    %c0_72 = arith.constant 0 : index
    %60 = vector.load %arg11[%c2_69, %c2_70, %c0_71, %c0_72] : memref<10x10x2x128xbf16, #tpu.memory_space<vmem>>, vector<8x8x2x128xbf16>
    %61 = vector.shape_cast %60 : vector<8x8x2x128xbf16> to vector<128x128xbf16>
    %c0_73 = arith.constant 0 : index
    %c1024 = arith.constant 1024 : index
    %62 = vector.load %arg12[%c0_73, %c1024] : memref<128x1152xbf16, #tpu.memory_space<vmem>>, vector<128x128xbf16>
    tpu.vector_store %arg12[%c0_73, %c1024], %61 {strides = array<i32>} : memref<128x1152xbf16, #tpu.memory_space<vmem>>, vector<128x128xbf16>,
    %c0_74 = arith.constant 0 : index
    %c0_75 = arith.constant 0 : index
    %63 = vector.load %arg12[%c0_74, %c0_75] : memref<128x1152xbf16, #tpu.memory_space<vmem>>, vector<128x1152xbf16>
    %c0_76 = arith.constant 0 : index
    %c0_77 = arith.constant 0 : index
    %64 = vector.load %arg4[%c0_76, %c0_77] : memref<1152x128xbf16, #tpu.memory_space<vmem>>, vector<1152x128xbf16>
    %cst_78 = arith.constant dense<0.000000e+00> : vector<128x128xf32>
    %65 = tpu.matmul %63, %64, %cst_78 {dimension_numbers = #tpu.dot_dimension_numbers<[1], [0], [0], [1], [0, 0, 1, 1], [], []>} : vector<128x1152xbf16>, vector<1152x128xbf16>, vector<128x128xf32> -> vector<128x128xf32>
    %c0_79 = arith.constant 0 : index
    %c0_80 = arith.constant 0 : index
    %66 = vector.load %arg5[%c0_79, %c0_80] : memref<1x128xf32, #tpu.memory_space<vmem>>, vector<1x128xf32>
    %c0_81 = arith.constant 0 : index
    %c0_82 = arith.constant 0 : index
    %67 = vector.load %arg6[%c0_81, %c0_82] : memref<1x128xf32, #tpu.memory_space<vmem>>, vector<1x128xf32>
    %cst_83 = arith.constant dense<0.000000e+00> : vector<128xf32>
    %68 = vector.multi_reduction <add>, %65, %cst_83 [0] : vector<128x128xf32> to vector<128xf32>
    %69 = vector.shape_cast %68 : vector<128xf32> to vector<1x128xf32>
    %70 = arith.mulf %65, %65 : vector<128x128xf32>
    %cst_84 = arith.constant dense<0.000000e+00> : vector<128xf32>
    %71 = vector.multi_reduction <add>, %70, %cst_84 [0] : vector<128x128xf32> to vector<128xf32>
    %72 = vector.shape_cast %71 : vector<128xf32> to vector<1x128xf32>
    %cst_85 = arith.constant 7.812500e-03 : f32
    %73 = vector.broadcast %cst_85 : f32 to vector<1x128xf32>
    %74 = arith.mulf %69, %73 : vector<1x128xf32>
    %cst_86 = arith.constant 7.812500e-03 : f32
    %75 = vector.broadcast %cst_86 : f32 to vector<1x128xf32>
    %76 = arith.mulf %72, %75 : vector<1x128xf32>
    %77 = arith.mulf %74, %74 : vector<1x128xf32>
    %78 = arith.subf %76, %77 : vector<1x128xf32>
    %cst_87 = arith.constant 9.99999974E-6 : f32
    %79 = vector.broadcast %cst_87 : f32 to vector<1x128xf32>
    %80 = arith.addf %78, %79 : vector<1x128xf32>
    %81 = math.rsqrt %80 : vector<1x128xf32>
    %82 = arith.mulf %66, %81 : vector<1x128xf32>
    %83 = arith.mulf %74, %82 : vector<1x128xf32>
    %84 = arith.subf %67, %83 : vector<1x128xf32>
    %85 = vector.broadcast %82 : vector<1x128xf32> to vector<128x128xf32>
    %86 = arith.mulf %65, %85 : vector<128x128xf32>
    %87 = vector.broadcast %84 : vector<1x128xf32> to vector<128x128xf32>
    %88 = arith.addf %86, %87 : vector<128x128xf32>
    %cst_88 = arith.constant 0.000000e+00 : f32
    %89 = vector.broadcast %cst_88 : f32 to vector<128x128xf32>
    %90 = arith.maximumf %88, %89 : vector<128x128xf32>
    %91 = arith.truncf %90 : vector<128x128xf32> to vector<128x128xbf16>
    %c0_89 = arith.constant 0 : index
    %c0_90 = arith.constant 0 : index
    %92 = vector.load %arg7[%c0_89, %c0_90] : memref<128x128xbf16, #tpu.memory_space<vmem>>, vector<128x128xbf16>
    %cst_91 = arith.constant dense<0.000000e+00> : vector<128x128xf32>
    %93 = tpu.matmul %91, %92, %cst_91 {dimension_numbers = #tpu.dot_dimension_numbers<[1], [0], [0], [1], [0, 0, 1, 1], [], []>} : vector<128x128xbf16>, vector<128x128xbf16>, vector<128x128xf32> -> vector<128x128xf32>
    %c0_92 = arith.constant 0 : index
    %c0_93 = arith.constant 0 : index
    %94 = vector.load %arg8[%c0_92, %c0_93] : memref<1x128xf32, #tpu.memory_space<vmem>>, vector<1x128xf32>
    %c0_94 = arith.constant 0 : index
    %c0_95 = arith.constant 0 : index
    %95 = vector.load %arg9[%c0_94, %c0_95] : memref<1x128xf32, #tpu.memory_space<vmem>>, vector<1x128xf32>
    %cst_96 = arith.constant dense<0.000000e+00> : vector<128xf32>
    %96 = vector.multi_reduction <add>, %93, %cst_96 [0] : vector<128x128xf32> to vector<128xf32>
    %97 = vector.shape_cast %96 : vector<128xf32> to vector<1x128xf32>
    %98 = arith.mulf %93, %93 : vector<128x128xf32>
    %cst_97 = arith.constant dense<0.000000e+00> : vector<128xf32>
    %99 = vector.multi_reduction <add>, %98, %cst_97 [0] : vector<128x128xf32> to vector<128xf32>
    %100 = vector.shape_cast %99 : vector<128xf32> to vector<1x128xf32>
    %cst_98 = arith.constant 7.812500e-03 : f32
    %101 = vector.broadcast %cst_98 : f32 to vector<1x128xf32>
    %102 = arith.mulf %97, %101 : vector<1x128xf32>
    %cst_99 = arith.constant 7.812500e-03 : f32
    %103 = vector.broadcast %cst_99 : f32 to vector<1x128xf32>
    %104 = arith.mulf %100, %103 : vector<1x128xf32>
    %105 = arith.mulf %102, %102 : vector<1x128xf32>
    %106 = arith.subf %104, %105 : vector<1x128xf32>
    %cst_100 = arith.constant 9.99999974E-6 : f32
    %107 = vector.broadcast %cst_100 : f32 to vector<1x128xf32>
    %108 = arith.addf %106, %107 : vector<1x128xf32>
    %109 = math.rsqrt %108 : vector<1x128xf32>
    %110 = arith.mulf %94, %109 : vector<1x128xf32>
    %111 = arith.mulf %102, %110 : vector<1x128xf32>
    %112 = arith.subf %95, %111 : vector<1x128xf32>
    %113 = vector.broadcast %110 : vector<1x128xf32> to vector<128x128xf32>
    %114 = arith.mulf %93, %113 : vector<128x128xf32>
    %115 = vector.broadcast %112 : vector<1x128xf32> to vector<128x128xf32>
    %116 = arith.addf %114, %115 : vector<128x128xf32>
    %117 = arith.addf %116, %0 : vector<128x128xf32>
    %cst_101 = arith.constant 0.000000e+00 : f32
    %118 = vector.broadcast %cst_101 : f32 to vector<128x128xf32>
    %119 = arith.maximumf %117, %118 : vector<128x128xf32>
    %c0_102 = arith.constant 0 : index
    %c0_103 = arith.constant 0 : index
    %120 = vector.load %arg10[%c0_102, %c0_103] : memref<128x128xf32, #tpu.memory_space<vmem>>, vector<128x128xf32>
    tpu.vector_store %arg10[%c0_102, %c0_103], %119 {strides = array<i32>} : memref<128x128xf32, #tpu.memory_space<vmem>>, vector<128x128xf32>,
    return
  }
}

</mosaic_0001>

<llo_original>
// kernel: tpu_custom_call.1
$region0: #{tpu_custom_call.1}
  #allocation0 [shape = 'u32[]', space=smem, size = 0x4, offset = 0x4, fixed_abs, tag = 'smem constant byte address 0x4 - core index']
  #allocation1 [shape = 'u32[144,128]{1,0:T(1,128)}', space=vmem, size = 0x12000, scoped, tag = 'internal scratch']
  #allocation2 [shape = 'bf16[10,10,2,128]{3,2,1,0:T(2,128)(2,1)}', space=vmem, size = 0xc800, scoped, tag = 'scratch operand']
  #allocation3 [shape = 'bf16[128,1152]{1,0:T(8,128)(2,1)}', space=vmem, size = 0x48000, scoped, tag = 'scratch operand']
  %s0 = inlined_call_operand.hbm [shape: f32[128,128], index: 0, kind: input, shape index: {}]
  %s1 = inlined_call_operand.hbm [shape: bf16[128,128], index: 1, kind: input, shape index: {}]
  %s2 = inlined_call_operand.vmem [shape: f32[1,128], index: 2, kind: input, shape index: {}]
  %s3 = inlined_call_operand.vmem [shape: f32[1,128], index: 3, kind: input, shape index: {}]
  %s4 = inlined_call_operand.hbm [shape: bf16[1152,128], index: 4, kind: input, shape index: {}]
  %s5 = inlined_call_operand.vmem [shape: f32[1,128], index: 5, kind: input, shape index: {}]
  %s6 = inlined_call_operand.vmem [shape: f32[1,128], index: 6, kind: input, shape index: {}]
  %s7 = inlined_call_operand.hbm [shape: bf16[128,128], index: 7, kind: input, shape index: {}]
  %s8 = inlined_call_operand.vmem [shape: f32[1,128], index: 8, kind: input, shape index: {}]
  %s9 = inlined_call_operand.vmem [shape: f32[1,128], index: 9, kind: input, shape index: {}]
  %s10 = inlined_call_operand.hbm [shape: f32[128,128], index: 10, kind: output, shape index: {}]
  %s11 = sld [smem:[#allocation0]]
  $region66: #{tpu_custom_call.1} parent=0
    _
  %s13 = ssub.s32 1, %s11
  %s14 = scalar_select 0, %s13, %s11
  $region1: #{tpu_custom_call.1} parent=0
    #allocation4 [shape = 'u8[65536]{0}', space=vmem, size = 0x10000, scoped, tag = 'input window, operand 0, single buffered']
    #allocation5 [shape = 's32[1]{0}', space=sflag, size = 0x4, scoped, tag = 'scoped memory for tpu_custom_call.1']
    #allocation6 [shape = 's32[1]{0}', space=sflag, size = 0x4, scoped, tag = 'scoped memory for tpu_custom_call.1']
    #allocation7 [shape = 'u8[32768]{0}', space=vmem, size = 0x8000, scoped, tag = 'input window, operand 1, single buffered']
    #allocation8 [shape = 's32[1]{0}', space=sflag, size = 0x4, scoped, tag = 'scoped memory for tpu_custom_call.1']
    #allocation9 [shape = 'u8[294912]{0}', space=vmem, size = 0x48000, scoped, tag = 'input window, operand 4, single buffered']
    #allocation10 [shape = 'u8[32768]{0}', space=vmem, size = 0x8000, scoped, tag = 'input window, operand 7, single buffered']
    #allocation11 [shape = 's32[1]{0}', space=sflag, size = 0x4, scoped, tag = 'scoped memory for tpu_custom_call.1']
    #allocation12 [shape = 'u8[65536]{0}', space=vmem, size = 0x10000, scoped, tag = 'output window, operand 0, single buffered']
    %15 = vsyncpa [#allocation5], 0
    %16 = vsyncpa [#allocation8], 0
    %17 = vsyncpa [#allocation11], 0
    %18 = vsyncpa [#allocation6], 0
    // Predicated region
    $region2: #{tpu_custom_call.1} parent=1 // pred_check
      _
    $region3: #{tpu_custom_call.1} parent=1 // pred_check_branch
      %20 = sbr.rel (0) target = $region5
    $region4: #{tpu_custom_call.1} parent=1 // pred_region
      %s22 = ssub.s32 2048, 2048
      %23 = vsyncadd [#allocation5], %s22
      %s24 = sshll.u32 [#allocation4], 4
      %s25 = int_to_ptr.vmem [resolvable:$true] %s24
      %30 = dma.hbm_to_vmem [thread:$0]  %s0, 2048, %s25, [#allocation5], 128, 128, 8
    $region5: #{tpu_custom_call.1} parent=1 // pred_fallthru
      _
    // Predicated region
    $region6: #{tpu_custom_call.1} parent=1 // pred_check
      _
    $region7: #{tpu_custom_call.1} parent=1 // pred_check_branch
      %32 = sbr.rel (0) target = $region9
    $region8: #{tpu_custom_call.1} parent=1 // pred_region
      %s34 = ssub.s32 1024, 1024
      %35 = vsyncadd [#allocation8], %s34
      %s36 = sshll.u32 [#allocation7], 4
      %s37 = int_to_ptr.vmem [resolvable:$true] %s36
      %42 = dma.hbm_to_vmem [thread:$0]  %s1, 1024, %s37, [#allocation8], 64, 64, 4
    $region9: #{tpu_custom_call.1} parent=1 // pred_fallthru
      _
    // Predicated region
    $region10: #{tpu_custom_call.1} parent=1 // pred_check
      _
    $region11: #{tpu_custom_call.1} parent=1 // pred_check_branch
      %44 = sbr.rel (0) target = $region13
    $region12: #{tpu_custom_call.1} parent=1 // pred_region
      _
    $region13: #{tpu_custom_call.1} parent=1 // pred_fallthru
      _
    // Predicated region
    $region14: #{tpu_custom_call.1} parent=1 // pred_check
      _
    $region15: #{tpu_custom_call.1} parent=1 // pred_check_branch
      %46 = sbr.rel (0) target = $region17
    $region16: #{tpu_custom_call.1} parent=1 // pred_region
      _
    $region17: #{tpu_custom_call.1} parent=1 // pred_fallthru
      _
    // Predicated region
    $region18: #{tpu_custom_call.1} parent=1 // pred_check
      _
    $region19: #{tpu_custom_call.1} parent=1 // pred_check_branch
      %48 = sbr.rel (0) target = $region21
    $region20: #{tpu_custom_call.1} parent=1 // pred_region
      %s50 = ssub.s32 9216, 9216
      %51 = vsyncadd [#allocation8], %s50
      %s52 = sshll.u32 [#allocation9], 4
      %s53 = int_to_ptr.vmem [resolvable:$true] %s52
      %58 = dma.hbm_to_vmem [thread:$0]  %s4, 9216, %s53, [#allocation8], 64, 64, 4
    $region21: #{tpu_custom_call.1} parent=1 // pred_fallthru
      _
    // Predicated region
    $region22: #{tpu_custom_call.1} parent=1 // pred_check
      _
    $region23: #{tpu_custom_call.1} parent=1 // pred_check_branch
      %60 = sbr.rel (0) target = $region25
    $region24: #{tpu_custom_call.1} parent=1 // pred_region
      _
    $region25: #{tpu_custom_call.1} parent=1 // pred_fallthru
      _
    // Predicated region
    $region26: #{tpu_custom_call.1} parent=1 // pred_check
      _
    $region27: #{tpu_custom_call.1} parent=1 // pred_check_branch
      %62 = sbr.rel (0) target = $region29
    $region28: #{tpu_custom_call.1} parent=1 // pred_region
      _
    $region29: #{tpu_custom_call.1} parent=1 // pred_fallthru
      _
    // Predicated region
    $region30: #{tpu_custom_call.1} parent=1 // pred_check
      _
    $region31: #{tpu_custom_call.1} parent=1 // pred_check_branch
      %64 = sbr.rel (0) target = $region33
    $region32: #{tpu_custom_call.1} parent=1 // pred_region
      %s66 = ssub.s32 1024, 1024
      %67 = vsyncadd [#allocation11], %s66
      %s68 = sshll.u32 [#allocation10], 4
      %s69 = int_to_ptr.vmem [resolvable:$true] %s68
      %74 = dma.hbm_to_vmem [thread:$0]  %s7, 1024, %s69, [#allocation11], 64, 64, 4
    $region33: #{tpu_custom_call.1} parent=1 // pred_fallthru
      _
    // Predicated region
    $region34: #{tpu_custom_call.1} parent=1 // pred_check
      _
    $region35: #{tpu_custom_call.1} parent=1 // pred_check_branch
      %76 = sbr.rel (0) target = $region37
    $region36: #{tpu_custom_call.1} parent=1 // pred_region
      _
    $region37: #{tpu_custom_call.1} parent=1 // pred_fallthru
      _
    // Predicated region
    $region38: #{tpu_custom_call.1} parent=1 // pred_check
      _
    $region39: #{tpu_custom_call.1} parent=1 // pred_check_branch
      %78 = sbr.rel (0) target = $region41
    $region40: #{tpu_custom_call.1} parent=1 // pred_region
      _
    $region41: #{tpu_custom_call.1} parent=1 // pred_fallthru
      _
    // Predicated region
    $region42: #{tpu_custom_call.1} parent=1 // pred_check
      _
    $region43: #{tpu_custom_call.1} parent=1 // pred_check_branch
      %80 = sbr.rel (0) target = $region45
    $region44: #{tpu_custom_call.1} parent=1 // pred_region
      %81 = dma.done [#allocation5], 2048
    $region45: #{tpu_custom_call.1} parent=1 // pred_fallthru
      _
    // Predicated region
    $region46: #{tpu_custom_call.1} parent=1 // pred_check
      _
    $region47: #{tpu_custom_call.1} parent=1 // pred_check_branch
      %83 = sbr.rel (0) target = $region49
    $region48: #{tpu_custom_call.1} parent=1 // pred_region
      %84 = dma.done [#allocation8], 1024
    $region49: #{tpu_custom_call.1} parent=1 // pred_fallthru
      _
    // Predicated region
    $region50: #{tpu_custom_call.1} parent=1 // pred_check
      _
    $region51: #{tpu_custom_call.1} parent=1 // pred_check_branch
      %86 = sbr.rel (0) target = $region53
    $region52: #{tpu_custom_call.1} parent=1 // pred_region
      %87 = dma.done [#allocation8], 9216
    $region53: #{tpu_custom_call.1} parent=1 // pred_fallthru
      _
    // Predicated region
    $region54: #{tpu_custom_call.1} parent=1 // pred_check
      _
    $region55: #{tpu_custom_call.1} parent=1 // pred_check_branch
      %89 = sbr.rel (0) target = $region57
    $region56: #{tpu_custom_call.1} parent=1 // pred_region
      %90 = dma.done [#allocation11], 1024
    $region57: #{tpu_custom_call.1} parent=1 // pred_fallthru
      _
    %v92 = vld [vmem:[#allocation4] sm:$0xff]
    %v93 = vld [vmem:[#allocation4 + $0x8] sm:$0xff]
    %v94 = vld [vmem:[#allocation4 + $0x10] sm:$0xff]
    %v95 = vld [vmem:[#allocation4 + $0x18] sm:$0xff]
    %v96 = vld [vmem:[#allocation4 + $0x20] sm:$0xff]
    %v97 = vld [vmem:[#allocation4 + $0x28] sm:$0xff]
    %v98 = vld [vmem:[#allocation4 + $0x30] sm:$0xff]
    %v99 = vld [vmem:[#allocation4 + $0x38] sm:$0xff]
    %v100 = vld [vmem:[#allocation4 + $0x40] sm:$0xff]
    %v101 = vld [vmem:[#allocation4 + $0x48] sm:$0xff]
    %v102 = vld [vmem:[#allocation4 + $0x50] sm:$0xff]
    %v103 = vld [vmem:[#allocation4 + $0x58] sm:$0xff]
    %v104 = vld [vmem:[#allocation4 + $0x60] sm:$0xff]
    %v105 = vld [vmem:[#allocation4 + $0x68] sm:$0xff]
    %v106 = vld [vmem:[#allocation4 + $0x70] sm:$0xff]
    %v107 = vld [vmem:[#allocation4 + $0x78] sm:$0xff]
    %v108 = vpack.c.bf16 %v93, %v92
    %v109 = vpack.c.bf16 %v95, %v94
    %v110 = vpack.c.bf16 %v97, %v96
    %v111 = vpack.c.bf16 %v99, %v98
    %v112 = vpack.c.bf16 %v101, %v100
    %v113 = vpack.c.bf16 %v103, %v102
    %v114 = vpack.c.bf16 %v105, %v104
    %v115 = vpack.c.bf16 %v107, %v106
    %v116 = vld [vmem:[#allocation7] sm:$0xf]
    %v117 = vld [vmem:[#allocation7 + $0x4] sm:$0xf]
    %v118 = vld [vmem:[#allocation7 + $0x8] sm:$0xf]
    %v119 = vld [vmem:[#allocation7 + $0xc] sm:$0xf]
    %v120 = vld [vmem:[#allocation7 + $0x10] sm:$0xf]
    %v121 = vld [vmem:[#allocation7 + $0x14] sm:$0xf]
    %v122 = vld [vmem:[#allocation7 + $0x18] sm:$0xf]
    %v123 = vld [vmem:[#allocation7 + $0x1c] sm:$0xf]
    %v124 = vld [vmem:[#allocation7 + $0x20] sm:$0xf]
    %v125 = vld [vmem:[#allocation7 + $0x24] sm:$0xf]
    %v126 = vld [vmem:[#allocation7 + $0x28] sm:$0xf]
    %v127 = vld [vmem:[#allocation7 + $0x2c] sm:$0xf]
    %v128 = vld [vmem:[#allocation7 + $0x30] sm:$0xf]
    %v129 = vld [vmem:[#allocation7 + $0x34] sm:$0xf]
    %v130 = vld [vmem:[#allocation7 + $0x38] sm:$0xf]
    %v131 = vld [vmem:[#allocation7 + $0x3c] sm:$0xf]
    %v148 = vunpack.c.l.b16 %v116
    %v149 = vunpack.c.l.b16 %v117
    %v150 = vunpack.c.l.b16 %v118
    %v151 = vunpack.c.l.b16 %v119
    %v152 = vunpack.c.l.b16 %v120
    %v153 = vunpack.c.l.b16 %v121
    %v154 = vunpack.c.l.b16 %v122
    %v155 = vunpack.c.l.b16 %v123
    %v156 = vunpack.c.l.b16 %v124
    %v157 = vunpack.c.l.b16 %v125
    %v158 = vunpack.c.l.b16 %v126
    %v159 = vunpack.c.l.b16 %v127
    %v160 = vunpack.c.l.b16 %v128
    %v161 = vunpack.c.l.b16 %v129
    %v162 = vunpack.c.l.b16 %v130
    %v163 = vunpack.c.l.b16 %v131
    %v164 = vpack.c.b16 %v149, %v148
    %v165 = vpack.c.b16 %v151, %v150
    %v166 = vpack.c.b16 %v153, %v152
    %v167 = vpack.c.b16 %v155, %v154
    %v168 = vpack.c.b16 %v157, %v156
    %v169 = vpack.c.b16 %v159, %v158
    %v170 = vpack.c.b16 %v161, %v160
    %v171 = vpack.c.b16 %v163, %v162
    %180 = vmatprep.subr.bf16.mxu0 0
    %181 = vmatpush1.bf16.msra.mxu0 %v171
    %182 = vmatprep.subr.bf16.mxu0 0
    %183 = vmatpush1.bf16.msra.mxu0 %v170
    %184 = vmatprep.subr.bf16.mxu0 0
    %185 = vmatpush1.bf16.msra.mxu0 %v169
    %186 = vmatprep.subr.bf16.mxu0 0
    %187 = vmatpush1.bf16.msra.mxu0 %v168
    %188 = vmatprep.subr.bf16.mxu0 0
    %189 = vmatpush1.bf16.msra.mxu0 %v167
    %190 = vmatprep.subr.bf16.mxu0 0
    %191 = vmatpush1.bf16.msra.mxu0 %v166
    %192 = vmatprep.subr.bf16.mxu0 0
    %193 = vmatpush1.bf16.msra.mxu0 %v165
    %194 = vmatprep.subr.bf16.mxu0 0
    %195 = vmatpush1.bf16.msra.mxu0 %v164
    %196 = vmatprep.subr.bf16.mxu0 0
    %197 = vmatpush2.bf16.msra.mxu0 0
    %198 = vmatprep.subr.bf16.mxu0 0
    %199 = vmatpush2.bf16.msra.mxu0 0
    %200 = vmatprep.subr.bf16.mxu0 0
    %201 = vmatpush2.bf16.msra.mxu0 0
    %202 = vmatprep.subr.bf16.mxu0 0
    %203 = vmatpush2.bf16.msra.mxu0 0
    %204 = vmatprep.subr.bf16.mxu0 0
    %205 = vmatpush2.bf16.msra.mxu0 0
    %206 = vmatprep.subr.bf16.mxu0 0
    %207 = vmatpush2.bf16.msra.mxu0 0
    %208 = vmatprep.subr.bf16.mxu0 0
    %209 = vmatpush2.bf16.msra.mxu0 0
    %210 = vmatprep.subr.bf16.mxu0 0
    %211 = vmatpush2.bf16.msra.mxu0 0
    %212 = vmatprep.mubr.bf16.mxu0 0
    %213 = vmatmul.mubr.bf16.gmra.mxu0 %v108
    %v214 = vpop.f32.mrf.mxu0
    %v215 = vadd.f32 0.0, %v214
    %v216 = vpop.f32.mrf.mxu0
    %v217 = vpop.f32.mrf.mxu0
    %v218 = vadd.f32 0.0, %v217
    %v219 = vpop.f32.mrf.mxu0
    %220 = vmatprep.mubr.bf16.mxu0 0
    %221 = vmatmul.mubr.bf16.gmra.mxu0 %v109
    %v222 = vpop.f32.mrf.mxu0
    %v223 = vadd.f32 0.0, %v222
    %v224 = vpop.f32.mrf.mxu0
    %v225 = vpop.f32.mrf.mxu0
    %v226 = vadd.f32 0.0, %v225
    %v227 = vpop.f32.mrf.mxu0
    %228 = vmatprep.mubr.bf16.mxu0 0
    %229 = vmatmul.mubr.bf16.gmra.mxu0 %v110
    %v230 = vpop.f32.mrf.mxu0
    %v231 = vadd.f32 0.0, %v230
    %v232 = vpop.f32.mrf.mxu0
    %v233 = vpop.f32.mrf.mxu0
    %v234 = vadd.f32 0.0, %v233
    %v235 = vpop.f32.mrf.mxu0
    %236 = vmatprep.mubr.bf16.mxu0 0
    %237 = vmatmul.mubr.bf16.gmra.mxu0 %v111
    %v238 = vpop.f32.mrf.mxu0
    %v239 = vadd.f32 0.0, %v238
    %v240 = vpop.f32.mrf.mxu0
    %v241 = vpop.f32.mrf.mxu0
    %v242 = vadd.f32 0.0, %v241
    %v243 = vpop.f32.mrf.mxu0
    %244 = vmatprep.mubr.bf16.mxu0 0
    %245 = vmatmul.mubr.bf16.gmra.mxu0 %v112
    %v246 = vpop.f32.mrf.mxu0
    %v247 = vadd.f32 0.0, %v246
    %v248 = vpop.f32.mrf.mxu0
    %v249 = vpop.f32.mrf.mxu0
    %v250 = vadd.f32 0.0, %v249
    %v251 = vpop.f32.mrf.mxu0
    %252 = vmatprep.mubr.bf16.mxu0 0
    %253 = vmatmul.mubr.bf16.gmra.mxu0 %v113
    %v254 = vpop.f32.mrf.mxu0
    %v255 = vadd.f32 0.0, %v254
    %v256 = vpop.f32.mrf.mxu0
    %v257 = vpop.f32.mrf.mxu0
    %v258 = vadd.f32 0.0, %v257
    %v259 = vpop.f32.mrf.mxu0
    %260 = vmatprep.mubr.bf16.mxu0 0
    %261 = vmatmul.mubr.bf16.gmra.mxu0 %v114
    %v262 = vpop.f32.mrf.mxu0
    %v263 = vadd.f32 0.0, %v262
    %v264 = vpop.f32.mrf.mxu0
    %v265 = vpop.f32.mrf.mxu0
    %v266 = vadd.f32 0.0, %v265
    %v267 = vpop.f32.mrf.mxu0
    %268 = vmatprep.mubr.bf16.mxu0 0
    %269 = vmatmul.mubr.bf16.gmra.mxu0 %v115
    %v270 = vpop.f32.mrf.mxu0
    %v271 = vadd.f32 0.0, %v270
    %v272 = vpop.f32.mrf.mxu0
    %v273 = vpop.f32.mrf.mxu0
    %v274 = vadd.f32 0.0, %v273
    %v275 = vpop.f32.mrf.mxu0
    %276 = vdwg.mxu0
    %v277 = vld [vmem:[%s2] sm:$0x1]
    %v278 = vld [vmem:[%s3] sm:$0x1]
    %v279 = vadd.f32 %v215, %v218
    %v280 = vadd.f32 %v279, %v223
    %v281 = vadd.f32 %v280, %v226
    %v282 = vadd.f32 %v281, %v231
    %v283 = vadd.f32 %v282, %v234
    %v284 = vadd.f32 %v283, %v239
    %v285 = vadd.f32 %v284, %v242
    %v286 = vadd.f32 %v285, %v247
    %v287 = vadd.f32 %v286, %v250
    %v288 = vadd.f32 %v287, %v255
    %v289 = vadd.f32 %v288, %v258
    %v290 = vadd.f32 %v289, %v263
    %v291 = vadd.f32 %v290, %v266
    %v292 = vadd.f32 %v291, %v271
    %v293 = vadd.f32 %v292, %v274
    %v294 = vrot.slane %v293, 4
    %v295 = vadd.f32 %v293, %v294
    %v296 = vrot.slane %v295, 2
    %v297 = vadd.f32 %v295, %v296
    %v298 = vrot.slane %v297, 1
    %v299 = vadd.f32 %v297, %v298
    %v300 = vmul.f32 %v215, %v215
    %v301 = vmul.f32 %v218, %v218
    %v302 = vmul.f32 %v223, %v223
    %v303 = vmul.f32 %v226, %v226
    %v304 = vmul.f32 %v231, %v231
    %v305 = vmul.f32 %v234, %v234
    %v306 = vmul.f32 %v239, %v239
    %v307 = vmul.f32 %v242, %v242
    %v308 = vmul.f32 %v247, %v247
    %v309 = vmul.f32 %v250, %v250
    %v310 = vmul.f32 %v255, %v255
    %v311 = vmul.f32 %v258, %v258
    %v312 = vmul.f32 %v263, %v263
    %v313 = vmul.f32 %v266, %v266
    %v314 = vmul.f32 %v271, %v271
    %v315 = vmul.f32 %v274, %v274
    %v316 = vadd.f32 %v300, %v301
    %v317 = vadd.f32 %v316, %v302
    %v318 = vadd.f32 %v317, %v303
    %v319 = vadd.f32 %v318, %v304
    %v320 = vadd.f32 %v319, %v305
    %v321 = vadd.f32 %v320, %v306
    %v322 = vadd.f32 %v321, %v307
    %v323 = vadd.f32 %v322, %v308
    %v324 = vadd.f32 %v323, %v309
    %v325 = vadd.f32 %v324, %v310
    %v326 = vadd.f32 %v325, %v311
    %v327 = vadd.f32 %v326, %v312
    %v328 = vadd.f32 %v327, %v313
    %v329 = vadd.f32 %v328, %v314
    %v330 = vadd.f32 %v329, %v315
    %v331 = vrot.slane %v330, 4
    %v332 = vadd.f32 %v330, %v331
    %v333 = vrot.slane %v332, 2
    %v334 = vadd.f32 %v332, %v333
    %v335 = vrot.slane %v334, 1
    %v336 = vadd.f32 %v334, %v335
    %v337 = vmul.f32 %v299, 0.0078125
    %v338 = vmul.f32 %v336, 0.0078125
    %v339 = vmul.f32 %v337, %v337
    %v340 = vsub.f32 %v338, %v339
    %v341 = vadd.f32 %v340, 1e-05
    %v342 = vrsqrt.pop %v341
    %v343 = vmul.f32 %v277, %v342
    %v344 = vmul.f32 %v337, %v343
    %v345 = vsub.f32 %v278, %v344
    %v347 = vlaneseq
    %v348 = vshrl.u32 %v347, 7
    %v349 = vsub.s32 0, %v348
    %v350 = vrot.slane %v343, %v349
    %v352 = vmul.f32 %v215, %v350
    %v353 = vmul.f32 %v218, %v350
    %v354 = vmul.f32 %v223, %v350
    %v355 = vmul.f32 %v226, %v350
    %v356 = vmul.f32 %v231, %v350
    %v357 = vmul.f32 %v234, %v350
    %v358 = vmul.f32 %v239, %v350
    %v359 = vmul.f32 %v242, %v350
    %v360 = vmul.f32 %v247, %v350
    %v361 = vmul.f32 %v250, %v350
    %v362 = vmul.f32 %v255, %v350
    %v363 = vmul.f32 %v258, %v350
    %v364 = vmul.f32 %v263, %v350
    %v365 = vmul.f32 %v266, %v350
    %v366 = vmul.f32 %v271, %v350
    %v367 = vmul.f32 %v274, %v350
    %v369 = vlaneseq
    %v370 = vshrl.u32 %v369, 7
    %v371 = vsub.s32 0, %v370
    %v372 = vrot.slane %v345, %v371
    %v374 = vadd.f32 %v352, %v372
    %v375 = vadd.f32 %v353, %v372
    %v376 = vadd.f32 %v354, %v372
    %v377 = vadd.f32 %v355, %v372
    %v378 = vadd.f32 %v356, %v372
    %v379 = vadd.f32 %v357, %v372
    %v380 = vadd.f32 %v358, %v372
    %v381 = vadd.f32 %v359, %v372
    %v382 = vadd.f32 %v360, %v372
    %v383 = vadd.f32 %v361, %v372
    %v384 = vadd.f32 %v362, %v372
    %v385 = vadd.f32 %v363, %v372
    %v386 = vadd.f32 %v364, %v372
    %v387 = vadd.f32 %v365, %v372
    %v388 = vadd.f32 %v366, %v372
    %v389 = vadd.f32 %v367, %v372
    %v390 = vmax.f32 %v374, 0.0
    %v391 = vmax.f32 %v375, 0.0
    %v392 = vmax.f32 %v376, 0.0
    %v393 = vmax.f32 %v377, 0.0
    %v394 = vmax.f32 %v378, 0.0
    %v395 = vmax.f32 %v379, 0.0
    %v396 = vmax.f32 %v380, 0.0
    %v397 = vmax.f32 %v381, 0.0
    %v398 = vmax.f32 %v382, 0.0
    %v399 = vmax.f32 %v383, 0.0
    %v400 = vmax.f32 %v384, 0.0
    %v401 = vmax.f32 %v385, 0.0
    %v402 = vmax.f32 %v386, 0.0
    %v403 = vmax.f32 %v387, 0.0
    %v404 = vmax.f32 %v388, 0.0
    %v405 = vmax.f32 %v389, 0.0
    %v406 = vpack.c.bf16 %v391, %v390
    %v407 = vpack.c.bf16 %v393, %v392
    %v408 = vpack.c.bf16 %v395, %v394
    %v409 = vpack.c.bf16 %v397, %v396
    %v410 = vpack.c.bf16 %v399, %v398
    %v411 = vpack.c.bf16 %v401, %v400
    %v412 = vpack.c.bf16 %v403, %v402
    %v413 = vpack.c.bf16 %v405, %v404
    %414 = vst [vmem:[#allocation2] sm:$0x1] 0
    %415 = vst [vmem:[#allocation2 + $0x1] sm:$0x1] 0
    %416 = vst [vmem:[#allocation2 + $0x2] sm:$0x1] 0
    %417 = vst [vmem:[#allocation2 + $0x3] sm:$0x1] 0
    %418 = vst [vmem:[#allocation2 + $0x4] sm:$0x1] 0
    %419 = vst [vmem:[#allocation2 + $0x5] sm:$0x1] 0
    %420 = vst [vmem:[#allocation2 + $0x6] sm:$0x1] 0
    %421 = vst [vmem:[#allocation2 + $0x7] sm:$0x1] 0
    %422 = vst [vmem:[#allocation2 + $0x8] sm:$0x1] 0
    %423 = vst [vmem:[#allocation2 + $0x9] sm:$0x1] 0
    %s424 = scalar_lea.vmem [#allocation2], 90
    %425 = vst [vmem:[%s424] sm:$0x1] 0
    %426 = vst [vmem:[%s424 + $0x1] sm:$0x1] 0
    %427 = vst [vmem:[%s424 + $0x2] sm:$0x1] 0
    %428 = vst [vmem:[%s424 + $0x3] sm:$0x1] 0
    %429 = vst [vmem:[%s424 + $0x4] sm:$0x1] 0
    %430 = vst [vmem:[%s424 + $0x5] sm:$0x1] 0
    %431 = vst [vmem:[%s424 + $0x6] sm:$0x1] 0
    %432 = vst [vmem:[%s424 + $0x7] sm:$0x1] 0
    %433 = vst [vmem:[%s424 + $0x8] sm:$0x1] 0
    %434 = vst [vmem:[%s424 + $0x9] sm:$0x1] 0
    %s435 = scalar_lea.vmem [#allocation2], 10
    %436 = vst [vmem:[%s435] sm:$0x1] 0
    %437 = vst [vmem:[%s435 + $0xa] sm:$0x1] 0
    %438 = vst [vmem:[%s435 + $0x14] sm:$0x1] 0
    %439 = vst [vmem:[%s435 + $0x1e] sm:$0x1] 0
    %440 = vst [vmem:[%s435 + $0x28] sm:$0x1] 0
    %441 = vst [vmem:[%s435 + $0x32] sm:$0x1] 0
    %442 = vst [vmem:[%s435 + $0x3c] sm:$0x1] 0
    %443 = vst [vmem:[%s435 + $0x46] sm:$0x1] 0
    %s444 = scalar_lea.vmem [#allocation2], 19
    %445 = vst [vmem:[%s444] sm:$0x1] 0
    %446 = vst [vmem:[%s444 + $0xa] sm:$0x1] 0
    %447 = vst [vmem:[%s444 + $0x14] sm:$0x1] 0
    %448 = vst [vmem:[%s444 + $0x1e] sm:$0x1] 0
    %449 = vst [vmem:[%s444 + $0x28] sm:$0x1] 0
    %450 = vst [vmem:[%s444 + $0x32] sm:$0x1] 0
    %451 = vst [vmem:[%s444 + $0x3c] sm:$0x1] 0
    %452 = vst [vmem:[%s444 + $0x46] sm:$0x1] 0
    %v461 = vcombine.high %v406, %v406
    %v463 = vunpack.c.l.s4 1966171168
    %v464 = vunpack.c.0.s8 %v463
    %v465 = vlaneseq
    %v466 = vshrl.u32 %v465, 7
    %v467 = vsub.s32 %v464, %v466
    %v468 = vrot.slane %v406, %v467
    %v470 = vunpack.c.l.s4 1966171168
    %v471 = vunpack.c.0.s8 %v470
    %v472 = vlaneseq
    %v473 = vshrl.u32 %v472, 7
    %v474 = vsub.s32 %v471, %v473
    %v475 = vrot.slane %v461, %v474
    %v476 = vcombine.high %v468, %v468
    %v477 = vcombine.high %v475, %v475
    %v479 = vunpack.c.l.s4 1966171168
    %v480 = vunpack.c.0.s8 %v479
    %v481 = vlaneseq
    %v482 = vshrl.u32 %v481, 7
    %v483 = vsub.s32 %v480, %v482
    %v484 = vrot.slane %v468, %v483
    %v486 = vunpack.c.l.s4 1966171168
    %v487 = vunpack.c.0.s8 %v486
    %v488 = vlaneseq
    %v489 = vshrl.u32 %v488, 7
    %v490 = vsub.s32 %v487, %v489
    %v491 = vrot.slane %v475, %v490
    %v493 = vunpack.c.l.s4 1966171168
    %v494 = vunpack.c.0.s8 %v493
    %v495 = vlaneseq
    %v496 = vshrl.u32 %v495, 7
    %v497 = vsub.s32 %v494, %v496
    %v498 = vrot.slane %v476, %v497
    %v500 = vunpack.c.l.s4 1966171168
    %v501 = vunpack.c.0.s8 %v500
    %v502 = vlaneseq
    %v503 = vshrl.u32 %v502, 7
    %v504 = vsub.s32 %v501, %v503
    %v505 = vrot.slane %v477, %v504
    %v506 = vcombine.high %v484, %v484
    %v507 = vcombine.high %v491, %v491
    %v508 = vcombine.high %v498, %v498
    %v509 = vcombine.high %v505, %v505
    %v510 = vcombine.high %v407, %v407
    %v512 = vunpack.c.l.s4 1966171168
    %v513 = vunpack.c.0.s8 %v512
    %v514 = vlaneseq
    %v515 = vshrl.u32 %v514, 7
    %v516 = vsub.s32 %v513, %v515
    %v517 = vrot.slane %v407, %v516
    %v519 = vunpack.c.l.s4 1966171168
    %v520 = vunpack.c.0.s8 %v519
    %v521 = vlaneseq
    %v522 = vshrl.u32 %v521, 7
    %v523 = vsub.s32 %v520, %v522
    %v524 = vrot.slane %v510, %v523
    %v525 = vcombine.high %v517, %v517
    %v526 = vcombine.high %v524, %v524
    %v528 = vunpack.c.l.s4 1966171168
    %v529 = vunpack.c.0.s8 %v528
    %v530 = vlaneseq
    %v531 = vshrl.u32 %v530, 7
    %v532 = vsub.s32 %v529, %v531
    %v533 = vrot.slane %v517, %v532
    %v535 = vunpack.c.l.s4 1966171168
    %v536 = vunpack.c.0.s8 %v535
    %v537 = vlaneseq
    %v538 = vshrl.u32 %v537, 7
    %v539 = vsub.s32 %v536, %v538
    %v540 = vrot.slane %v524, %v539
    %v542 = vunpack.c.l.s4 1966171168
    %v543 = vunpack.c.0.s8 %v542
    %v544 = vlaneseq
    %v545 = vshrl.u32 %v544, 7
    %v546 = vsub.s32 %v543, %v545
    %v547 = vrot.slane %v525, %v546
    %v549 = vunpack.c.l.s4 1966171168
    %v550 = vunpack.c.0.s8 %v549
    %v551 = vlaneseq
    %v552 = vshrl.u32 %v551, 7
    %v553 = vsub.s32 %v550, %v552
    %v554 = vrot.slane %v526, %v553
    %v555 = vcombine.high %v533, %v533
    %v556 = vcombine.high %v540, %v540
    %v557 = vcombine.high %v547, %v547
    %v558 = vcombine.high %v554, %v554
    %v559 = vcombine.high %v408, %v408
    %v561 = vunpack.c.l.s4 1966171168
    %v562 = vunpack.c.0.s8 %v561
    %v563 = vlaneseq
    %v564 = vshrl.u32 %v563, 7
    %v565 = vsub.s32 %v562, %v564
    %v566 = vrot.slane %v408, %v565
    %v568 = vunpack.c.l.s4 1966171168
    %v569 = vunpack.c.0.s8 %v568
    %v570 = vlaneseq
    %v571 = vshrl.u32 %v570, 7
    %v572 = vsub.s32 %v569, %v571
    %v573 = vrot.slane %v559, %v572
    %v574 = vcombine.high %v566, %v566
    %v575 = vcombine.high %v573, %v573
    %v577 = vunpack.c.l.s4 1966171168
    %v578 = vunpack.c.0.s8 %v577
    %v579 = vlaneseq
    %v580 = vshrl.u32 %v579, 7
    %v581 = vsub.s32 %v578, %v580
    %v582 = vrot.slane %v566, %v581
    %v584 = vunpack.c.l.s4 1966171168
    %v585 = vunpack.c.0.s8 %v584
    %v586 = vlaneseq
    %v587 = vshrl.u32 %v586, 7
    %v588 = vsub.s32 %v585, %v587
    %v589 = vrot.slane %v573, %v588
    %v591 = vunpack.c.l.s4 1966171168
    %v592 = vunpack.c.0.s8 %v591
    %v593 = vlaneseq
    %v594 = vshrl.u32 %v593, 7
    %v595 = vsub.s32 %v592, %v594
    %v596 = vrot.slane %v574, %v595
    %v598 = vunpack.c.l.s4 1966171168
    %v599 = vunpack.c.0.s8 %v598
    %v600 = vlaneseq
    %v601 = vshrl.u32 %v600, 7
    %v602 = vsub.s32 %v599, %v601
    %v603 = vrot.slane %v575, %v602
    %v604 = vcombine.high %v582, %v582
    %v605 = vcombine.high %v589, %v589
    %v606 = vcombine.high %v596, %v596
    %v607 = vcombine.high %v603, %v603
    %v608 = vcombine.high %v409, %v409
    %v610 = vunpack.c.l.s4 1966171168
    %v611 = vunpack.c.0.s8 %v610
    %v612 = vlaneseq
    %v613 = vshrl.u32 %v612, 7
    %v614 = vsub.s32 %v611, %v613
    %v615 = vrot.slane %v409, %v614
    %v617 = vunpack.c.l.s4 1966171168
    %v618 = vunpack.c.0.s8 %v617
    %v619 = vlaneseq
    %v620 = vshrl.u32 %v619, 7
    %v621 = vsub.s32 %v618, %v620
    %v622 = vrot.slane %v608, %v621
    %v623 = vcombine.high %v615, %v615
    %v624 = vcombine.high %v622, %v622
    %v626 = vunpack.c.l.s4 1966171168
    %v627 = vunpack.c.0.s8 %v626
    %v628 = vlaneseq
    %v629 = vshrl.u32 %v628, 7
    %v630 = vsub.s32 %v627, %v629
    %v631 = vrot.slane %v615, %v630
    %v633 = vunpack.c.l.s4 1966171168
    %v634 = vunpack.c.0.s8 %v633
    %v635 = vlaneseq
    %v636 = vshrl.u32 %v635, 7
    %v637 = vsub.s32 %v634, %v636
    %v638 = vrot.slane %v622, %v637
    %v640 = vunpack.c.l.s4 1966171168
    %v641 = vunpack.c.0.s8 %v640
    %v642 = vlaneseq
    %v643 = vshrl.u32 %v642, 7
    %v644 = vsub.s32 %v641, %v643
    %v645 = vrot.slane %v623, %v644
    %v647 = vunpack.c.l.s4 1966171168
    %v648 = vunpack.c.0.s8 %v647
    %v649 = vlaneseq
    %v650 = vshrl.u32 %v649, 7
    %v651 = vsub.s32 %v648, %v650
    %v652 = vrot.slane %v624, %v651
    %v653 = vcombine.high %v631, %v631
    %v654 = vcombine.high %v638, %v638
    %v655 = vcombine.high %v645, %v645
    %v656 = vcombine.high %v652, %v652
    %v657 = vcombine.high %v410, %v410
    %v659 = vunpack.c.l.s4 1966171168
    %v660 = vunpack.c.0.s8 %v659
    %v661 = vlaneseq
    %v662 = vshrl.u32 %v661, 7
    %v663 = vsub.s32 %v660, %v662
    %v664 = vrot.slane %v410, %v663
    %v666 = vunpack.c.l.s4 1966171168
    %v667 = vunpack.c.0.s8 %v666
    %v668 = vlaneseq
    %v669 = vshrl.u32 %v668, 7
    %v670 = vsub.s32 %v667, %v669
    %v671 = vrot.slane %v657, %v670
    %v672 = vcombine.high %v664, %v664
    %v673 = vcombine.high %v671, %v671
    %v675 = vunpack.c.l.s4 1966171168
    %v676 = vunpack.c.0.s8 %v675
    %v677 = vlaneseq
    %v678 = vshrl.u32 %v677, 7
    %v679 = vsub.s32 %v676, %v678
    %v680 = vrot.slane %v664, %v679
    %v682 = vunpack.c.l.s4 1966171168
    %v683 = vunpack.c.0.s8 %v682
    %v684 = vlaneseq
    %v685 = vshrl.u32 %v684, 7
    %v686 = vsub.s32 %v683, %v685
    %v687 = vrot.slane %v671, %v686
    %v689 = vunpack.c.l.s4 1966171168
    %v690 = vunpack.c.0.s8 %v689
    %v691 = vlaneseq
    %v692 = vshrl.u32 %v691, 7
    %v693 = vsub.s32 %v690, %v692
    %v694 = vrot.slane %v672, %v693
    %v696 = vunpack.c.l.s4 1966171168
    %v697 = vunpack.c.0.s8 %v696
    %v698 = vlaneseq
    %v699 = vshrl.u32 %v698, 7
    %v700 = vsub.s32 %v697, %v699
    %v701 = vrot.slane %v673, %v700
    %v702 = vcombine.high %v680, %v680
    %v703 = vcombine.high %v687, %v687
    %v704 = vcombine.high %v694, %v694
    %v705 = vcombine.high %v701, %v701
    %v706 = vcombine.high %v411, %v411
    %v708 = vunpack.c.l.s4 1966171168
    %v709 = vunpack.c.0.s8 %v708
    %v710 = vlaneseq
    %v711 = vshrl.u32 %v710, 7
    %v712 = vsub.s32 %v709, %v711
    %v713 = vrot.slane %v411, %v712
    %v715 = vunpack.c.l.s4 1966171168
    %v716 = vunpack.c.0.s8 %v715
    %v717 = vlaneseq
    %v718 = vshrl.u32 %v717, 7
    %v719 = vsub.s32 %v716, %v718
    %v720 = vrot.slane %v706, %v719
    %v721 = vcombine.high %v713, %v713
    %v722 = vcombine.high %v720, %v720
    %v724 = vunpack.c.l.s4 1966171168
    %v725 = vunpack.c.0.s8 %v724
    %v726 = vlaneseq
    %v727 = vshrl.u32 %v726, 7
    %v728 = vsub.s32 %v725, %v727
    %v729 = vrot.slane %v713, %v728
    %v731 = vunpack.c.l.s4 1966171168
    %v732 = vunpack.c.0.s8 %v731
    %v733 = vlaneseq
    %v734 = vshrl.u32 %v733, 7
    %v735 = vsub.s32 %v732, %v734
    %v736 = vrot.slane %v720, %v735
    %v738 = vunpack.c.l.s4 1966171168
    %v739 = vunpack.c.0.s8 %v738
    %v740 = vlaneseq
    %v741 = vshrl.u32 %v740, 7
    %v742 = vsub.s32 %v739, %v741
    %v743 = vrot.slane %v721, %v742
    %v745 = vunpack.c.l.s4 1966171168
    %v746 = vunpack.c.0.s8 %v745
    %v747 = vlaneseq
    %v748 = vshrl.u32 %v747, 7
    %v749 = vsub.s32 %v746, %v748
    %v750 = vrot.slane %v722, %v749
    %v751 = vcombine.high %v729, %v729
    %v752 = vcombine.high %v736, %v736
    %v753 = vcombine.high %v743, %v743
    %v754 = vcombine.high %v750, %v750
    %v755 = vcombine.high %v412, %v412
    %v757 = vunpack.c.l.s4 1966171168
    %v758 = vunpack.c.0.s8 %v757
    %v759 = vlaneseq
    %v760 = vshrl.u32 %v759, 7
    %v761 = vsub.s32 %v758, %v760
    %v762 = vrot.slane %v412, %v761
    %v764 = vunpack.c.l.s4 1966171168
    %v765 = vunpack.c.0.s8 %v764
    %v766 = vlaneseq
    %v767 = vshrl.u32 %v766, 7
    %v768 = vsub.s32 %v765, %v767
    %v769 = vrot.slane %v755, %v768
    %v770 = vcombine.high %v762, %v762
    %v771 = vcombine.high %v769, %v769
    %v773 = vunpack.c.l.s4 1966171168
    %v774 = vunpack.c.0.s8 %v773
    %v775 = vlaneseq
    %v776 = vshrl.u32 %v775, 7
    %v777 = vsub.s32 %v774, %v776
    %v778 = vrot.slane %v762, %v777
    %v780 = vunpack.c.l.s4 1966171168
    %v781 = vunpack.c.0.s8 %v780
    %v782 = vlaneseq
    %v783 = vshrl.u32 %v782, 7
    %v784 = vsub.s32 %v781, %v783
    %v785 = vrot.slane %v769, %v784
    %v787 = vunpack.c.l.s4 1966171168
    %v788 = vunpack.c.0.s8 %v787
    %v789 = vlaneseq
    %v790 = vshrl.u32 %v789, 7
    %v791 = vsub.s32 %v788, %v790
    %v792 = vrot.slane %v770, %v791
    %v794 = vunpack.c.l.s4 1966171168
    %v795 = vunpack.c.0.s8 %v794
    %v796 = vlaneseq
    %v797 = vshrl.u32 %v796, 7
    %v798 = vsub.s32 %v795, %v797
    %v799 = vrot.slane %v771, %v798
    %v800 = vcombine.high %v778, %v778
    %v801 = vcombine.high %v785, %v785
    %v802 = vcombine.high %v792, %v792
    %v803 = vcombine.high %v799, %v799
    %v804 = vcombine.high %v413, %v413
    %v806 = vunpack.c.l.s4 1966171168
    %v807 = vunpack.c.0.s8 %v806
    %v808 = vlaneseq
    %v809 = vshrl.u32 %v808, 7
    %v810 = vsub.s32 %v807, %v809
    %v811 = vrot.slane %v413, %v810
    %v813 = vunpack.c.l.s4 1966171168
    %v814 = vunpack.c.0.s8 %v813
    %v815 = vlaneseq
    %v816 = vshrl.u32 %v815, 7
    %v817 = vsub.s32 %v814, %v816
    %v818 = vrot.slane %v804, %v817
    %v819 = vcombine.high %v811, %v811
    %v820 = vcombine.high %v818, %v818
    %v822 = vunpack.c.l.s4 1966171168
    %v823 = vunpack.c.0.s8 %v822
    %v824 = vlaneseq
    %v825 = vshrl.u32 %v824, 7
    %v826 = vsub.s32 %v823, %v825
    %v827 = vrot.slane %v811, %v826
    %v829 = vunpack.c.l.s4 1966171168
    %v830 = vunpack.c.0.s8 %v829
    %v831 = vlaneseq
    %v832 = vshrl.u32 %v831, 7
    %v833 = vsub.s32 %v830, %v832
    %v834 = vrot.slane %v818, %v833
    %v836 = vunpack.c.l.s4 1966171168
    %v837 = vunpack.c.0.s8 %v836
    %v838 = vlaneseq
    %v839 = vshrl.u32 %v838, 7
    %v840 = vsub.s32 %v837, %v839
    %v841 = vrot.slane %v819, %v840
    %v843 = vunpack.c.l.s4 1966171168
    %v844 = vunpack.c.0.s8 %v843
    %v845 = vlaneseq
    %v846 = vshrl.u32 %v845, 7
    %v847 = vsub.s32 %v844, %v846
    %v848 = vrot.slane %v820, %v847
    %v849 = vcombine.high %v827, %v827
    %v850 = vcombine.high %v834, %v834
    %v851 = vcombine.high %v841, %v841
    %v852 = vcombine.high %v848, %v848
    %s917 = scalar_lea.vmem [#allocation2], 11
    %918 = vst [vmem:[%s917] sm:$0x1] %v484
    %919 = vst [vmem:[%s917 + $0x1] sm:$0x1] %v498
    %920 = vst [vmem:[%s917 + $0x2] sm:$0x1] %v506
    %921 = vst [vmem:[%s917 + $0x3] sm:$0x1] %v508
    %922 = vst [vmem:[%s917 + $0x4] sm:$0x1] %v491
    %923 = vst [vmem:[%s917 + $0x5] sm:$0x1] %v505
    %924 = vst [vmem:[%s917 + $0x6] sm:$0x1] %v507
    %925 = vst [vmem:[%s917 + $0x7] sm:$0x1] %v509
    %926 = vst [vmem:[%s917 + $0xa] sm:$0x1] %v533
    %927 = vst [vmem:[%s917 + $0xb] sm:$0x1] %v547
    %928 = vst [vmem:[%s917 + $0xc] sm:$0x1] %v555
    %929 = vst [vmem:[%s917 + $0xd] sm:$0x1] %v557
    %930 = vst [vmem:[%s917 + $0xe] sm:$0x1] %v540
    %931 = vst [vmem:[%s917 + $0xf] sm:$0x1] %v554
    %932 = vst [vmem:[%s917 + $0x10] sm:$0x1] %v556
    %933 = vst [vmem:[%s917 + $0x11] sm:$0x1] %v558
    %934 = vst [vmem:[%s917 + $0x14] sm:$0x1] %v582
    %935 = vst [vmem:[%s917 + $0x15] sm:$0x1] %v596
    %936 = vst [vmem:[%s917 + $0x16] sm:$0x1] %v604
    %937 = vst [vmem:[%s917 + $0x17] sm:$0x1] %v606
    %938 = vst [vmem:[%s917 + $0x18] sm:$0x1] %v589
    %939 = vst [vmem:[%s917 + $0x19] sm:$0x1] %v603
    %940 = vst [vmem:[%s917 + $0x1a] sm:$0x1] %v605
    %941 = vst [vmem:[%s917 + $0x1b] sm:$0x1] %v607
    %942 = vst [vmem:[%s917 + $0x1e] sm:$0x1] %v631
    %943 = vst [vmem:[%s917 + $0x1f] sm:$0x1] %v645
    %944 = vst [vmem:[%s917 + $0x20] sm:$0x1] %v653
    %945 = vst [vmem:[%s917 + $0x21] sm:$0x1] %v655
    %946 = vst [vmem:[%s917 + $0x22] sm:$0x1] %v638
    %947 = vst [vmem:[%s917 + $0x23] sm:$0x1] %v652
    %948 = vst [vmem:[%s917 + $0x24] sm:$0x1] %v654
    %949 = vst [vmem:[%s917 + $0x25] sm:$0x1] %v656
    %950 = vst [vmem:[%s917 + $0x28] sm:$0x1] %v680
    %951 = vst [vmem:[%s917 + $0x29] sm:$0x1] %v694
    %952 = vst [vmem:[%s917 + $0x2a] sm:$0x1] %v702
    %953 = vst [vmem:[%s917 + $0x2b] sm:$0x1] %v704
    %954 = vst [vmem:[%s917 + $0x2c] sm:$0x1] %v687
    %955 = vst [vmem:[%s917 + $0x2d] sm:$0x1] %v701
    %956 = vst [vmem:[%s917 + $0x2e] sm:$0x1] %v703
    %957 = vst [vmem:[%s917 + $0x2f] sm:$0x1] %v705
    %958 = vst [vmem:[%s917 + $0x32] sm:$0x1] %v729
    %959 = vst [vmem:[%s917 + $0x33] sm:$0x1] %v743
    %960 = vst [vmem:[%s917 + $0x34] sm:$0x1] %v751
    %961 = vst [vmem:[%s917 + $0x35] sm:$0x1] %v753
    %962 = vst [vmem:[%s917 + $0x36] sm:$0x1] %v736
    %963 = vst [vmem:[%s917 + $0x37] sm:$0x1] %v750
    %964 = vst [vmem:[%s917 + $0x38] sm:$0x1] %v752
    %965 = vst [vmem:[%s917 + $0x39] sm:$0x1] %v754
    %966 = vst [vmem:[%s917 + $0x3c] sm:$0x1] %v778
    %967 = vst [vmem:[%s917 + $0x3d] sm:$0x1] %v792
    %968 = vst [vmem:[%s917 + $0x3e] sm:$0x1] %v800
    %969 = vst [vmem:[%s917 + $0x3f] sm:$0x1] %v802
    %970 = vst [vmem:[%s917 + $0x40] sm:$0x1] %v785
    %971 = vst [vmem:[%s917 + $0x41] sm:$0x1] %v799
    %972 = vst [vmem:[%s917 + $0x42] sm:$0x1] %v801
    %973 = vst [vmem:[%s917 + $0x43] sm:$0x1] %v803
    %974 = vst [vmem:[%s917 + $0x46] sm:$0x1] %v827
    %975 = vst [vmem:[%s917 + $0x47] sm:$0x1] %v841
    %976 = vst [vmem:[%s917 + $0x48] sm:$0x1] %v849
    %977 = vst [vmem:[%s917 + $0x49] sm:$0x1] %v851
    %978 = vst [vmem:[%s917 + $0x4a] sm:$0x1] %v834
    %979 = vst [vmem:[%s917 + $0x4b] sm:$0x1] %v848
    %980 = vst [vmem:[%s917 + $0x4c] sm:$0x1] %v850
    %981 = vst [vmem:[%s917 + $0x4d] sm:$0x1] %v852
    %v982 = vld [vmem:[#allocation2] sm:$0x1]
    %v983 = vld [vmem:[#allocation2 + $0x1] sm:$0x1]
    %v984 = vld [vmem:[#allocation2 + $0x2] sm:$0x1]
    %v985 = vld [vmem:[#allocation2 + $0x3] sm:$0x1]
    %v986 = vld [vmem:[#allocation2 + $0x4] sm:$0x1]
    %v987 = vld [vmem:[#allocation2 + $0x5] sm:$0x1]
    %v988 = vld [vmem:[#allocation2 + $0x6] sm:$0x1]
    %v989 = vld [vmem:[#allocation2 + $0x7] sm:$0x1]
    %v990 = vld [vmem:[#allocation2 + $0xa] sm:$0x1]
    %v991 = vld [vmem:[#allocation2 + $0xb] sm:$0x1]
    %v992 = vld [vmem:[#allocation2 + $0xc] sm:$0x1]
    %v993 = vld [vmem:[#allocation2 + $0xd] sm:$0x1]
    %v994 = vld [vmem:[#allocation2 + $0xe] sm:$0x1]
    %v995 = vld [vmem:[#allocation2 + $0xf] sm:$0x1]
    %v996 = vld [vmem:[#allocation2 + $0x10] sm:$0x1]
    %v997 = vld [vmem:[#allocation2 + $0x11] sm:$0x1]
    %v998 = vld [vmem:[#allocation2 + $0x14] sm:$0x1]
    %v999 = vld [vmem:[#allocation2 + $0x15] sm:$0x1]
    %v1000 = vld [vmem:[#allocation2 + $0x16] sm:$0x1]
    %v1001 = vld [vmem:[#allocation2 + $0x17] sm:$0x1]
    %v1002 = vld [vmem:[#allocation2 + $0x18] sm:$0x1]
    %v1003 = vld [vmem:[#allocation2 + $0x19] sm:$0x1]
    %v1004 = vld [vmem:[#allocation2 + $0x1a] sm:$0x1]
    %v1005 = vld [vmem:[#allocation2 + $0x1b] sm:$0x1]
    %v1006 = vld [vmem:[#allocation2 + $0x1e] sm:$0x1]
    %v1007 = vld [vmem:[#allocation2 + $0x1f] sm:$0x1]
    %v1008 = vld [vmem:[#allocation2 + $0x20] sm:$0x1]
    %v1009 = vld [vmem:[#allocation2 + $0x21] sm:$0x1]
    %v1010 = vld [vmem:[#allocation2 + $0x22] sm:$0x1]
    %v1011 = vld [vmem:[#allocation2 + $0x23] sm:$0x1]
    %v1012 = vld [vmem:[#allocation2 + $0x24] sm:$0x1]
    %v1013 = vld [vmem:[#allocation2 + $0x25] sm:$0x1]
    %v1014 = vld [vmem:[#allocation2 + $0x28] sm:$0x1]
    %v1015 = vld [vmem:[#allocation2 + $0x29] sm:$0x1]
    %v1016 = vld [vmem:[#allocation2 + $0x2a] sm:$0x1]
    %v1017 = vld [vmem:[#allocation2 + $0x2b] sm:$0x1]
    %v1018 = vld [vmem:[#allocation2 + $0x2c] sm:$0x1]
    %v1019 = vld [vmem:[#allocation2 + $0x2d] sm:$0x1]
    %v1020 = vld [vmem:[#allocation2 + $0x2e] sm:$0x1]
    %v1021 = vld [vmem:[#allocation2 + $0x2f] sm:$0x1]
    %v1022 = vld [vmem:[#allocation2 + $0x32] sm:$0x1]
    %v1023 = vld [vmem:[#allocation2 + $0x33] sm:$0x1]
    %v1024 = vld [vmem:[#allocation2 + $0x34] sm:$0x1]
    %v1025 = vld [vmem:[#allocation2 + $0x35] sm:$0x1]
    %v1026 = vld [vmem:[#allocation2 + $0x36] sm:$0x1]
    %v1027 = vld [vmem:[#allocation2 + $0x37] sm:$0x1]
    %v1028 = vld [vmem:[#allocation2 + $0x38] sm:$0x1]
    %v1029 = vld [vmem:[#allocation2 + $0x39] sm:$0x1]
    %v1030 = vld [vmem:[#allocation2 + $0x3c] sm:$0x1]
    %v1031 = vld [vmem:[#allocation2 + $0x3d] sm:$0x1]
    %v1032 = vld [vmem:[#allocation2 + $0x3e] sm:$0x1]
    %v1033 = vld [vmem:[#allocation2 + $0x3f] sm:$0x1]
    %v1034 = vld [vmem:[#allocation2 + $0x40] sm:$0x1]
    %v1035 = vld [vmem:[#allocation2 + $0x41] sm:$0x1]
    %v1036 = vld [vmem:[#allocation2 + $0x42] sm:$0x1]
    %v1037 = vld [vmem:[#allocation2 + $0x43] sm:$0x1]
    %v1038 = vld [vmem:[#allocation2 + $0x46] sm:$0x1]
    %v1039 = vld [vmem:[#allocation2 + $0x47] sm:$0x1]
    %v1040 = vld [vmem:[#allocation2 + $0x48] sm:$0x1]
    %v1041 = vld [vmem:[#allocation2 + $0x49] sm:$0x1]
    %v1042 = vld [vmem:[#allocation2 + $0x4a] sm:$0x1]
    %v1043 = vld [vmem:[#allocation2 + $0x4b] sm:$0x1]
    %v1044 = vld [vmem:[#allocation2 + $0x4c] sm:$0x1]
    %v1045 = vld [vmem:[#allocation2 + $0x4d] sm:$0x1]
    %v1110 = vcombine.low %v982, %v984
    %v1111 = vcombine.low %v983, %v985
    %v1113 = vunpack.c.l.s4 1935823168
    %v1114 = vunpack.c.0.s8 %v1113
    %v1115 = vlaneseq
    %v1116 = vshrl.u32 %v1115, 7
    %v1117 = vsub.s32 %v1114, %v1116
    %v1118 = vrot.slane %v1110, %v1117
    %v1120 = vunpack.c.l.s4 1935823168
    %v1121 = vunpack.c.0.s8 %v1120
    %v1122 = vlaneseq
    %v1123 = vshrl.u32 %v1122, 7
    %v1124 = vsub.s32 %v1121, %v1123
    %v1125 = vrot.slane %v1111, %v1124
    %v1126 = vcombine.low %v1118, %v1125
    %v1128 = vunpack.c.l.s4 1935823168
    %v1129 = vunpack.c.0.s8 %v1128
    %v1130 = vlaneseq
    %v1131 = vshrl.u32 %v1130, 7
    %v1132 = vsub.s32 %v1129, %v1131
    %v1133 = vrot.slane %v1126, %v1132
    %v1134 = vcombine.low %v986, %v988
    %v1135 = vcombine.low %v987, %v989
    %v1137 = vunpack.c.l.s4 1935823168
    %v1138 = vunpack.c.0.s8 %v1137
    %v1139 = vlaneseq
    %v1140 = vshrl.u32 %v1139, 7
    %v1141 = vsub.s32 %v1138, %v1140
    %v1142 = vrot.slane %v1134, %v1141
    %v1144 = vunpack.c.l.s4 1935823168
    %v1145 = vunpack.c.0.s8 %v1144
    %v1146 = vlaneseq
    %v1147 = vshrl.u32 %v1146, 7
    %v1148 = vsub.s32 %v1145, %v1147
    %v1149 = vrot.slane %v1135, %v1148
    %v1150 = vcombine.low %v1142, %v1149
    %v1152 = vunpack.c.l.s4 1935823168
    %v1153 = vunpack.c.0.s8 %v1152
    %v1154 = vlaneseq
    %v1155 = vshrl.u32 %v1154, 7
    %v1156 = vsub.s32 %v1153, %v1155
    %v1157 = vrot.slane %v1150, %v1156
    %v1158 = vcombine.low %v990, %v992
    %v1159 = vcombine.low %v991, %v993
    %v1161 = vunpack.c.l.s4 1935823168
    %v1162 = vunpack.c.0.s8 %v1161
    %v1163 = vlaneseq
    %v1164 = vshrl.u32 %v1163, 7
    %v1165 = vsub.s32 %v1162, %v1164
    %v1166 = vrot.slane %v1158, %v1165
    %v1168 = vunpack.c.l.s4 1935823168
    %v1169 = vunpack.c.0.s8 %v1168
    %v1170 = vlaneseq
    %v1171 = vshrl.u32 %v1170, 7
    %v1172 = vsub.s32 %v1169, %v1171
    %v1173 = vrot.slane %v1159, %v1172
    %v1174 = vcombine.low %v1166, %v1173
    %v1176 = vunpack.c.l.s4 1935823168
    %v1177 = vunpack.c.0.s8 %v1176
    %v1178 = vlaneseq
    %v1179 = vshrl.u32 %v1178, 7
    %v1180 = vsub.s32 %v1177, %v1179
    %v1181 = vrot.slane %v1174, %v1180
    %v1182 = vcombine.low %v994, %v996
    %v1183 = vcombine.low %v995, %v997
    %v1185 = vunpack.c.l.s4 1935823168
    %v1186 = vunpack.c.0.s8 %v1185
    %v1187 = vlaneseq
    %v1188 = vshrl.u32 %v1187, 7
    %v1189 = vsub.s32 %v1186, %v1188
    %v1190 = vrot.slane %v1182, %v1189
    %v1192 = vunpack.c.l.s4 1935823168
    %v1193 = vunpack.c.0.s8 %v1192
    %v1194 = vlaneseq
    %v1195 = vshrl.u32 %v1194, 7
    %v1196 = vsub.s32 %v1193, %v1195
    %v1197 = vrot.slane %v1183, %v1196
    %v1198 = vcombine.low %v1190, %v1197
    %v1200 = vunpack.c.l.s4 1935823168
    %v1201 = vunpack.c.0.s8 %v1200
    %v1202 = vlaneseq
    %v1203 = vshrl.u32 %v1202, 7
    %v1204 = vsub.s32 %v1201, %v1203
    %v1205 = vrot.slane %v1198, %v1204
    %v1206 = vcombine.low %v998, %v1000
    %v1207 = vcombine.low %v999, %v1001
    %v1209 = vunpack.c.l.s4 1935823168
    %v1210 = vunpack.c.0.s8 %v1209
    %v1211 = vlaneseq
    %v1212 = vshrl.u32 %v1211, 7
    %v1213 = vsub.s32 %v1210, %v1212
    %v1214 = vrot.slane %v1206, %v1213
    %v1216 = vunpack.c.l.s4 1935823168
    %v1217 = vunpack.c.0.s8 %v1216
    %v1218 = vlaneseq
    %v1219 = vshrl.u32 %v1218, 7
    %v1220 = vsub.s32 %v1217, %v1219
    %v1221 = vrot.slane %v1207, %v1220
    %v1222 = vcombine.low %v1214, %v1221
    %v1224 = vunpack.c.l.s4 1935823168
    %v1225 = vunpack.c.0.s8 %v1224
    %v1226 = vlaneseq
    %v1227 = vshrl.u32 %v1226, 7
    %v1228 = vsub.s32 %v1225, %v1227
    %v1229 = vrot.slane %v1222, %v1228
    %v1230 = vcombine.low %v1002, %v1004
    %v1231 = vcombine.low %v1003, %v1005
    %v1233 = vunpack.c.l.s4 1935823168
    %v1234 = vunpack.c.0.s8 %v1233
    %v1235 = vlaneseq
    %v1236 = vshrl.u32 %v1235, 7
    %v1237 = vsub.s32 %v1234, %v1236
    %v1238 = vrot.slane %v1230, %v1237
    %v1240 = vunpack.c.l.s4 1935823168
    %v1241 = vunpack.c.0.s8 %v1240
    %v1242 = vlaneseq
    %v1243 = vshrl.u32 %v1242, 7
    %v1244 = vsub.s32 %v1241, %v1243
    %v1245 = vrot.slane %v1231, %v1244
    %v1246 = vcombine.low %v1238, %v1245
    %v1248 = vunpack.c.l.s4 1935823168
    %v1249 = vunpack.c.0.s8 %v1248
    %v1250 = vlaneseq
    %v1251 = vshrl.u32 %v1250, 7
    %v1252 = vsub.s32 %v1249, %v1251
    %v1253 = vrot.slane %v1246, %v1252
    %v1254 = vcombine.low %v1006, %v1008
    %v1255 = vcombine.low %v1007, %v1009
    %v1257 = vunpack.c.l.s4 1935823168
    %v1258 = vunpack.c.0.s8 %v1257
    %v1259 = vlaneseq
    %v1260 = vshrl.u32 %v1259, 7
    %v1261 = vsub.s32 %v1258, %v1260
    %v1262 = vrot.slane %v1254, %v1261
    %v1264 = vunpack.c.l.s4 1935823168
    %v1265 = vunpack.c.0.s8 %v1264
    %v1266 = vlaneseq
    %v1267 = vshrl.u32 %v1266, 7
    %v1268 = vsub.s32 %v1265, %v1267
    %v1269 = vrot.slane %v1255, %v1268
    %v1270 = vcombine.low %v1262, %v1269
    %v1272 = vunpack.c.l.s4 1935823168
    %v1273 = vunpack.c.0.s8 %v1272
    %v1274 = vlaneseq
    %v1275 = vshrl.u32 %v1274, 7
    %v1276 = vsub.s32 %v1273, %v1275
    %v1277 = vrot.slane %v1270, %v1276
    %v1278 = vcombine.low %v1010, %v1012
    %v1279 = vcombine.low %v1011, %v1013
    %v1281 = vunpack.c.l.s4 1935823168
    %v1282 = vunpack.c.0.s8 %v1281
    %v1283 = vlaneseq
    %v1284 = vshrl.u32 %v1283, 7
    %v1285 = vsub.s32 %v1282, %v1284
    %v1286 = vrot.slane %v1278, %v1285
    %v1288 = vunpack.c.l.s4 1935823168
    %v1289 = vunpack.c.0.s8 %v1288
    %v1290 = vlaneseq
    %v1291 = vshrl.u32 %v1290, 7
    %v1292 = vsub.s32 %v1289, %v1291
    %v1293 = vrot.slane %v1279, %v1292
    %v1294 = vcombine.low %v1286, %v1293
    %v1296 = vunpack.c.l.s4 1935823168
    %v1297 = vunpack.c.0.s8 %v1296
    %v1298 = vlaneseq
    %v1299 = vshrl.u32 %v1298, 7
    %v1300 = vsub.s32 %v1297, %v1299
    %v1301 = vrot.slane %v1294, %v1300
    %v1302 = vcombine.low %v1014, %v1016
    %v1303 = vcombine.low %v1015, %v1017
    %v1305 = vunpack.c.l.s4 1935823168
    %v1306 = vunpack.c.0.s8 %v1305
    %v1307 = vlaneseq
    %v1308 = vshrl.u32 %v1307, 7
    %v1309 = vsub.s32 %v1306, %v1308
    %v1310 = vrot.slane %v1302, %v1309
    %v1312 = vunpack.c.l.s4 1935823168
    %v1313 = vunpack.c.0.s8 %v1312
    %v1314 = vlaneseq
    %v1315 = vshrl.u32 %v1314, 7
    %v1316 = vsub.s32 %v1313, %v1315
    %v1317 = vrot.slane %v1303, %v1316
    %v1318 = vcombine.low %v1310, %v1317
    %v1320 = vunpack.c.l.s4 1935823168
    %v1321 = vunpack.c.0.s8 %v1320
    %v1322 = vlaneseq
    %v1323 = vshrl.u32 %v1322, 7
    %v1324 = vsub.s32 %v1321, %v1323
    %v1325 = vrot.slane %v1318, %v1324
    %v1326 = vcombine.low %v1018, %v1020
    %v1327 = vcombine.low %v1019, %v1021
    %v1329 = vunpack.c.l.s4 1935823168
    %v1330 = vunpack.c.0.s8 %v1329
    %v1331 = vlaneseq
    %v1332 = vshrl.u32 %v1331, 7
    %v1333 = vsub.s32 %v1330, %v1332
    %v1334 = vrot.slane %v1326, %v1333
    %v1336 = vunpack.c.l.s4 1935823168
    %v1337 = vunpack.c.0.s8 %v1336
    %v1338 = vlaneseq
    %v1339 = vshrl.u32 %v1338, 7
    %v1340 = vsub.s32 %v1337, %v1339
    %v1341 = vrot.slane %v1327, %v1340
    %v1342 = vcombine.low %v1334, %v1341
    %v1344 = vunpack.c.l.s4 1935823168
    %v1345 = vunpack.c.0.s8 %v1344
    %v1346 = vlaneseq
    %v1347 = vshrl.u32 %v1346, 7
    %v1348 = vsub.s32 %v1345, %v1347
    %v1349 = vrot.slane %v1342, %v1348
    %v1350 = vcombine.low %v1022, %v1024
    %v1351 = vcombine.low %v1023, %v1025
    %v1353 = vunpack.c.l.s4 1935823168
    %v1354 = vunpack.c.0.s8 %v1353
    %v1355 = vlaneseq
    %v1356 = vshrl.u32 %v1355, 7
    %v1357 = vsub.s32 %v1354, %v1356
    %v1358 = vrot.slane %v1350, %v1357
    %v1360 = vunpack.c.l.s4 1935823168
    %v1361 = vunpack.c.0.s8 %v1360
    %v1362 = vlaneseq
    %v1363 = vshrl.u32 %v1362, 7
    %v1364 = vsub.s32 %v1361, %v1363
    %v1365 = vrot.slane %v1351, %v1364
    %v1366 = vcombine.low %v1358, %v1365
    %v1368 = vunpack.c.l.s4 1935823168
    %v1369 = vunpack.c.0.s8 %v1368
    %v1370 = vlaneseq
    %v1371 = vshrl.u32 %v1370, 7
    %v1372 = vsub.s32 %v1369, %v1371
    %v1373 = vrot.slane %v1366, %v1372
    %v1374 = vcombine.low %v1026, %v1028
    %v1375 = vcombine.low %v1027, %v1029
    %v1377 = vunpack.c.l.s4 1935823168
    %v1378 = vunpack.c.0.s8 %v1377
    %v1379 = vlaneseq
    %v1380 = vshrl.u32 %v1379, 7
    %v1381 = vsub.s32 %v1378, %v1380
    %v1382 = vrot.slane %v1374, %v1381
    %v1384 = vunpack.c.l.s4 1935823168
    %v1385 = vunpack.c.0.s8 %v1384
    %v1386 = vlaneseq
    %v1387 = vshrl.u32 %v1386, 7
    %v1388 = vsub.s32 %v1385, %v1387
    %v1389 = vrot.slane %v1375, %v1388
    %v1390 = vcombine.low %v1382, %v1389
    %v1392 = vunpack.c.l.s4 1935823168
    %v1393 = vunpack.c.0.s8 %v1392
    %v1394 = vlaneseq
    %v1395 = vshrl.u32 %v1394, 7
    %v1396 = vsub.s32 %v1393, %v1395
    %v1397 = vrot.slane %v1390, %v1396
    %v1398 = vcombine.low %v1030, %v1032
    %v1399 = vcombine.low %v1031, %v1033
    %v1401 = vunpack.c.l.s4 1935823168
    %v1402 = vunpack.c.0.s8 %v1401
    %v1403 = vlaneseq
    %v1404 = vshrl.u32 %v1403, 7
    %v1405 = vsub.s32 %v1402, %v1404
    %v1406 = vrot.slane %v1398, %v1405
    %v1408 = vunpack.c.l.s4 1935823168
    %v1409 = vunpack.c.0.s8 %v1408
    %v1410 = vlaneseq
    %v1411 = vshrl.u32 %v1410, 7
    %v1412 = vsub.s32 %v1409, %v1411
    %v1413 = vrot.slane %v1399, %v1412
    %v1414 = vcombine.low %v1406, %v1413
    %v1416 = vunpack.c.l.s4 1935823168
    %v1417 = vunpack.c.0.s8 %v1416
    %v1418 = vlaneseq
    %v1419 = vshrl.u32 %v1418, 7
    %v1420 = vsub.s32 %v1417, %v1419
    %v1421 = vrot.slane %v1414, %v1420
    %v1422 = vcombine.low %v1034, %v1036
    %v1423 = vcombine.low %v1035, %v1037
    %v1425 = vunpack.c.l.s4 1935823168
    %v1426 = vunpack.c.0.s8 %v1425
    %v1427 = vlaneseq
    %v1428 = vshrl.u32 %v1427, 7
    %v1429 = vsub.s32 %v1426, %v1428
    %v1430 = vrot.slane %v1422, %v1429
    %v1432 = vunpack.c.l.s4 1935823168
    %v1433 = vunpack.c.0.s8 %v1432
    %v1434 = vlaneseq
    %v1435 = vshrl.u32 %v1434, 7
    %v1436 = vsub.s32 %v1433, %v1435
    %v1437 = vrot.slane %v1423, %v1436
    %v1438 = vcombine.low %v1430, %v1437
    %v1440 = vunpack.c.l.s4 1935823168
    %v1441 = vunpack.c.0.s8 %v1440
    %v1442 = vlaneseq
    %v1443 = vshrl.u32 %v1442, 7
    %v1444 = vsub.s32 %v1441, %v1443
    %v1445 = vrot.slane %v1438, %v1444
    %v1446 = vcombine.low %v1038, %v1040
    %v1447 = vcombine.low %v1039, %v1041
    %v1449 = vunpack.c.l.s4 1935823168
    %v1450 = vunpack.c.0.s8 %v1449
    %v1451 = vlaneseq
    %v1452 = vshrl.u32 %v1451, 7
    %v1453 = vsub.s32 %v1450, %v1452
    %v1454 = vrot.slane %v1446, %v1453
    %v1456 = vunpack.c.l.s4 1935823168
    %v1457 = vunpack.c.0.s8 %v1456
    %v1458 = vlaneseq
    %v1459 = vshrl.u32 %v1458, 7
    %v1460 = vsub.s32 %v1457, %v1459
    %v1461 = vrot.slane %v1447, %v1460
    %v1462 = vcombine.low %v1454, %v1461
    %v1464 = vunpack.c.l.s4 1935823168
    %v1465 = vunpack.c.0.s8 %v1464
    %v1466 = vlaneseq
    %v1467 = vshrl.u32 %v1466, 7
    %v1468 = vsub.s32 %v1465, %v1467
    %v1469 = vrot.slane %v1462, %v1468
    %v1470 = vcombine.low %v1042, %v1044
    %v1471 = vcombine.low %v1043, %v1045
    %v1473 = vunpack.c.l.s4 1935823168
    %v1474 = vunpack.c.0.s8 %v1473
    %v1475 = vlaneseq
    %v1476 = vshrl.u32 %v1475, 7
    %v1477 = vsub.s32 %v1474, %v1476
    %v1478 = vrot.slane %v1470, %v1477
    %v1480 = vunpack.c.l.s4 1935823168
    %v1481 = vunpack.c.0.s8 %v1480
    %v1482 = vlaneseq
    %v1483 = vshrl.u32 %v1482, 7
    %v1484 = vsub.s32 %v1481, %v1483
    %v1485 = vrot.slane %v1471, %v1484
    %v1486 = vcombine.low %v1478, %v1485
    %v1488 = vunpack.c.l.s4 1935823168
    %v1489 = vunpack.c.0.s8 %v1488
    %v1490 = vlaneseq
    %v1491 = vshrl.u32 %v1490, 7
    %v1492 = vsub.s32 %v1489, %v1491
    %v1493 = vrot.slane %v1486, %v1492
    %1510 = vst [vmem:[#allocation3] sm:$0xf] %v1133
    %1511 = vst [vmem:[#allocation3 + $0x24] sm:$0xf] %v1157
    %1512 = vst [vmem:[#allocation3 + $0x48] sm:$0xf] %v1181
    %1513 = vst [vmem:[#allocation3 + $0x6c] sm:$0xf] %v1205
    %1514 = vst [vmem:[#allocation3 + $0x90] sm:$0xf] %v1229
    %1515 = vst [vmem:[#allocation3 + $0xb4] sm:$0xf] %v1253
    %1516 = vst [vmem:[#allocation3 + $0xd8] sm:$0xf] %v1277
    %1517 = vst [vmem:[#allocation3 + $0xfc] sm:$0xf] %v1301
    %1518 = vst [vmem:[#allocation3 + $0x120] sm:$0xf] %v1325
    %1519 = vst [vmem:[#allocation3 + $0x144] sm:$0xf] %v1349
    %1520 = vst [vmem:[#allocation3 + $0x168] sm:$0xf] %v1373
    %1521 = vst [vmem:[#allocation3 + $0x18c] sm:$0xf] %v1397
    %1522 = vst [vmem:[#allocation3 + $0x1b0] sm:$0xf] %v1421
    %1523 = vst [vmem:[#allocation3 + $0x1d4] sm:$0xf] %v1445
    %1524 = vst [vmem:[#allocation3 + $0x1f8] sm:$0xf] %v1469
    %1525 = vst [vmem:[#allocation3 + $0x21c] sm:$0xf] %v1493
    %s1526 = scalar_lea.vmem [#allocation2], 1
    %v1527 = vld [vmem:[%s1526] sm:$0x1]
    %v1528 = vld [vmem:[%s1526 + $0x1] sm:$0x1]
    %v1529 = vld [vmem:[%s1526 + $0x2] sm:$0x1]
    %v1530 = vld [vmem:[%s1526 + $0x3] sm:$0x1]
    %v1531 = vld [vmem:[%s1526 + $0x4] sm:$0x1]
    %v1532 = vld [vmem:[%s1526 + $0x5] sm:$0x1]
    %v1533 = vld [vmem:[%s1526 + $0x6] sm:$0x1]
    %v1534 = vld [vmem:[%s1526 + $0x7] sm:$0x1]
    %v1535 = vld [vmem:[%s1526 + $0xa] sm:$0x1]
    %v1536 = vld [vmem:[%s1526 + $0xb] sm:$0x1]
    %v1537 = vld [vmem:[%s1526 + $0xc] sm:$0x1]
    %v1538 = vld [vmem:[%s1526 + $0xd] sm:$0x1]
    %v1539 = vld [vmem:[%s1526 + $0xe] sm:$0x1]
    %v1540 = vld [vmem:[%s1526 + $0xf] sm:$0x1]
    %v1541 = vld [vmem:[%s1526 + $0x10] sm:$0x1]
    %v1542 = vld [vmem:[%s1526 + $0x11] sm:$0x1]
    %v1543 = vld [vmem:[%s1526 + $0x14] sm:$0x1]
    %v1544 = vld [vmem:[%s1526 + $0x15] sm:$0x1]
    %v1545 = vld [vmem:[%s1526 + $0x16] sm:$0x1]
    %v1546 = vld [vmem:[%s1526 + $0x17] sm:$0x1]
    %v1547 = vld [vmem:[%s1526 + $0x18] sm:$0x1]
    %v1548 = vld [vmem:[%s1526 + $0x19] sm:$0x1]
    %v1549 = vld [vmem:[%s1526 + $0x1a] sm:$0x1]
    %v1550 = vld [vmem:[%s1526 + $0x1b] sm:$0x1]
    %v1551 = vld [vmem:[%s1526 + $0x1e] sm:$0x1]
    %v1552 = vld [vmem:[%s1526 + $0x1f] sm:$0x1]
    %v1553 = vld [vmem:[%s1526 + $0x20] sm:$0x1]
    %v1554 = vld [vmem:[%s1526 + $0x21] sm:$0x1]
    %v1555 = vld [vmem:[%s1526 + $0x22] sm:$0x1]
    %v1556 = vld [vmem:[%s1526 + $0x23] sm:$0x1]
    %v1557 = vld [vmem:[%s1526 + $0x24] sm:$0x1]
    %v1558 = vld [vmem:[%s1526 + $0x25] sm:$0x1]
    %v1559 = vld [vmem:[%s1526 + $0x28] sm:$0x1]
    %v1560 = vld [vmem:[%s1526 + $0x29] sm:$0x1]
    %v1561 = vld [vmem:[%s1526 + $0x2a] sm:$0x1]
    %v1562 = vld [vmem:[%s1526 + $0x2b] sm:$0x1]
    %v1563 = vld [vmem:[%s1526 + $0x2c] sm:$0x1]
    %v1564 = vld [vmem:[%s1526 + $0x2d] sm:$0x1]
    %v1565 = vld [vmem:[%s1526 + $0x2e] sm:$0x1]
    %v1566 = vld [vmem:[%s1526 + $0x2f] sm:$0x1]
    %v1567 = vld [vmem:[%s1526 + $0x32] sm:$0x1]
    %v1568 = vld [vmem:[%s1526 + $0x33] sm:$0x1]
    %v1569 = vld [vmem:[%s1526 + $0x34] sm:$0x1]
    %v1570 = vld [vmem:[%s1526 + $0x35] sm:$0x1]
    %v1571 = vld [vmem:[%s1526 + $0x36] sm:$0x1]
    %v1572 = vld [vmem:[%s1526 + $0x37] sm:$0x1]
    %v1573 = vld [vmem:[%s1526 + $0x38] sm:$0x1]
    %v1574 = vld [vmem:[%s1526 + $0x39] sm:$0x1]
    %v1575 = vld [vmem:[%s1526 + $0x3c] sm:$0x1]
    %v1576 = vld [vmem:[%s1526 + $0x3d] sm:$0x1]
    %v1577 = vld [vmem:[%s1526 + $0x3e] sm:$0x1]
    %v1578 = vld [vmem:[%s1526 + $0x3f] sm:$0x1]
    %v1579 = vld [vmem:[%s1526 + $0x40] sm:$0x1]
    %v1580 = vld [vmem:[%s1526 + $0x41] sm:$0x1]
    %v1581 = vld [vmem:[%s1526 + $0x42] sm:$0x1]
    %v1582 = vld [vmem:[%s1526 + $0x43] sm:$0x1]
    %v1583 = vld [vmem:[%s1526 + $0x46] sm:$0x1]
    %v1584 = vld [vmem:[%s1526 + $0x47] sm:$0x1]
    %v1585 = vld [vmem:[%s1526 + $0x48] sm:$0x1]
    %v1586 = vld [vmem:[%s1526 + $0x49] sm:$0x1]
    %v1587 = vld [vmem:[%s1526 + $0x4a] sm:$0x1]
    %v1588 = vld [vmem:[%s1526 + $0x4b] sm:$0x1]
    %v1589 = vld [vmem:[%s1526 + $0x4c] sm:$0x1]
    %v1590 = vld [vmem:[%s1526 + $0x4d] sm:$0x1]
    %v1655 = vcombine.low %v1527, %v1529
    %v1656 = vcombine.low %v1528, %v1530
    %v1658 = vunpack.c.l.s4 1935823168
    %v1659 = vunpack.c.0.s8 %v1658
    %v1660 = vlaneseq
    %v1661 = vshrl.u32 %v1660, 7
    %v1662 = vsub.s32 %v1659, %v1661
    %v1663 = vrot.slane %v1655, %v1662
    %v1665 = vunpack.c.l.s4 1935823168
    %v1666 = vunpack.c.0.s8 %v1665
    %v1667 = vlaneseq
    %v1668 = vshrl.u32 %v1667, 7
    %v1669 = vsub.s32 %v1666, %v1668
    %v1670 = vrot.slane %v1656, %v1669
    %v1671 = vcombine.low %v1663, %v1670
    %v1673 = vunpack.c.l.s4 1935823168
    %v1674 = vunpack.c.0.s8 %v1673
    %v1675 = vlaneseq
    %v1676 = vshrl.u32 %v1675, 7
    %v1677 = vsub.s32 %v1674, %v1676
    %v1678 = vrot.slane %v1671, %v1677
    %v1679 = vcombine.low %v1531, %v1533
    %v1680 = vcombine.low %v1532, %v1534
    %v1682 = vunpack.c.l.s4 1935823168
    %v1683 = vunpack.c.0.s8 %v1682
    %v1684 = vlaneseq
    %v1685 = vshrl.u32 %v1684, 7
    %v1686 = vsub.s32 %v1683, %v1685
    %v1687 = vrot.slane %v1679, %v1686
    %v1689 = vunpack.c.l.s4 1935823168
    %v1690 = vunpack.c.0.s8 %v1689
    %v1691 = vlaneseq
    %v1692 = vshrl.u32 %v1691, 7
    %v1693 = vsub.s32 %v1690, %v1692
    %v1694 = vrot.slane %v1680, %v1693
    %v1695 = vcombine.low %v1687, %v1694
    %v1697 = vunpack.c.l.s4 1935823168
    %v1698 = vunpack.c.0.s8 %v1697
    %v1699 = vlaneseq
    %v1700 = vshrl.u32 %v1699, 7
    %v1701 = vsub.s32 %v1698, %v1700
    %v1702 = vrot.slane %v1695, %v1701
    %v1703 = vcombine.low %v1535, %v1537
    %v1704 = vcombine.low %v1536, %v1538
    %v1706 = vunpack.c.l.s4 1935823168
    %v1707 = vunpack.c.0.s8 %v1706
    %v1708 = vlaneseq
    %v1709 = vshrl.u32 %v1708, 7
    %v1710 = vsub.s32 %v1707, %v1709
    %v1711 = vrot.slane %v1703, %v1710
    %v1713 = vunpack.c.l.s4 1935823168
    %v1714 = vunpack.c.0.s8 %v1713
    %v1715 = vlaneseq
    %v1716 = vshrl.u32 %v1715, 7
    %v1717 = vsub.s32 %v1714, %v1716
    %v1718 = vrot.slane %v1704, %v1717
    %v1719 = vcombine.low %v1711, %v1718
    %v1721 = vunpack.c.l.s4 1935823168
    %v1722 = vunpack.c.0.s8 %v1721
    %v1723 = vlaneseq
    %v1724 = vshrl.u32 %v1723, 7
    %v1725 = vsub.s32 %v1722, %v1724
    %v1726 = vrot.slane %v1719, %v1725
    %v1727 = vcombine.low %v1539, %v1541
    %v1728 = vcombine.low %v1540, %v1542
    %v1730 = vunpack.c.l.s4 1935823168
    %v1731 = vunpack.c.0.s8 %v1730
    %v1732 = vlaneseq
    %v1733 = vshrl.u32 %v1732, 7
    %v1734 = vsub.s32 %v1731, %v1733
    %v1735 = vrot.slane %v1727, %v1734
    %v1737 = vunpack.c.l.s4 1935823168
    %v1738 = vunpack.c.0.s8 %v1737
    %v1739 = vlaneseq
    %v1740 = vshrl.u32 %v1739, 7
    %v1741 = vsub.s32 %v1738, %v1740
    %v1742 = vrot.slane %v1728, %v1741
    %v1743 = vcombine.low %v1735, %v1742
    %v1745 = vunpack.c.l.s4 1935823168
    %v1746 = vunpack.c.0.s8 %v1745
    %v1747 = vlaneseq
    %v1748 = vshrl.u32 %v1747, 7
    %v1749 = vsub.s32 %v1746, %v1748
    %v1750 = vrot.slane %v1743, %v1749
    %v1751 = vcombine.low %v1543, %v1545
    %v1752 = vcombine.low %v1544, %v1546
    %v1754 = vunpack.c.l.s4 1935823168
    %v1755 = vunpack.c.0.s8 %v1754
    %v1756 = vlaneseq
    %v1757 = vshrl.u32 %v1756, 7
    %v1758 = vsub.s32 %v1755, %v1757
    %v1759 = vrot.slane %v1751, %v1758
    %v1761 = vunpack.c.l.s4 1935823168
    %v1762 = vunpack.c.0.s8 %v1761
    %v1763 = vlaneseq
    %v1764 = vshrl.u32 %v1763, 7
    %v1765 = vsub.s32 %v1762, %v1764
    %v1766 = vrot.slane %v1752, %v1765
    %v1767 = vcombine.low %v1759, %v1766
    %v1769 = vunpack.c.l.s4 1935823168
    %v1770 = vunpack.c.0.s8 %v1769
    %v1771 = vlaneseq
    %v1772 = vshrl.u32 %v1771, 7
    %v1773 = vsub.s32 %v1770, %v1772
    %v1774 = vrot.slane %v1767, %v1773
    %v1775 = vcombine.low %v1547, %v1549
    %v1776 = vcombine.low %v1548, %v1550
    %v1778 = vunpack.c.l.s4 1935823168
    %v1779 = vunpack.c.0.s8 %v1778
    %v1780 = vlaneseq
    %v1781 = vshrl.u32 %v1780, 7
    %v1782 = vsub.s32 %v1779, %v1781
    %v1783 = vrot.slane %v1775, %v1782
    %v1785 = vunpack.c.l.s4 1935823168
    %v1786 = vunpack.c.0.s8 %v1785
    %v1787 = vlaneseq
    %v1788 = vshrl.u32 %v1787, 7
    %v1789 = vsub.s32 %v1786, %v1788
    %v1790 = vrot.slane %v1776, %v1789
    %v1791 = vcombine.low %v1783, %v1790
    %v1793 = vunpack.c.l.s4 1935823168
    %v1794 = vunpack.c.0.s8 %v1793
    %v1795 = vlaneseq
    %v1796 = vshrl.u32 %v1795, 7
    %v1797 = vsub.s32 %v1794, %v1796
    %v1798 = vrot.slane %v1791, %v1797
    %v1799 = vcombine.low %v1551, %v1553
    %v1800 = vcombine.low %v1552, %v1554
    %v1802 = vunpack.c.l.s4 1935823168
    %v1803 = vunpack.c.0.s8 %v1802
    %v1804 = vlaneseq
    %v1805 = vshrl.u32 %v1804, 7
    %v1806 = vsub.s32 %v1803, %v1805
    %v1807 = vrot.slane %v1799, %v1806
    %v1809 = vunpack.c.l.s4 1935823168
    %v1810 = vunpack.c.0.s8 %v1809
    %v1811 = vlaneseq
    %v1812 = vshrl.u32 %v1811, 7
    %v1813 = vsub.s32 %v1810, %v1812
    %v1814 = vrot.slane %v1800, %v1813
    %v1815 = vcombine.low %v1807, %v1814
    %v1817 = vunpack.c.l.s4 1935823168
    %v1818 = vunpack.c.0.s8 %v1817
    %v1819 = vlaneseq
    %v1820 = vshrl.u32 %v1819, 7
    %v1821 = vsub.s32 %v1818, %v1820
    %v1822 = vrot.slane %v1815, %v1821
    %v1823 = vcombine.low %v1555, %v1557
    %v1824 = vcombine.low %v1556, %v1558
    %v1826 = vunpack.c.l.s4 1935823168
    %v1827 = vunpack.c.0.s8 %v1826
    %v1828 = vlaneseq
    %v1829 = vshrl.u32 %v1828, 7
    %v1830 = vsub.s32 %v1827, %v1829
    %v1831 = vrot.slane %v1823, %v1830
    %v1833 = vunpack.c.l.s4 1935823168
    %v1834 = vunpack.c.0.s8 %v1833
    %v1835 = vlaneseq
    %v1836 = vshrl.u32 %v1835, 7
    %v1837 = vsub.s32 %v1834, %v1836
    %v1838 = vrot.slane %v1824, %v1837
    %v1839 = vcombine.low %v1831, %v1838
    %v1841 = vunpack.c.l.s4 1935823168
    %v1842 = vunpack.c.0.s8 %v1841
    %v1843 = vlaneseq
    %v1844 = vshrl.u32 %v1843, 7
    %v1845 = vsub.s32 %v1842, %v1844
    %v1846 = vrot.slane %v1839, %v1845
    %v1847 = vcombine.low %v1559, %v1561
    %v1848 = vcombine.low %v1560, %v1562
    %v1850 = vunpack.c.l.s4 1935823168
    %v1851 = vunpack.c.0.s8 %v1850
    %v1852 = vlaneseq
    %v1853 = vshrl.u32 %v1852, 7
    %v1854 = vsub.s32 %v1851, %v1853
    %v1855 = vrot.slane %v1847, %v1854
    %v1857 = vunpack.c.l.s4 1935823168
    %v1858 = vunpack.c.0.s8 %v1857
    %v1859 = vlaneseq
    %v1860 = vshrl.u32 %v1859, 7
    %v1861 = vsub.s32 %v1858, %v1860
    %v1862 = vrot.slane %v1848, %v1861
    %v1863 = vcombine.low %v1855, %v1862
    %v1865 = vunpack.c.l.s4 1935823168
    %v1866 = vunpack.c.0.s8 %v1865
    %v1867 = vlaneseq
    %v1868 = vshrl.u32 %v1867, 7
    %v1869 = vsub.s32 %v1866, %v1868
    %v1870 = vrot.slane %v1863, %v1869
    %v1871 = vcombine.low %v1563, %v1565
    %v1872 = vcombine.low %v1564, %v1566
    %v1874 = vunpack.c.l.s4 1935823168
    %v1875 = vunpack.c.0.s8 %v1874
    %v1876 = vlaneseq
    %v1877 = vshrl.u32 %v1876, 7
    %v1878 = vsub.s32 %v1875, %v1877
    %v1879 = vrot.slane %v1871, %v1878
    %v1881 = vunpack.c.l.s4 1935823168
    %v1882 = vunpack.c.0.s8 %v1881
    %v1883 = vlaneseq
    %v1884 = vshrl.u32 %v1883, 7
    %v1885 = vsub.s32 %v1882, %v1884
    %v1886 = vrot.slane %v1872, %v1885
    %v1887 = vcombine.low %v1879, %v1886
    %v1889 = vunpack.c.l.s4 1935823168
    %v1890 = vunpack.c.0.s8 %v1889
    %v1891 = vlaneseq
    %v1892 = vshrl.u32 %v1891, 7
    %v1893 = vsub.s32 %v1890, %v1892
    %v1894 = vrot.slane %v1887, %v1893
    %v1895 = vcombine.low %v1567, %v1569
    %v1896 = vcombine.low %v1568, %v1570
    %v1898 = vunpack.c.l.s4 1935823168
    %v1899 = vunpack.c.0.s8 %v1898
    %v1900 = vlaneseq
    %v1901 = vshrl.u32 %v1900, 7
    %v1902 = vsub.s32 %v1899, %v1901
    %v1903 = vrot.slane %v1895, %v1902
    %v1905 = vunpack.c.l.s4 1935823168
    %v1906 = vunpack.c.0.s8 %v1905
    %v1907 = vlaneseq
    %v1908 = vshrl.u32 %v1907, 7
    %v1909 = vsub.s32 %v1906, %v1908
    %v1910 = vrot.slane %v1896, %v1909
    %v1911 = vcombine.low %v1903, %v1910
    %v1913 = vunpack.c.l.s4 1935823168
    %v1914 = vunpack.c.0.s8 %v1913
    %v1915 = vlaneseq
    %v1916 = vshrl.u32 %v1915, 7
    %v1917 = vsub.s32 %v1914, %v1916
    %v1918 = vrot.slane %v1911, %v1917
    %v1919 = vcombine.low %v1571, %v1573
    %v1920 = vcombine.low %v1572, %v1574
    %v1922 = vunpack.c.l.s4 1935823168
    %v1923 = vunpack.c.0.s8 %v1922
    %v1924 = vlaneseq
    %v1925 = vshrl.u32 %v1924, 7
    %v1926 = vsub.s32 %v1923, %v1925
    %v1927 = vrot.slane %v1919, %v1926
    %v1929 = vunpack.c.l.s4 1935823168
    %v1930 = vunpack.c.0.s8 %v1929
    %v1931 = vlaneseq
    %v1932 = vshrl.u32 %v1931, 7
    %v1933 = vsub.s32 %v1930, %v1932
    %v1934 = vrot.slane %v1920, %v1933
    %v1935 = vcombine.low %v1927, %v1934
    %v1937 = vunpack.c.l.s4 1935823168
    %v1938 = vunpack.c.0.s8 %v1937
    %v1939 = vlaneseq
    %v1940 = vshrl.u32 %v1939, 7
    %v1941 = vsub.s32 %v1938, %v1940
    %v1942 = vrot.slane %v1935, %v1941
    %v1943 = vcombine.low %v1575, %v1577
    %v1944 = vcombine.low %v1576, %v1578
    %v1946 = vunpack.c.l.s4 1935823168
    %v1947 = vunpack.c.0.s8 %v1946
    %v1948 = vlaneseq
    %v1949 = vshrl.u32 %v1948, 7
    %v1950 = vsub.s32 %v1947, %v1949
    %v1951 = vrot.slane %v1943, %v1950
    %v1953 = vunpack.c.l.s4 1935823168
    %v1954 = vunpack.c.0.s8 %v1953
    %v1955 = vlaneseq
    %v1956 = vshrl.u32 %v1955, 7
    %v1957 = vsub.s32 %v1954, %v1956
    %v1958 = vrot.slane %v1944, %v1957
    %v1959 = vcombine.low %v1951, %v1958
    %v1961 = vunpack.c.l.s4 1935823168
    %v1962 = vunpack.c.0.s8 %v1961
    %v1963 = vlaneseq
    %v1964 = vshrl.u32 %v1963, 7
    %v1965 = vsub.s32 %v1962, %v1964
    %v1966 = vrot.slane %v1959, %v1965
    %v1967 = vcombine.low %v1579, %v1581
    %v1968 = vcombine.low %v1580, %v1582
    %v1970 = vunpack.c.l.s4 1935823168
    %v1971 = vunpack.c.0.s8 %v1970
    %v1972 = vlaneseq
    %v1973 = vshrl.u32 %v1972, 7
    %v1974 = vsub.s32 %v1971, %v1973
    %v1975 = vrot.slane %v1967, %v1974
    %v1977 = vunpack.c.l.s4 1935823168
    %v1978 = vunpack.c.0.s8 %v1977
    %v1979 = vlaneseq
    %v1980 = vshrl.u32 %v1979, 7
    %v1981 = vsub.s32 %v1978, %v1980
    %v1982 = vrot.slane %v1968, %v1981
    %v1983 = vcombine.low %v1975, %v1982
    %v1985 = vunpack.c.l.s4 1935823168
    %v1986 = vunpack.c.0.s8 %v1985
    %v1987 = vlaneseq
    %v1988 = vshrl.u32 %v1987, 7
    %v1989 = vsub.s32 %v1986, %v1988
    %v1990 = vrot.slane %v1983, %v1989
    %v1991 = vcombine.low %v1583, %v1585
    %v1992 = vcombine.low %v1584, %v1586
    %v1994 = vunpack.c.l.s4 1935823168
    %v1995 = vunpack.c.0.s8 %v1994
    %v1996 = vlaneseq
    %v1997 = vshrl.u32 %v1996, 7
    %v1998 = vsub.s32 %v1995, %v1997
    %v1999 = vrot.slane %v1991, %v1998
    %v2001 = vunpack.c.l.s4 1935823168
    %v2002 = vunpack.c.0.s8 %v2001
    %v2003 = vlaneseq
    %v2004 = vshrl.u32 %v2003, 7
    %v2005 = vsub.s32 %v2002, %v2004
    %v2006 = vrot.slane %v1992, %v2005
    %v2007 = vcombine.low %v1999, %v2006
    %v2009 = vunpack.c.l.s4 1935823168
    %v2010 = vunpack.c.0.s8 %v2009
    %v2011 = vlaneseq
    %v2012 = vshrl.u32 %v2011, 7
    %v2013 = vsub.s32 %v2010, %v2012
    %v2014 = vrot.slane %v2007, %v2013
    %v2015 = vcombine.low %v1587, %v1589
    %v2016 = vcombine.low %v1588, %v1590
    %v2018 = vunpack.c.l.s4 1935823168
    %v2019 = vunpack.c.0.s8 %v2018
    %v2020 = vlaneseq
    %v2021 = vshrl.u32 %v2020, 7
    %v2022 = vsub.s32 %v2019, %v2021
    %v2023 = vrot.slane %v2015, %v2022
    %v2025 = vunpack.c.l.s4 1935823168
    %v2026 = vunpack.c.0.s8 %v2025
    %v2027 = vlaneseq
    %v2028 = vshrl.u32 %v2027, 7
    %v2029 = vsub.s32 %v2026, %v2028
    %v2030 = vrot.slane %v2016, %v2029
    %v2031 = vcombine.low %v2023, %v2030
    %v2033 = vunpack.c.l.s4 1935823168
    %v2034 = vunpack.c.0.s8 %v2033
    %v2035 = vlaneseq
    %v2036 = vshrl.u32 %v2035, 7
    %v2037 = vsub.s32 %v2034, %v2036
    %v2038 = vrot.slane %v2031, %v2037
    %2055 = vst [vmem:[#allocation3 + $0x4] sm:$0xf] %v1678
    %2056 = vst [vmem:[#allocation3 + $0x28] sm:$0xf] %v1702
    %2057 = vst [vmem:[#allocation3 + $0x4c] sm:$0xf] %v1726
    %2058 = vst [vmem:[#allocation3 + $0x70] sm:$0xf] %v1750
    %2059 = vst [vmem:[#allocation3 + $0x94] sm:$0xf] %v1774
    %2060 = vst [vmem:[#allocation3 + $0xb8] sm:$0xf] %v1798
    %2061 = vst [vmem:[#allocation3 + $0xdc] sm:$0xf] %v1822
    %2062 = vst [vmem:[#allocation3 + $0x100] sm:$0xf] %v1846
    %2063 = vst [vmem:[#allocation3 + $0x124] sm:$0xf] %v1870
    %2064 = vst [vmem:[#allocation3 + $0x148] sm:$0xf] %v1894
    %2065 = vst [vmem:[#allocation3 + $0x16c] sm:$0xf] %v1918
    %2066 = vst [vmem:[#allocation3 + $0x190] sm:$0xf] %v1942
    %2067 = vst [vmem:[#allocation3 + $0x1b4] sm:$0xf] %v1966
    %2068 = vst [vmem:[#allocation3 + $0x1d8] sm:$0xf] %v1990
    %2069 = vst [vmem:[#allocation3 + $0x1fc] sm:$0xf] %v2014
    %2070 = vst [vmem:[#allocation3 + $0x220] sm:$0xf] %v2038
    %s2071 = scalar_lea.vmem [#allocation2], 2
    %v2072 = vld [vmem:[%s2071] sm:$0x1]
    %v2073 = vld [vmem:[%s2071 + $0x1] sm:$0x1]
    %v2074 = vld [vmem:[%s2071 + $0x2] sm:$0x1]
    %v2075 = vld [vmem:[%s2071 + $0x3] sm:$0x1]
    %v2076 = vld [vmem:[%s2071 + $0x4] sm:$0x1]
    %v2077 = vld [vmem:[%s2071 + $0x5] sm:$0x1]
    %v2078 = vld [vmem:[%s2071 + $0x6] sm:$0x1]
    %v2079 = vld [vmem:[%s2071 + $0x7] sm:$0x1]
    %v2080 = vld [vmem:[%s2071 + $0xa] sm:$0x1]
    %v2081 = vld [vmem:[%s2071 + $0xb] sm:$0x1]
    %v2082 = vld [vmem:[%s2071 + $0xc] sm:$0x1]
    %v2083 = vld [vmem:[%s2071 + $0xd] sm:$0x1]
    %v2084 = vld [vmem:[%s2071 + $0xe] sm:$0x1]
    %v2085 = vld [vmem:[%s2071 + $0xf] sm:$0x1]
    %v2086 = vld [vmem:[%s2071 + $0x10] sm:$0x1]
    %v2087 = vld [vmem:[%s2071 + $0x11] sm:$0x1]
    %v2088 = vld [vmem:[%s2071 + $0x14] sm:$0x1]
    %v2089 = vld [vmem:[%s2071 + $0x15] sm:$0x1]
    %v2090 = vld [vmem:[%s2071 + $0x16] sm:$0x1]
    %v2091 = vld [vmem:[%s2071 + $0x17] sm:$0x1]
    %v2092 = vld [vmem:[%s2071 + $0x18] sm:$0x1]
    %v2093 = vld [vmem:[%s2071 + $0x19] sm:$0x1]
    %v2094 = vld [vmem:[%s2071 + $0x1a] sm:$0x1]
    %v2095 = vld [vmem:[%s2071 + $0x1b] sm:$0x1]
    %v2096 = vld [vmem:[%s2071 + $0x1e] sm:$0x1]
    %v2097 = vld [vmem:[%s2071 + $0x1f] sm:$0x1]
    %v2098 = vld [vmem:[%s2071 + $0x20] sm:$0x1]
    %v2099 = vld [vmem:[%s2071 + $0x21] sm:$0x1]
    %v2100 = vld [vmem:[%s2071 + $0x22] sm:$0x1]
    %v2101 = vld [vmem:[%s2071 + $0x23] sm:$0x1]
    %v2102 = vld [vmem:[%s2071 + $0x24] sm:$0x1]
    %v2103 = vld [vmem:[%s2071 + $0x25] sm:$0x1]
    %v2104 = vld [vmem:[%s2071 + $0x28] sm:$0x1]
    %v2105 = vld [vmem:[%s2071 + $0x29] sm:$0x1]
    %v2106 = vld [vmem:[%s2071 + $0x2a] sm:$0x1]
    %v2107 = vld [vmem:[%s2071 + $0x2b] sm:$0x1]
    %v2108 = vld [vmem:[%s2071 + $0x2c] sm:$0x1]
    %v2109 = vld [vmem:[%s2071 + $0x2d] sm:$0x1]
    %v2110 = vld [vmem:[%s2071 + $0x2e] sm:$0x1]
    %v2111 = vld [vmem:[%s2071 + $0x2f] sm:$0x1]
    %v2112 = vld [vmem:[%s2071 + $0x32] sm:$0x1]
    %v2113 = vld [vmem:[%s2071 + $0x33] sm:$0x1]
    %v2114 = vld [vmem:[%s2071 + $0x34] sm:$0x1]
    %v2115 = vld [vmem:[%s2071 + $0x35] sm:$0x1]
    %v2116 = vld [vmem:[%s2071 + $0x36] sm:$0x1]
    %v2117 = vld [vmem:[%s2071 + $0x37] sm:$0x1]
    %v2118 = vld [vmem:[%s2071 + $0x38] sm:$0x1]
    %v2119 = vld [vmem:[%s2071 + $0x39] sm:$0x1]
    %v2120 = vld [vmem:[%s2071 + $0x3c] sm:$0x1]
    %v2121 = vld [vmem:[%s2071 + $0x3d] sm:$0x1]
    %v2122 = vld [vmem:[%s2071 + $0x3e] sm:$0x1]
    %v2123 = vld [vmem:[%s2071 + $0x3f] sm:$0x1]
    %v2124 = vld [vmem:[%s2071 + $0x40] sm:$0x1]
    %v2125 = vld [vmem:[%s2071 + $0x41] sm:$0x1]
    %v2126 = vld [vmem:[%s2071 + $0x42] sm:$0x1]
    %v2127 = vld [vmem:[%s2071 + $0x43] sm:$0x1]
    %v2128 = vld [vmem:[%s2071 + $0x46] sm:$0x1]
    %v2129 = vld [vmem:[%s2071 + $0x47] sm:$0x1]
    %v2130 = vld [vmem:[%s2071 + $0x48] sm:$0x1]
    %v2131 = vld [vmem:[%s2071 + $0x49] sm:$0x1]
    %v2132 = vld [vmem:[%s2071 + $0x4a] sm:$0x1]
    %v2133 = vld [vmem:[%s2071 + $0x4b] sm:$0x1]
    %v2134 = vld [vmem:[%s2071 + $0x4c] sm:$0x1]
    %v2135 = vld [vmem:[%s2071 + $0x4d] sm:$0x1]
    %v2200 = vcombine.low %v2072, %v2074
    %v2201 = vcombine.low %v2073, %v2075
    %v2203 = vunpack.c.l.s4 1935823168
    %v2204 = vunpack.c.0.s8 %v2203
    %v2205 = vlaneseq
    %v2206 = vshrl.u32 %v2205, 7
    %v2207 = vsub.s32 %v2204, %v2206
    %v2208 = vrot.slane %v2200, %v2207
    %v2210 = vunpack.c.l.s4 1935823168
    %v2211 = vunpack.c.0.s8 %v2210
    %v2212 = vlaneseq
    %v2213 = vshrl.u32 %v2212, 7
    %v2214 = vsub.s32 %v2211, %v2213
    %v2215 = vrot.slane %v2201, %v2214
    %v2216 = vcombine.low %v2208, %v2215
    %v2218 = vunpack.c.l.s4 1935823168
    %v2219 = vunpack.c.0.s8 %v2218
    %v2220 = vlaneseq
    %v2221 = vshrl.u32 %v2220, 7
    %v2222 = vsub.s32 %v2219, %v2221
    %v2223 = vrot.slane %v2216, %v2222
    %v2224 = vcombine.low %v2076, %v2078
    %v2225 = vcombine.low %v2077, %v2079
    %v2227 = vunpack.c.l.s4 1935823168
    %v2228 = vunpack.c.0.s8 %v2227
    %v2229 = vlaneseq
    %v2230 = vshrl.u32 %v2229, 7
    %v2231 = vsub.s32 %v2228, %v2230
    %v2232 = vrot.slane %v2224, %v2231
    %v2234 = vunpack.c.l.s4 1935823168
    %v2235 = vunpack.c.0.s8 %v2234
    %v2236 = vlaneseq
    %v2237 = vshrl.u32 %v2236, 7
    %v2238 = vsub.s32 %v2235, %v2237
    %v2239 = vrot.slane %v2225, %v2238
    %v2240 = vcombine.low %v2232, %v2239
    %v2242 = vunpack.c.l.s4 1935823168
    %v2243 = vunpack.c.0.s8 %v2242
    %v2244 = vlaneseq
    %v2245 = vshrl.u32 %v2244, 7
    %v2246 = vsub.s32 %v2243, %v2245
    %v2247 = vrot.slane %v2240, %v2246
    %v2248 = vcombine.low %v2080, %v2082
    %v2249 = vcombine.low %v2081, %v2083
    %v2251 = vunpack.c.l.s4 1935823168
    %v2252 = vunpack.c.0.s8 %v2251
    %v2253 = vlaneseq
    %v2254 = vshrl.u32 %v2253, 7
    %v2255 = vsub.s32 %v2252, %v2254
    %v2256 = vrot.slane %v2248, %v2255
    %v2258 = vunpack.c.l.s4 1935823168
    %v2259 = vunpack.c.0.s8 %v2258
    %v2260 = vlaneseq
    %v2261 = vshrl.u32 %v2260, 7
    %v2262 = vsub.s32 %v2259, %v2261
    %v2263 = vrot.slane %v2249, %v2262
    %v2264 = vcombine.low %v2256, %v2263
    %v2266 = vunpack.c.l.s4 1935823168
    %v2267 = vunpack.c.0.s8 %v2266
    %v2268 = vlaneseq
    %v2269 = vshrl.u32 %v2268, 7
    %v2270 = vsub.s32 %v2267, %v2269
    %v2271 = vrot.slane %v2264, %v2270
    %v2272 = vcombine.low %v2084, %v2086
    %v2273 = vcombine.low %v2085, %v2087
    %v2275 = vunpack.c.l.s4 1935823168
    %v2276 = vunpack.c.0.s8 %v2275
    %v2277 = vlaneseq
    %v2278 = vshrl.u32 %v2277, 7
    %v2279 = vsub.s32 %v2276, %v2278
    %v2280 = vrot.slane %v2272, %v2279
    %v2282 = vunpack.c.l.s4 1935823168
    %v2283 = vunpack.c.0.s8 %v2282
    %v2284 = vlaneseq
    %v2285 = vshrl.u32 %v2284, 7
    %v2286 = vsub.s32 %v2283, %v2285
    %v2287 = vrot.slane %v2273, %v2286
    %v2288 = vcombine.low %v2280, %v2287
    %v2290 = vunpack.c.l.s4 1935823168
    %v2291 = vunpack.c.0.s8 %v2290
    %v2292 = vlaneseq
    %v2293 = vshrl.u32 %v2292, 7
    %v2294 = vsub.s32 %v2291, %v2293
    %v2295 = vrot.slane %v2288, %v2294
    %v2296 = vcombine.low %v2088, %v2090
    %v2297 = vcombine.low %v2089, %v2091
    %v2299 = vunpack.c.l.s4 1935823168
    %v2300 = vunpack.c.0.s8 %v2299
    %v2301 = vlaneseq
    %v2302 = vshrl.u32 %v2301, 7
    %v2303 = vsub.s32 %v2300, %v2302
    %v2304 = vrot.slane %v2296, %v2303
    %v2306 = vunpack.c.l.s4 1935823168
    %v2307 = vunpack.c.0.s8 %v2306
    %v2308 = vlaneseq
    %v2309 = vshrl.u32 %v2308, 7
    %v2310 = vsub.s32 %v2307, %v2309
    %v2311 = vrot.slane %v2297, %v2310
    %v2312 = vcombine.low %v2304, %v2311
    %v2314 = vunpack.c.l.s4 1935823168
    %v2315 = vunpack.c.0.s8 %v2314
    %v2316 = vlaneseq
    %v2317 = vshrl.u32 %v2316, 7
    %v2318 = vsub.s32 %v2315, %v2317
    %v2319 = vrot.slane %v2312, %v2318
    %v2320 = vcombine.low %v2092, %v2094
    %v2321 = vcombine.low %v2093, %v2095
    %v2323 = vunpack.c.l.s4 1935823168
    %v2324 = vunpack.c.0.s8 %v2323
    %v2325 = vlaneseq
    %v2326 = vshrl.u32 %v2325, 7
    %v2327 = vsub.s32 %v2324, %v2326
    %v2328 = vrot.slane %v2320, %v2327
    %v2330 = vunpack.c.l.s4 1935823168
    %v2331 = vunpack.c.0.s8 %v2330
    %v2332 = vlaneseq
    %v2333 = vshrl.u32 %v2332, 7
    %v2334 = vsub.s32 %v2331, %v2333
    %v2335 = vrot.slane %v2321, %v2334
    %v2336 = vcombine.low %v2328, %v2335
    %v2338 = vunpack.c.l.s4 1935823168
    %v2339 = vunpack.c.0.s8 %v2338
    %v2340 = vlaneseq
    %v2341 = vshrl.u32 %v2340, 7
    %v2342 = vsub.s32 %v2339, %v2341
    %v2343 = vrot.slane %v2336, %v2342
    %v2344 = vcombine.low %v2096, %v2098
    %v2345 = vcombine.low %v2097, %v2099
    %v2347 = vunpack.c.l.s4 1935823168
    %v2348 = vunpack.c.0.s8 %v2347
    %v2349 = vlaneseq
    %v2350 = vshrl.u32 %v2349, 7
    %v2351 = vsub.s32 %v2348, %v2350
    %v2352 = vrot.slane %v2344, %v2351
    %v2354 = vunpack.c.l.s4 1935823168
    %v2355 = vunpack.c.0.s8 %v2354
    %v2356 = vlaneseq
    %v2357 = vshrl.u32 %v2356, 7
    %v2358 = vsub.s32 %v2355, %v2357
    %v2359 = vrot.slane %v2345, %v2358
    %v2360 = vcombine.low %v2352, %v2359
    %v2362 = vunpack.c.l.s4 1935823168
    %v2363 = vunpack.c.0.s8 %v2362
    %v2364 = vlaneseq
    %v2365 = vshrl.u32 %v2364, 7
    %v2366 = vsub.s32 %v2363, %v2365
    %v2367 = vrot.slane %v2360, %v2366
    %v2368 = vcombine.low %v2100, %v2102
    %v2369 = vcombine.low %v2101, %v2103
    %v2371 = vunpack.c.l.s4 1935823168
    %v2372 = vunpack.c.0.s8 %v2371
    %v2373 = vlaneseq
    %v2374 = vshrl.u32 %v2373, 7
    %v2375 = vsub.s32 %v2372, %v2374
    %v2376 = vrot.slane %v2368, %v2375
    %v2378 = vunpack.c.l.s4 1935823168
    %v2379 = vunpack.c.0.s8 %v2378
    %v2380 = vlaneseq
    %v2381 = vshrl.u32 %v2380, 7
    %v2382 = vsub.s32 %v2379, %v2381
    %v2383 = vrot.slane %v2369, %v2382
    %v2384 = vcombine.low %v2376, %v2383
    %v2386 = vunpack.c.l.s4 1935823168
    %v2387 = vunpack.c.0.s8 %v2386
    %v2388 = vlaneseq
    %v2389 = vshrl.u32 %v2388, 7
    %v2390 = vsub.s32 %v2387, %v2389
    %v2391 = vrot.slane %v2384, %v2390
    %v2392 = vcombine.low %v2104, %v2106
    %v2393 = vcombine.low %v2105, %v2107
    %v2395 = vunpack.c.l.s4 1935823168
    %v2396 = vunpack.c.0.s8 %v2395
    %v2397 = vlaneseq
    %v2398 = vshrl.u32 %v2397, 7
    %v2399 = vsub.s32 %v2396, %v2398
    %v2400 = vrot.slane %v2392, %v2399
    %v2402 = vunpack.c.l.s4 1935823168
    %v2403 = vunpack.c.0.s8 %v2402
    %v2404 = vlaneseq
    %v2405 = vshrl.u32 %v2404, 7
    %v2406 = vsub.s32 %v2403, %v2405
    %v2407 = vrot.slane %v2393, %v2406
    %v2408 = vcombine.low %v2400, %v2407
    %v2410 = vunpack.c.l.s4 1935823168
    %v2411 = vunpack.c.0.s8 %v2410
    %v2412 = vlaneseq
    %v2413 = vshrl.u32 %v2412, 7
    %v2414 = vsub.s32 %v2411, %v2413
    %v2415 = vrot.slane %v2408, %v2414
    %v2416 = vcombine.low %v2108, %v2110
    %v2417 = vcombine.low %v2109, %v2111
    %v2419 = vunpack.c.l.s4 1935823168
    %v2420 = vunpack.c.0.s8 %v2419
    %v2421 = vlaneseq
    %v2422 = vshrl.u32 %v2421, 7
    %v2423 = vsub.s32 %v2420, %v2422
    %v2424 = vrot.slane %v2416, %v2423
    %v2426 = vunpack.c.l.s4 1935823168
    %v2427 = vunpack.c.0.s8 %v2426
    %v2428 = vlaneseq
    %v2429 = vshrl.u32 %v2428, 7
    %v2430 = vsub.s32 %v2427, %v2429
    %v2431 = vrot.slane %v2417, %v2430
    %v2432 = vcombine.low %v2424, %v2431
    %v2434 = vunpack.c.l.s4 1935823168
    %v2435 = vunpack.c.0.s8 %v2434
    %v2436 = vlaneseq
    %v2437 = vshrl.u32 %v2436, 7
    %v2438 = vsub.s32 %v2435, %v2437
    %v2439 = vrot.slane %v2432, %v2438
    %v2440 = vcombine.low %v2112, %v2114
    %v2441 = vcombine.low %v2113, %v2115
    %v2443 = vunpack.c.l.s4 1935823168
    %v2444 = vunpack.c.0.s8 %v2443
    %v2445 = vlaneseq
    %v2446 = vshrl.u32 %v2445, 7
    %v2447 = vsub.s32 %v2444, %v2446
    %v2448 = vrot.slane %v2440, %v2447
    %v2450 = vunpack.c.l.s4 1935823168
    %v2451 = vunpack.c.0.s8 %v2450
    %v2452 = vlaneseq
    %v2453 = vshrl.u32 %v2452, 7
    %v2454 = vsub.s32 %v2451, %v2453
    %v2455 = vrot.slane %v2441, %v2454
    %v2456 = vcombine.low %v2448, %v2455
    %v2458 = vunpack.c.l.s4 1935823168
    %v2459 = vunpack.c.0.s8 %v2458
    %v2460 = vlaneseq
    %v2461 = vshrl.u32 %v2460, 7
    %v2462 = vsub.s32 %v2459, %v2461
    %v2463 = vrot.slane %v2456, %v2462
    %v2464 = vcombine.low %v2116, %v2118
    %v2465 = vcombine.low %v2117, %v2119
    %v2467 = vunpack.c.l.s4 1935823168
    %v2468 = vunpack.c.0.s8 %v2467
    %v2469 = vlaneseq
    %v2470 = vshrl.u32 %v2469, 7
    %v2471 = vsub.s32 %v2468, %v2470
    %v2472 = vrot.slane %v2464, %v2471
    %v2474 = vunpack.c.l.s4 1935823168
    %v2475 = vunpack.c.0.s8 %v2474
    %v2476 = vlaneseq
    %v2477 = vshrl.u32 %v2476, 7
    %v2478 = vsub.s32 %v2475, %v2477
    %v2479 = vrot.slane %v2465, %v2478
    %v2480 = vcombine.low %v2472, %v2479
    %v2482 = vunpack.c.l.s4 1935823168
    %v2483 = vunpack.c.0.s8 %v2482
    %v2484 = vlaneseq
    %v2485 = vshrl.u32 %v2484, 7
    %v2486 = vsub.s32 %v2483, %v2485
    %v2487 = vrot.slane %v2480, %v2486
    %v2488 = vcombine.low %v2120, %v2122
    %v2489 = vcombine.low %v2121, %v2123
    %v2491 = vunpack.c.l.s4 1935823168
    %v2492 = vunpack.c.0.s8 %v2491
    %v2493 = vlaneseq
    %v2494 = vshrl.u32 %v2493, 7
    %v2495 = vsub.s32 %v2492, %v2494
    %v2496 = vrot.slane %v2488, %v2495
    %v2498 = vunpack.c.l.s4 1935823168
    %v2499 = vunpack.c.0.s8 %v2498
    %v2500 = vlaneseq
    %v2501 = vshrl.u32 %v2500, 7
    %v2502 = vsub.s32 %v2499, %v2501
    %v2503 = vrot.slane %v2489, %v2502
    %v2504 = vcombine.low %v2496, %v2503
    %v2506 = vunpack.c.l.s4 1935823168
    %v2507 = vunpack.c.0.s8 %v2506
    %v2508 = vlaneseq
    %v2509 = vshrl.u32 %v2508, 7
    %v2510 = vsub.s32 %v2507, %v2509
    %v2511 = vrot.slane %v2504, %v2510
    %v2512 = vcombine.low %v2124, %v2126
    %v2513 = vcombine.low %v2125, %v2127
    %v2515 = vunpack.c.l.s4 1935823168
    %v2516 = vunpack.c.0.s8 %v2515
    %v2517 = vlaneseq
    %v2518 = vshrl.u32 %v2517, 7
    %v2519 = vsub.s32 %v2516, %v2518
    %v2520 = vrot.slane %v2512, %v2519
    %v2522 = vunpack.c.l.s4 1935823168
    %v2523 = vunpack.c.0.s8 %v2522
    %v2524 = vlaneseq
    %v2525 = vshrl.u32 %v2524, 7
    %v2526 = vsub.s32 %v2523, %v2525
    %v2527 = vrot.slane %v2513, %v2526
    %v2528 = vcombine.low %v2520, %v2527
    %v2530 = vunpack.c.l.s4 1935823168
    %v2531 = vunpack.c.0.s8 %v2530
    %v2532 = vlaneseq
    %v2533 = vshrl.u32 %v2532, 7
    %v2534 = vsub.s32 %v2531, %v2533
    %v2535 = vrot.slane %v2528, %v2534
    %v2536 = vcombine.low %v2128, %v2130
    %v2537 = vcombine.low %v2129, %v2131
    %v2539 = vunpack.c.l.s4 1935823168
    %v2540 = vunpack.c.0.s8 %v2539
    %v2541 = vlaneseq
    %v2542 = vshrl.u32 %v2541, 7
    %v2543 = vsub.s32 %v2540, %v2542
    %v2544 = vrot.slane %v2536, %v2543
    %v2546 = vunpack.c.l.s4 1935823168
    %v2547 = vunpack.c.0.s8 %v2546
    %v2548 = vlaneseq
    %v2549 = vshrl.u32 %v2548, 7
    %v2550 = vsub.s32 %v2547, %v2549
    %v2551 = vrot.slane %v2537, %v2550
    %v2552 = vcombine.low %v2544, %v2551
    %v2554 = vunpack.c.l.s4 1935823168
    %v2555 = vunpack.c.0.s8 %v2554
    %v2556 = vlaneseq
    %v2557 = vshrl.u32 %v2556, 7
    %v2558 = vsub.s32 %v2555, %v2557
    %v2559 = vrot.slane %v2552, %v2558
    %v2560 = vcombine.low %v2132, %v2134
    %v2561 = vcombine.low %v2133, %v2135
    %v2563 = vunpack.c.l.s4 1935823168
    %v2564 = vunpack.c.0.s8 %v2563
    %v2565 = vlaneseq
    %v2566 = vshrl.u32 %v2565, 7
    %v2567 = vsub.s32 %v2564, %v2566
    %v2568 = vrot.slane %v2560, %v2567
    %v2570 = vunpack.c.l.s4 1935823168
    %v2571 = vunpack.c.0.s8 %v2570
    %v2572 = vlaneseq
    %v2573 = vshrl.u32 %v2572, 7
    %v2574 = vsub.s32 %v2571, %v2573
    %v2575 = vrot.slane %v2561, %v2574
    %v2576 = vcombine.low %v2568, %v2575
    %v2578 = vunpack.c.l.s4 1935823168
    %v2579 = vunpack.c.0.s8 %v2578
    %v2580 = vlaneseq
    %v2581 = vshrl.u32 %v2580, 7
    %v2582 = vsub.s32 %v2579, %v2581
    %v2583 = vrot.slane %v2576, %v2582
    %2600 = vst [vmem:[#allocation3 + $0x8] sm:$0xf] %v2223
    %2601 = vst [vmem:[#allocation3 + $0x2c] sm:$0xf] %v2247
    %2602 = vst [vmem:[#allocation3 + $0x50] sm:$0xf] %v2271
    %2603 = vst [vmem:[#allocation3 + $0x74] sm:$0xf] %v2295
    %2604 = vst [vmem:[#allocation3 + $0x98] sm:$0xf] %v2319
    %2605 = vst [vmem:[#allocation3 + $0xbc] sm:$0xf] %v2343
    %2606 = vst [vmem:[#allocation3 + $0xe0] sm:$0xf] %v2367
    %2607 = vst [vmem:[#allocation3 + $0x104] sm:$0xf] %v2391
    %2608 = vst [vmem:[#allocation3 + $0x128] sm:$0xf] %v2415
    %2609 = vst [vmem:[#allocation3 + $0x14c] sm:$0xf] %v2439
    %2610 = vst [vmem:[#allocation3 + $0x170] sm:$0xf] %v2463
    %2611 = vst [vmem:[#allocation3 + $0x194] sm:$0xf] %v2487
    %2612 = vst [vmem:[#allocation3 + $0x1b8] sm:$0xf] %v2511
    %2613 = vst [vmem:[#allocation3 + $0x1dc] sm:$0xf] %v2535
    %2614 = vst [vmem:[#allocation3 + $0x200] sm:$0xf] %v2559
    %2615 = vst [vmem:[#allocation3 + $0x224] sm:$0xf] %v2583
    %v2616 = vld [vmem:[%s435] sm:$0x1]
    %v2617 = vld [vmem:[%s435 + $0x1] sm:$0x1]
    %v2618 = vld [vmem:[%s435 + $0x2] sm:$0x1]
    %v2619 = vld [vmem:[%s435 + $0x3] sm:$0x1]
    %v2620 = vld [vmem:[%s435 + $0x4] sm:$0x1]
    %v2621 = vld [vmem:[%s435 + $0x5] sm:$0x1]
    %v2622 = vld [vmem:[%s435 + $0x6] sm:$0x1]
    %v2623 = vld [vmem:[%s435 + $0x7] sm:$0x1]
    %v2624 = vld [vmem:[%s435 + $0xa] sm:$0x1]
    %v2625 = vld [vmem:[%s435 + $0xb] sm:$0x1]
    %v2626 = vld [vmem:[%s435 + $0xc] sm:$0x1]
    %v2627 = vld [vmem:[%s435 + $0xd] sm:$0x1]
    %v2628 = vld [vmem:[%s435 + $0xe] sm:$0x1]
    %v2629 = vld [vmem:[%s435 + $0xf] sm:$0x1]
    %v2630 = vld [vmem:[%s435 + $0x10] sm:$0x1]
    %v2631 = vld [vmem:[%s435 + $0x11] sm:$0x1]
    %v2632 = vld [vmem:[%s435 + $0x14] sm:$0x1]
    %v2633 = vld [vmem:[%s435 + $0x15] sm:$0x1]
    %v2634 = vld [vmem:[%s435 + $0x16] sm:$0x1]
    %v2635 = vld [vmem:[%s435 + $0x17] sm:$0x1]
    %v2636 = vld [vmem:[%s435 + $0x18] sm:$0x1]
    %v2637 = vld [vmem:[%s435 + $0x19] sm:$0x1]
    %v2638 = vld [vmem:[%s435 + $0x1a] sm:$0x1]
    %v2639 = vld [vmem:[%s435 + $0x1b] sm:$0x1]
    %v2640 = vld [vmem:[%s435 + $0x1e] sm:$0x1]
    %v2641 = vld [vmem:[%s435 + $0x1f] sm:$0x1]
    %v2642 = vld [vmem:[%s435 + $0x20] sm:$0x1]
    %v2643 = vld [vmem:[%s435 + $0x21] sm:$0x1]
    %v2644 = vld [vmem:[%s435 + $0x22] sm:$0x1]
    %v2645 = vld [vmem:[%s435 + $0x23] sm:$0x1]
    %v2646 = vld [vmem:[%s435 + $0x24] sm:$0x1]
    %v2647 = vld [vmem:[%s435 + $0x25] sm:$0x1]
    %v2648 = vld [vmem:[%s435 + $0x28] sm:$0x1]
    %v2649 = vld [vmem:[%s435 + $0x29] sm:$0x1]
    %v2650 = vld [vmem:[%s435 + $0x2a] sm:$0x1]
    %v2651 = vld [vmem:[%s435 + $0x2b] sm:$0x1]
    %v2652 = vld [vmem:[%s435 + $0x2c] sm:$0x1]
    %v2653 = vld [vmem:[%s435 + $0x2d] sm:$0x1]
    %v2654 = vld [vmem:[%s435 + $0x2e] sm:$0x1]
    %v2655 = vld [vmem:[%s435 + $0x2f] sm:$0x1]
    %v2656 = vld [vmem:[%s435 + $0x32] sm:$0x1]
    %v2657 = vld [vmem:[%s435 + $0x33] sm:$0x1]
    %v2658 = vld [vmem:[%s435 + $0x34] sm:$0x1]
    %v2659 = vld [vmem:[%s435 + $0x35] sm:$0x1]
    %v2660 = vld [vmem:[%s435 + $0x36] sm:$0x1]
    %v2661 = vld [vmem:[%s435 + $0x37] sm:$0x1]
    %v2662 = vld [vmem:[%s435 + $0x38] sm:$0x1]
    %v2663 = vld [vmem:[%s435 + $0x39] sm:$0x1]
    %v2664 = vld [vmem:[%s435 + $0x3c] sm:$0x1]
    %v2665 = vld [vmem:[%s435 + $0x3d] sm:$0x1]
    %v2666 = vld [vmem:[%s435 + $0x3e] sm:$0x1]
    %v2667 = vld [vmem:[%s435 + $0x3f] sm:$0x1]
    %v2668 = vld [vmem:[%s435 + $0x40] sm:$0x1]
    %v2669 = vld [vmem:[%s435 + $0x41] sm:$0x1]
    %v2670 = vld [vmem:[%s435 + $0x42] sm:$0x1]
    %v2671 = vld [vmem:[%s435 + $0x43] sm:$0x1]
    %v2672 = vld [vmem:[%s435 + $0x46] sm:$0x1]
    %v2673 = vld [vmem:[%s435 + $0x47] sm:$0x1]
    %v2674 = vld [vmem:[%s435 + $0x48] sm:$0x1]
    %v2675 = vld [vmem:[%s435 + $0x49] sm:$0x1]
    %v2676 = vld [vmem:[%s435 + $0x4a] sm:$0x1]
    %v2677 = vld [vmem:[%s435 + $0x4b] sm:$0x1]
    %v2678 = vld [vmem:[%s435 + $0x4c] sm:$0x1]
    %v2679 = vld [vmem:[%s435 + $0x4d] sm:$0x1]
    %v2744 = vcombine.low %v2616, %v2618
    %v2745 = vcombine.low %v2617, %v2619
    %v2747 = vunpack.c.l.s4 1935823168
    %v2748 = vunpack.c.0.s8 %v2747
    %v2749 = vlaneseq
    %v2750 = vshrl.u32 %v2749, 7
    %v2751 = vsub.s32 %v2748, %v2750
    %v2752 = vrot.slane %v2744, %v2751
    %v2754 = vunpack.c.l.s4 1935823168
    %v2755 = vunpack.c.0.s8 %v2754
    %v2756 = vlaneseq
    %v2757 = vshrl.u32 %v2756, 7
    %v2758 = vsub.s32 %v2755, %v2757
    %v2759 = vrot.slane %v2745, %v2758
    %v2760 = vcombine.low %v2752, %v2759
    %v2762 = vunpack.c.l.s4 1935823168
    %v2763 = vunpack.c.0.s8 %v2762
    %v2764 = vlaneseq
    %v2765 = vshrl.u32 %v2764, 7
    %v2766 = vsub.s32 %v2763, %v2765
    %v2767 = vrot.slane %v2760, %v2766
    %v2768 = vcombine.low %v2620, %v2622
    %v2769 = vcombine.low %v2621, %v2623
    %v2771 = vunpack.c.l.s4 1935823168
    %v2772 = vunpack.c.0.s8 %v2771
    %v2773 = vlaneseq
    %v2774 = vshrl.u32 %v2773, 7
    %v2775 = vsub.s32 %v2772, %v2774
    %v2776 = vrot.slane %v2768, %v2775
    %v2778 = vunpack.c.l.s4 1935823168
    %v2779 = vunpack.c.0.s8 %v2778
    %v2780 = vlaneseq
    %v2781 = vshrl.u32 %v2780, 7
    %v2782 = vsub.s32 %v2779, %v2781
    %v2783 = vrot.slane %v2769, %v2782
    %v2784 = vcombine.low %v2776, %v2783
    %v2786 = vunpack.c.l.s4 1935823168
    %v2787 = vunpack.c.0.s8 %v2786
    %v2788 = vlaneseq
    %v2789 = vshrl.u32 %v2788, 7
    %v2790 = vsub.s32 %v2787, %v2789
    %v2791 = vrot.slane %v2784, %v2790
    %v2792 = vcombine.low %v2624, %v2626
    %v2793 = vcombine.low %v2625, %v2627
    %v2795 = vunpack.c.l.s4 1935823168
    %v2796 = vunpack.c.0.s8 %v2795
    %v2797 = vlaneseq
    %v2798 = vshrl.u32 %v2797, 7
    %v2799 = vsub.s32 %v2796, %v2798
    %v2800 = vrot.slane %v2792, %v2799
    %v2802 = vunpack.c.l.s4 1935823168
    %v2803 = vunpack.c.0.s8 %v2802
    %v2804 = vlaneseq
    %v2805 = vshrl.u32 %v2804, 7
    %v2806 = vsub.s32 %v2803, %v2805
    %v2807 = vrot.slane %v2793, %v2806
    %v2808 = vcombine.low %v2800, %v2807
    %v2810 = vunpack.c.l.s4 1935823168
    %v2811 = vunpack.c.0.s8 %v2810
    %v2812 = vlaneseq
    %v2813 = vshrl.u32 %v2812, 7
    %v2814 = vsub.s32 %v2811, %v2813
    %v2815 = vrot.slane %v2808, %v2814
    %v2816 = vcombine.low %v2628, %v2630
    %v2817 = vcombine.low %v2629, %v2631
    %v2819 = vunpack.c.l.s4 1935823168
    %v2820 = vunpack.c.0.s8 %v2819
    %v2821 = vlaneseq
    %v2822 = vshrl.u32 %v2821, 7
    %v2823 = vsub.s32 %v2820, %v2822
    %v2824 = vrot.slane %v2816, %v2823
    %v2826 = vunpack.c.l.s4 1935823168
    %v2827 = vunpack.c.0.s8 %v2826
    %v2828 = vlaneseq
    %v2829 = vshrl.u32 %v2828, 7
    %v2830 = vsub.s32 %v2827, %v2829
    %v2831 = vrot.slane %v2817, %v2830
    %v2832 = vcombine.low %v2824, %v2831
    %v2834 = vunpack.c.l.s4 1935823168
    %v2835 = vunpack.c.0.s8 %v2834
    %v2836 = vlaneseq
    %v2837 = vshrl.u32 %v2836, 7
    %v2838 = vsub.s32 %v2835, %v2837
    %v2839 = vrot.slane %v2832, %v2838
    %v2840 = vcombine.low %v2632, %v2634
    %v2841 = vcombine.low %v2633, %v2635
    %v2843 = vunpack.c.l.s4 1935823168
    %v2844 = vunpack.c.0.s8 %v2843
    %v2845 = vlaneseq
    %v2846 = vshrl.u32 %v2845, 7
    %v2847 = vsub.s32 %v2844, %v2846
    %v2848 = vrot.slane %v2840, %v2847
    %v2850 = vunpack.c.l.s4 1935823168
    %v2851 = vunpack.c.0.s8 %v2850
    %v2852 = vlaneseq
    %v2853 = vshrl.u32 %v2852, 7
    %v2854 = vsub.s32 %v2851, %v2853
    %v2855 = vrot.slane %v2841, %v2854
    %v2856 = vcombine.low %v2848, %v2855
    %v2858 = vunpack.c.l.s4 1935823168
    %v2859 = vunpack.c.0.s8 %v2858
    %v2860 = vlaneseq
    %v2861 = vshrl.u32 %v2860, 7
    %v2862 = vsub.s32 %v2859, %v2861
    %v2863 = vrot.slane %v2856, %v2862
    %v2864 = vcombine.low %v2636, %v2638
    %v2865 = vcombine.low %v2637, %v2639
    %v2867 = vunpack.c.l.s4 1935823168
    %v2868 = vunpack.c.0.s8 %v2867
    %v2869 = vlaneseq
    %v2870 = vshrl.u32 %v2869, 7
    %v2871 = vsub.s32 %v2868, %v2870
    %v2872 = vrot.slane %v2864, %v2871
    %v2874 = vunpack.c.l.s4 1935823168
    %v2875 = vunpack.c.0.s8 %v2874
    %v2876 = vlaneseq
    %v2877 = vshrl.u32 %v2876, 7
    %v2878 = vsub.s32 %v2875, %v2877
    %v2879 = vrot.slane %v2865, %v2878
    %v2880 = vcombine.low %v2872, %v2879
    %v2882 = vunpack.c.l.s4 1935823168
    %v2883 = vunpack.c.0.s8 %v2882
    %v2884 = vlaneseq
    %v2885 = vshrl.u32 %v2884, 7
    %v2886 = vsub.s32 %v2883, %v2885
    %v2887 = vrot.slane %v2880, %v2886
    %v2888 = vcombine.low %v2640, %v2642
    %v2889 = vcombine.low %v2641, %v2643
    %v2891 = vunpack.c.l.s4 1935823168
    %v2892 = vunpack.c.0.s8 %v2891
    %v2893 = vlaneseq
    %v2894 = vshrl.u32 %v2893, 7
    %v2895 = vsub.s32 %v2892, %v2894
    %v2896 = vrot.slane %v2888, %v2895
    %v2898 = vunpack.c.l.s4 1935823168
    %v2899 = vunpack.c.0.s8 %v2898
    %v2900 = vlaneseq
    %v2901 = vshrl.u32 %v2900, 7
    %v2902 = vsub.s32 %v2899, %v2901
    %v2903 = vrot.slane %v2889, %v2902
    %v2904 = vcombine.low %v2896, %v2903
    %v2906 = vunpack.c.l.s4 1935823168
    %v2907 = vunpack.c.0.s8 %v2906
    %v2908 = vlaneseq
    %v2909 = vshrl.u32 %v2908, 7
    %v2910 = vsub.s32 %v2907, %v2909
    %v2911 = vrot.slane %v2904, %v2910
    %v2912 = vcombine.low %v2644, %v2646
    %v2913 = vcombine.low %v2645, %v2647
    %v2915 = vunpack.c.l.s4 1935823168
    %v2916 = vunpack.c.0.s8 %v2915
    %v2917 = vlaneseq
    %v2918 = vshrl.u32 %v2917, 7
    %v2919 = vsub.s32 %v2916, %v2918
    %v2920 = vrot.slane %v2912, %v2919
    %v2922 = vunpack.c.l.s4 1935823168
    %v2923 = vunpack.c.0.s8 %v2922
    %v2924 = vlaneseq
    %v2925 = vshrl.u32 %v2924, 7
    %v2926 = vsub.s32 %v2923, %v2925
    %v2927 = vrot.slane %v2913, %v2926
    %v2928 = vcombine.low %v2920, %v2927
    %v2930 = vunpack.c.l.s4 1935823168
    %v2931 = vunpack.c.0.s8 %v2930
    %v2932 = vlaneseq
    %v2933 = vshrl.u32 %v2932, 7
    %v2934 = vsub.s32 %v2931, %v2933
    %v2935 = vrot.slane %v2928, %v2934
    %v2936 = vcombine.low %v2648, %v2650
    %v2937 = vcombine.low %v2649, %v2651
    %v2939 = vunpack.c.l.s4 1935823168
    %v2940 = vunpack.c.0.s8 %v2939
    %v2941 = vlaneseq
    %v2942 = vshrl.u32 %v2941, 7
    %v2943 = vsub.s32 %v2940, %v2942
    %v2944 = vrot.slane %v2936, %v2943
    %v2946 = vunpack.c.l.s4 1935823168
    %v2947 = vunpack.c.0.s8 %v2946
    %v2948 = vlaneseq
    %v2949 = vshrl.u32 %v2948, 7
    %v2950 = vsub.s32 %v2947, %v2949
    %v2951 = vrot.slane %v2937, %v2950
    %v2952 = vcombine.low %v2944, %v2951
    %v2954 = vunpack.c.l.s4 1935823168
    %v2955 = vunpack.c.0.s8 %v2954
    %v2956 = vlaneseq
    %v2957 = vshrl.u32 %v2956, 7
    %v2958 = vsub.s32 %v2955, %v2957
    %v2959 = vrot.slane %v2952, %v2958
    %v2960 = vcombine.low %v2652, %v2654
    %v2961 = vcombine.low %v2653, %v2655
    %v2963 = vunpack.c.l.s4 1935823168
    %v2964 = vunpack.c.0.s8 %v2963
    %v2965 = vlaneseq
    %v2966 = vshrl.u32 %v2965, 7
    %v2967 = vsub.s32 %v2964, %v2966
    %v2968 = vrot.slane %v2960, %v2967
    %v2970 = vunpack.c.l.s4 1935823168
    %v2971 = vunpack.c.0.s8 %v2970
    %v2972 = vlaneseq
    %v2973 = vshrl.u32 %v2972, 7
    %v2974 = vsub.s32 %v2971, %v2973
    %v2975 = vrot.slane %v2961, %v2974
    %v2976 = vcombine.low %v2968, %v2975
    %v2978 = vunpack.c.l.s4 1935823168
    %v2979 = vunpack.c.0.s8 %v2978
    %v2980 = vlaneseq
    %v2981 = vshrl.u32 %v2980, 7
    %v2982 = vsub.s32 %v2979, %v2981
    %v2983 = vrot.slane %v2976, %v2982
    %v2984 = vcombine.low %v2656, %v2658
    %v2985 = vcombine.low %v2657, %v2659
    %v2987 = vunpack.c.l.s4 1935823168
    %v2988 = vunpack.c.0.s8 %v2987
    %v2989 = vlaneseq
    %v2990 = vshrl.u32 %v2989, 7
    %v2991 = vsub.s32 %v2988, %v2990
    %v2992 = vrot.slane %v2984, %v2991
    %v2994 = vunpack.c.l.s4 1935823168
    %v2995 = vunpack.c.0.s8 %v2994
    %v2996 = vlaneseq
    %v2997 = vshrl.u32 %v2996, 7
    %v2998 = vsub.s32 %v2995, %v2997
    %v2999 = vrot.slane %v2985, %v2998
    %v3000 = vcombine.low %v2992, %v2999
    %v3002 = vunpack.c.l.s4 1935823168
    %v3003 = vunpack.c.0.s8 %v3002
    %v3004 = vlaneseq
    %v3005 = vshrl.u32 %v3004, 7
    %v3006 = vsub.s32 %v3003, %v3005
    %v3007 = vrot.slane %v3000, %v3006
    %v3008 = vcombine.low %v2660, %v2662
    %v3009 = vcombine.low %v2661, %v2663
    %v3011 = vunpack.c.l.s4 1935823168
    %v3012 = vunpack.c.0.s8 %v3011
    %v3013 = vlaneseq
    %v3014 = vshrl.u32 %v3013, 7
    %v3015 = vsub.s32 %v3012, %v3014
    %v3016 = vrot.slane %v3008, %v3015
    %v3018 = vunpack.c.l.s4 1935823168
    %v3019 = vunpack.c.0.s8 %v3018
    %v3020 = vlaneseq
    %v3021 = vshrl.u32 %v3020, 7
    %v3022 = vsub.s32 %v3019, %v3021
    %v3023 = vrot.slane %v3009, %v3022
    %v3024 = vcombine.low %v3016, %v3023
    %v3026 = vunpack.c.l.s4 1935823168
    %v3027 = vunpack.c.0.s8 %v3026
    %v3028 = vlaneseq
    %v3029 = vshrl.u32 %v3028, 7
    %v3030 = vsub.s32 %v3027, %v3029
    %v3031 = vrot.slane %v3024, %v3030
    %v3032 = vcombine.low %v2664, %v2666
    %v3033 = vcombine.low %v2665, %v2667
    %v3035 = vunpack.c.l.s4 1935823168
    %v3036 = vunpack.c.0.s8 %v3035
    %v3037 = vlaneseq
    %v3038 = vshrl.u32 %v3037, 7
    %v3039 = vsub.s32 %v3036, %v3038
    %v3040 = vrot.slane %v3032, %v3039
    %v3042 = vunpack.c.l.s4 1935823168
    %v3043 = vunpack.c.0.s8 %v3042
    %v3044 = vlaneseq
    %v3045 = vshrl.u32 %v3044, 7
    %v3046 = vsub.s32 %v3043, %v3045
    %v3047 = vrot.slane %v3033, %v3046
    %v3048 = vcombine.low %v3040, %v3047
    %v3050 = vunpack.c.l.s4 1935823168
    %v3051 = vunpack.c.0.s8 %v3050
    %v3052 = vlaneseq
    %v3053 = vshrl.u32 %v3052, 7
    %v3054 = vsub.s32 %v3051, %v3053
    %v3055 = vrot.slane %v3048, %v3054
    %v3056 = vcombine.low %v2668, %v2670
    %v3057 = vcombine.low %v2669, %v2671
    %v3059 = vunpack.c.l.s4 1935823168
    %v3060 = vunpack.c.0.s8 %v3059
    %v3061 = vlaneseq
    %v3062 = vshrl.u32 %v3061, 7
    %v3063 = vsub.s32 %v3060, %v3062
    %v3064 = vrot.slane %v3056, %v3063
    %v3066 = vunpack.c.l.s4 1935823168
    %v3067 = vunpack.c.0.s8 %v3066
    %v3068 = vlaneseq
    %v3069 = vshrl.u32 %v3068, 7
    %v3070 = vsub.s32 %v3067, %v3069
    %v3071 = vrot.slane %v3057, %v3070
    %v3072 = vcombine.low %v3064, %v3071
    %v3074 = vunpack.c.l.s4 1935823168
    %v3075 = vunpack.c.0.s8 %v3074
    %v3076 = vlaneseq
    %v3077 = vshrl.u32 %v3076, 7
    %v3078 = vsub.s32 %v3075, %v3077
    %v3079 = vrot.slane %v3072, %v3078
    %v3080 = vcombine.low %v2672, %v2674
    %v3081 = vcombine.low %v2673, %v2675
    %v3083 = vunpack.c.l.s4 1935823168
    %v3084 = vunpack.c.0.s8 %v3083
    %v3085 = vlaneseq
    %v3086 = vshrl.u32 %v3085, 7
    %v3087 = vsub.s32 %v3084, %v3086
    %v3088 = vrot.slane %v3080, %v3087
    %v3090 = vunpack.c.l.s4 1935823168
    %v3091 = vunpack.c.0.s8 %v3090
    %v3092 = vlaneseq
    %v3093 = vshrl.u32 %v3092, 7
    %v3094 = vsub.s32 %v3091, %v3093
    %v3095 = vrot.slane %v3081, %v3094
    %v3096 = vcombine.low %v3088, %v3095
    %v3098 = vunpack.c.l.s4 1935823168
    %v3099 = vunpack.c.0.s8 %v3098
    %v3100 = vlaneseq
    %v3101 = vshrl.u32 %v3100, 7
    %v3102 = vsub.s32 %v3099, %v3101
    %v3103 = vrot.slane %v3096, %v3102
    %v3104 = vcombine.low %v2676, %v2678
    %v3105 = vcombine.low %v2677, %v2679
    %v3107 = vunpack.c.l.s4 1935823168
    %v3108 = vunpack.c.0.s8 %v3107
    %v3109 = vlaneseq
    %v3110 = vshrl.u32 %v3109, 7
    %v3111 = vsub.s32 %v3108, %v3110
    %v3112 = vrot.slane %v3104, %v3111
    %v3114 = vunpack.c.l.s4 1935823168
    %v3115 = vunpack.c.0.s8 %v3114
    %v3116 = vlaneseq
    %v3117 = vshrl.u32 %v3116, 7
    %v3118 = vsub.s32 %v3115, %v3117
    %v3119 = vrot.slane %v3105, %v3118
    %v3120 = vcombine.low %v3112, %v3119
    %v3122 = vunpack.c.l.s4 1935823168
    %v3123 = vunpack.c.0.s8 %v3122
    %v3124 = vlaneseq
    %v3125 = vshrl.u32 %v3124, 7
    %v3126 = vsub.s32 %v3123, %v3125
    %v3127 = vrot.slane %v3120, %v3126
    %3144 = vst [vmem:[#allocation3 + $0xc] sm:$0xf] %v2767
    %3145 = vst [vmem:[#allocation3 + $0x30] sm:$0xf] %v2791
    %3146 = vst [vmem:[#allocation3 + $0x54] sm:$0xf] %v2815
    %3147 = vst [vmem:[#allocation3 + $0x78] sm:$0xf] %v2839
    %3148 = vst [vmem:[#allocation3 + $0x9c] sm:$0xf] %v2863
    %3149 = vst [vmem:[#allocation3 + $0xc0] sm:$0xf] %v2887
    %3150 = vst [vmem:[#allocation3 + $0xe4] sm:$0xf] %v2911
    %3151 = vst [vmem:[#allocation3 + $0x108] sm:$0xf] %v2935
    %3152 = vst [vmem:[#allocation3 + $0x12c] sm:$0xf] %v2959
    %3153 = vst [vmem:[#allocation3 + $0x150] sm:$0xf] %v2983
    %3154 = vst [vmem:[#allocation3 + $0x174] sm:$0xf] %v3007
    %3155 = vst [vmem:[#allocation3 + $0x198] sm:$0xf] %v3031
    %3156 = vst [vmem:[#allocation3 + $0x1bc] sm:$0xf] %v3055
    %3157 = vst [vmem:[#allocation3 + $0x1e0] sm:$0xf] %v3079
    %3158 = vst [vmem:[#allocation3 + $0x204] sm:$0xf] %v3103
    %3159 = vst [vmem:[#allocation3 + $0x228] sm:$0xf] %v3127
    %v3160 = vunpack.c.l.b16 %v406
    %v3161 = vunpack.c.h.b16 %v406
    %v3162 = vunpack.c.l.b16 %v407
    %v3163 = vunpack.c.h.b16 %v407
    %v3164 = vunpack.c.l.b16 %v408
    %v3165 = vunpack.c.h.b16 %v408
    %v3166 = vunpack.c.l.b16 %v409
    %v3167 = vunpack.c.h.b16 %v409
    %v3168 = vunpack.c.l.b16 %v410
    %v3169 = vunpack.c.h.b16 %v410
    %v3170 = vunpack.c.l.b16 %v411
    %v3171 = vunpack.c.h.b16 %v411
    %v3172 = vunpack.c.l.b16 %v412
    %v3173 = vunpack.c.h.b16 %v412
    %v3174 = vunpack.c.l.b16 %v413
    %v3175 = vunpack.c.h.b16 %v413
    %v3176 = vpack.c.b16 %v3160, %v3160
    %v3177 = vpack.c.b16 %v3161, %v3161
    %v3178 = vpack.c.b16 %v3162, %v3162
    %v3179 = vpack.c.b16 %v3163, %v3163
    %v3180 = vpack.c.b16 %v3164, %v3164
    %v3181 = vpack.c.b16 %v3165, %v3165
    %v3182 = vpack.c.b16 %v3166, %v3166
    %v3183 = vpack.c.b16 %v3167, %v3167
    %v3184 = vpack.c.b16 %v3168, %v3168
    %v3185 = vpack.c.b16 %v3169, %v3169
    %v3186 = vpack.c.b16 %v3170, %v3170
    %v3187 = vpack.c.b16 %v3171, %v3171
    %v3188 = vpack.c.b16 %v3172, %v3172
    %v3189 = vpack.c.b16 %v3173, %v3173
    %v3190 = vpack.c.b16 %v3174, %v3174
    %v3191 = vpack.c.b16 %v3175, %v3175
    %3208 = vst [vmem:[#allocation3 + $0x10] sm:$0xf] %v3176
    %3209 = vst [vmem:[#allocation3 + $0x34] sm:$0xf] %v3177
    %3210 = vst [vmem:[#allocation3 + $0x58] sm:$0xf] %v3178
    %3211 = vst [vmem:[#allocation3 + $0x7c] sm:$0xf] %v3179
    %3212 = vst [vmem:[#allocation3 + $0xa0] sm:$0xf] %v3180
    %3213 = vst [vmem:[#allocation3 + $0xc4] sm:$0xf] %v3181
    %3214 = vst [vmem:[#allocation3 + $0xe8] sm:$0xf] %v3182
    %3215 = vst [vmem:[#allocation3 + $0x10c] sm:$0xf] %v3183
    %3216 = vst [vmem:[#allocation3 + $0x130] sm:$0xf] %v3184
    %3217 = vst [vmem:[#allocation3 + $0x154] sm:$0xf] %v3185
    %3218 = vst [vmem:[#allocation3 + $0x178] sm:$0xf] %v3186
    %3219 = vst [vmem:[#allocation3 + $0x19c] sm:$0xf] %v3187
    %3220 = vst [vmem:[#allocation3 + $0x1c0] sm:$0xf] %v3188
    %3221 = vst [vmem:[#allocation3 + $0x1e4] sm:$0xf] %v3189
    %3222 = vst [vmem:[#allocation3 + $0x208] sm:$0xf] %v3190
    %3223 = vst [vmem:[#allocation3 + $0x22c] sm:$0xf] %v3191
    %s3224 = scalar_lea.vmem [#allocation2], 12
    %v3225 = vld [vmem:[%s3224] sm:$0x1]
    %v3226 = vld [vmem:[%s3224 + $0x1] sm:$0x1]
    %v3227 = vld [vmem:[%s3224 + $0x2] sm:$0x1]
    %v3228 = vld [vmem:[%s3224 + $0x3] sm:$0x1]
    %v3229 = vld [vmem:[%s3224 + $0x4] sm:$0x1]
    %v3230 = vld [vmem:[%s3224 + $0x5] sm:$0x1]
    %v3231 = vld [vmem:[%s3224 + $0x6] sm:$0x1]
    %v3232 = vld [vmem:[%s3224 + $0x7] sm:$0x1]
    %v3233 = vld [vmem:[%s3224 + $0xa] sm:$0x1]
    %v3234 = vld [vmem:[%s3224 + $0xb] sm:$0x1]
    %v3235 = vld [vmem:[%s3224 + $0xc] sm:$0x1]
    %v3236 = vld [vmem:[%s3224 + $0xd] sm:$0x1]
    %v3237 = vld [vmem:[%s3224 + $0xe] sm:$0x1]
    %v3238 = vld [vmem:[%s3224 + $0xf] sm:$0x1]
    %v3239 = vld [vmem:[%s3224 + $0x10] sm:$0x1]
    %v3240 = vld [vmem:[%s3224 + $0x11] sm:$0x1]
    %v3241 = vld [vmem:[%s3224 + $0x14] sm:$0x1]
    %v3242 = vld [vmem:[%s3224 + $0x15] sm:$0x1]
    %v3243 = vld [vmem:[%s3224 + $0x16] sm:$0x1]
    %v3244 = vld [vmem:[%s3224 + $0x17] sm:$0x1]
    %v3245 = vld [vmem:[%s3224 + $0x18] sm:$0x1]
    %v3246 = vld [vmem:[%s3224 + $0x19] sm:$0x1]
    %v3247 = vld [vmem:[%s3224 + $0x1a] sm:$0x1]
    %v3248 = vld [vmem:[%s3224 + $0x1b] sm:$0x1]
    %v3249 = vld [vmem:[%s3224 + $0x1e] sm:$0x1]
    %v3250 = vld [vmem:[%s3224 + $0x1f] sm:$0x1]
    %v3251 = vld [vmem:[%s3224 + $0x20] sm:$0x1]
    %v3252 = vld [vmem:[%s3224 + $0x21] sm:$0x1]
    %v3253 = vld [vmem:[%s3224 + $0x22] sm:$0x1]
    %v3254 = vld [vmem:[%s3224 + $0x23] sm:$0x1]
    %v3255 = vld [vmem:[%s3224 + $0x24] sm:$0x1]
    %v3256 = vld [vmem:[%s3224 + $0x25] sm:$0x1]
    %v3257 = vld [vmem:[%s3224 + $0x28] sm:$0x1]
    %v3258 = vld [vmem:[%s3224 + $0x29] sm:$0x1]
    %v3259 = vld [vmem:[%s3224 + $0x2a] sm:$0x1]
    %v3260 = vld [vmem:[%s3224 + $0x2b] sm:$0x1]
    %v3261 = vld [vmem:[%s3224 + $0x2c] sm:$0x1]
    %v3262 = vld [vmem:[%s3224 + $0x2d] sm:$0x1]
    %v3263 = vld [vmem:[%s3224 + $0x2e] sm:$0x1]
    %v3264 = vld [vmem:[%s3224 + $0x2f] sm:$0x1]
    %v3265 = vld [vmem:[%s3224 + $0x32] sm:$0x1]
    %v3266 = vld [vmem:[%s3224 + $0x33] sm:$0x1]
    %v3267 = vld [vmem:[%s3224 + $0x34] sm:$0x1]
    %v3268 = vld [vmem:[%s3224 + $0x35] sm:$0x1]
    %v3269 = vld [vmem:[%s3224 + $0x36] sm:$0x1]
    %v3270 = vld [vmem:[%s3224 + $0x37] sm:$0x1]
    %v3271 = vld [vmem:[%s3224 + $0x38] sm:$0x1]
    %v3272 = vld [vmem:[%s3224 + $0x39] sm:$0x1]
    %v3273 = vld [vmem:[%s3224 + $0x3c] sm:$0x1]
    %v3274 = vld [vmem:[%s3224 + $0x3d] sm:$0x1]
    %v3275 = vld [vmem:[%s3224 + $0x3e] sm:$0x1]
    %v3276 = vld [vmem:[%s3224 + $0x3f] sm:$0x1]
    %v3277 = vld [vmem:[%s3224 + $0x40] sm:$0x1]
    %v3278 = vld [vmem:[%s3224 + $0x41] sm:$0x1]
    %v3279 = vld [vmem:[%s3224 + $0x42] sm:$0x1]
    %v3280 = vld [vmem:[%s3224 + $0x43] sm:$0x1]
    %v3281 = vld [vmem:[%s3224 + $0x46] sm:$0x1]
    %v3282 = vld [vmem:[%s3224 + $0x47] sm:$0x1]
    %v3283 = vld [vmem:[%s3224 + $0x48] sm:$0x1]
    %v3284 = vld [vmem:[%s3224 + $0x49] sm:$0x1]
    %v3285 = vld [vmem:[%s3224 + $0x4a] sm:$0x1]
    %v3286 = vld [vmem:[%s3224 + $0x4b] sm:$0x1]
    %v3287 = vld [vmem:[%s3224 + $0x4c] sm:$0x1]
    %v3288 = vld [vmem:[%s3224 + $0x4d] sm:$0x1]
    %v3353 = vcombine.low %v3225, %v3227
    %v3354 = vcombine.low %v3226, %v3228
    %v3356 = vunpack.c.l.s4 1935823168
    %v3357 = vunpack.c.0.s8 %v3356
    %v3358 = vlaneseq
    %v3359 = vshrl.u32 %v3358, 7
    %v3360 = vsub.s32 %v3357, %v3359
    %v3361 = vrot.slane %v3353, %v3360
    %v3363 = vunpack.c.l.s4 1935823168
    %v3364 = vunpack.c.0.s8 %v3363
    %v3365 = vlaneseq
    %v3366 = vshrl.u32 %v3365, 7
    %v3367 = vsub.s32 %v3364, %v3366
    %v3368 = vrot.slane %v3354, %v3367
    %v3369 = vcombine.low %v3361, %v3368
    %v3371 = vunpack.c.l.s4 1935823168
    %v3372 = vunpack.c.0.s8 %v3371
    %v3373 = vlaneseq
    %v3374 = vshrl.u32 %v3373, 7
    %v3375 = vsub.s32 %v3372, %v3374
    %v3376 = vrot.slane %v3369, %v3375
    %v3377 = vcombine.low %v3229, %v3231
    %v3378 = vcombine.low %v3230, %v3232
    %v3380 = vunpack.c.l.s4 1935823168
    %v3381 = vunpack.c.0.s8 %v3380
    %v3382 = vlaneseq
    %v3383 = vshrl.u32 %v3382, 7
    %v3384 = vsub.s32 %v3381, %v3383
    %v3385 = vrot.slane %v3377, %v3384
    %v3387 = vunpack.c.l.s4 1935823168
    %v3388 = vunpack.c.0.s8 %v3387
    %v3389 = vlaneseq
    %v3390 = vshrl.u32 %v3389, 7
    %v3391 = vsub.s32 %v3388, %v3390
    %v3392 = vrot.slane %v3378, %v3391
    %v3393 = vcombine.low %v3385, %v3392
    %v3395 = vunpack.c.l.s4 1935823168
    %v3396 = vunpack.c.0.s8 %v3395
    %v3397 = vlaneseq
    %v3398 = vshrl.u32 %v3397, 7
    %v3399 = vsub.s32 %v3396, %v3398
    %v3400 = vrot.slane %v3393, %v3399
    %v3401 = vcombine.low %v3233, %v3235
    %v3402 = vcombine.low %v3234, %v3236
    %v3404 = vunpack.c.l.s4 1935823168
    %v3405 = vunpack.c.0.s8 %v3404
    %v3406 = vlaneseq
    %v3407 = vshrl.u32 %v3406, 7
    %v3408 = vsub.s32 %v3405, %v3407
    %v3409 = vrot.slane %v3401, %v3408
    %v3411 = vunpack.c.l.s4 1935823168
    %v3412 = vunpack.c.0.s8 %v3411
    %v3413 = vlaneseq
    %v3414 = vshrl.u32 %v3413, 7
    %v3415 = vsub.s32 %v3412, %v3414
    %v3416 = vrot.slane %v3402, %v3415
    %v3417 = vcombine.low %v3409, %v3416
    %v3419 = vunpack.c.l.s4 1935823168
    %v3420 = vunpack.c.0.s8 %v3419
    %v3421 = vlaneseq
    %v3422 = vshrl.u32 %v3421, 7
    %v3423 = vsub.s32 %v3420, %v3422
    %v3424 = vrot.slane %v3417, %v3423
    %v3425 = vcombine.low %v3237, %v3239
    %v3426 = vcombine.low %v3238, %v3240
    %v3428 = vunpack.c.l.s4 1935823168
    %v3429 = vunpack.c.0.s8 %v3428
    %v3430 = vlaneseq
    %v3431 = vshrl.u32 %v3430, 7
    %v3432 = vsub.s32 %v3429, %v3431
    %v3433 = vrot.slane %v3425, %v3432
    %v3435 = vunpack.c.l.s4 1935823168
    %v3436 = vunpack.c.0.s8 %v3435
    %v3437 = vlaneseq
    %v3438 = vshrl.u32 %v3437, 7
    %v3439 = vsub.s32 %v3436, %v3438
    %v3440 = vrot.slane %v3426, %v3439
    %v3441 = vcombine.low %v3433, %v3440
    %v3443 = vunpack.c.l.s4 1935823168
    %v3444 = vunpack.c.0.s8 %v3443
    %v3445 = vlaneseq
    %v3446 = vshrl.u32 %v3445, 7
    %v3447 = vsub.s32 %v3444, %v3446
    %v3448 = vrot.slane %v3441, %v3447
    %v3449 = vcombine.low %v3241, %v3243
    %v3450 = vcombine.low %v3242, %v3244
    %v3452 = vunpack.c.l.s4 1935823168
    %v3453 = vunpack.c.0.s8 %v3452
    %v3454 = vlaneseq
    %v3455 = vshrl.u32 %v3454, 7
    %v3456 = vsub.s32 %v3453, %v3455
    %v3457 = vrot.slane %v3449, %v3456
    %v3459 = vunpack.c.l.s4 1935823168
    %v3460 = vunpack.c.0.s8 %v3459
    %v3461 = vlaneseq
    %v3462 = vshrl.u32 %v3461, 7
    %v3463 = vsub.s32 %v3460, %v3462
    %v3464 = vrot.slane %v3450, %v3463
    %v3465 = vcombine.low %v3457, %v3464
    %v3467 = vunpack.c.l.s4 1935823168
    %v3468 = vunpack.c.0.s8 %v3467
    %v3469 = vlaneseq
    %v3470 = vshrl.u32 %v3469, 7
    %v3471 = vsub.s32 %v3468, %v3470
    %v3472 = vrot.slane %v3465, %v3471
    %v3473 = vcombine.low %v3245, %v3247
    %v3474 = vcombine.low %v3246, %v3248
    %v3476 = vunpack.c.l.s4 1935823168
    %v3477 = vunpack.c.0.s8 %v3476
    %v3478 = vlaneseq
    %v3479 = vshrl.u32 %v3478, 7
    %v3480 = vsub.s32 %v3477, %v3479
    %v3481 = vrot.slane %v3473, %v3480
    %v3483 = vunpack.c.l.s4 1935823168
    %v3484 = vunpack.c.0.s8 %v3483
    %v3485 = vlaneseq
    %v3486 = vshrl.u32 %v3485, 7
    %v3487 = vsub.s32 %v3484, %v3486
    %v3488 = vrot.slane %v3474, %v3487
    %v3489 = vcombine.low %v3481, %v3488
    %v3491 = vunpack.c.l.s4 1935823168
    %v3492 = vunpack.c.0.s8 %v3491
    %v3493 = vlaneseq
    %v3494 = vshrl.u32 %v3493, 7
    %v3495 = vsub.s32 %v3492, %v3494
    %v3496 = vrot.slane %v3489, %v3495
    %v3497 = vcombine.low %v3249, %v3251
    %v3498 = vcombine.low %v3250, %v3252
    %v3500 = vunpack.c.l.s4 1935823168
    %v3501 = vunpack.c.0.s8 %v3500
    %v3502 = vlaneseq
    %v3503 = vshrl.u32 %v3502, 7
    %v3504 = vsub.s32 %v3501, %v3503
    %v3505 = vrot.slane %v3497, %v3504
    %v3507 = vunpack.c.l.s4 1935823168
    %v3508 = vunpack.c.0.s8 %v3507
    %v3509 = vlaneseq
    %v3510 = vshrl.u32 %v3509, 7
    %v3511 = vsub.s32 %v3508, %v3510
    %v3512 = vrot.slane %v3498, %v3511
    %v3513 = vcombine.low %v3505, %v3512
    %v3515 = vunpack.c.l.s4 1935823168
    %v3516 = vunpack.c.0.s8 %v3515
    %v3517 = vlaneseq
    %v3518 = vshrl.u32 %v3517, 7
    %v3519 = vsub.s32 %v3516, %v3518
    %v3520 = vrot.slane %v3513, %v3519
    %v3521 = vcombine.low %v3253, %v3255
    %v3522 = vcombine.low %v3254, %v3256
    %v3524 = vunpack.c.l.s4 1935823168
    %v3525 = vunpack.c.0.s8 %v3524
    %v3526 = vlaneseq
    %v3527 = vshrl.u32 %v3526, 7
    %v3528 = vsub.s32 %v3525, %v3527
    %v3529 = vrot.slane %v3521, %v3528
    %v3531 = vunpack.c.l.s4 1935823168
    %v3532 = vunpack.c.0.s8 %v3531
    %v3533 = vlaneseq
    %v3534 = vshrl.u32 %v3533, 7
    %v3535 = vsub.s32 %v3532, %v3534
    %v3536 = vrot.slane %v3522, %v3535
    %v3537 = vcombine.low %v3529, %v3536
    %v3539 = vunpack.c.l.s4 1935823168
    %v3540 = vunpack.c.0.s8 %v3539
    %v3541 = vlaneseq
    %v3542 = vshrl.u32 %v3541, 7
    %v3543 = vsub.s32 %v3540, %v3542
    %v3544 = vrot.slane %v3537, %v3543
    %v3545 = vcombine.low %v3257, %v3259
    %v3546 = vcombine.low %v3258, %v3260
    %v3548 = vunpack.c.l.s4 1935823168
    %v3549 = vunpack.c.0.s8 %v3548
    %v3550 = vlaneseq
    %v3551 = vshrl.u32 %v3550, 7
    %v3552 = vsub.s32 %v3549, %v3551
    %v3553 = vrot.slane %v3545, %v3552
    %v3555 = vunpack.c.l.s4 1935823168
    %v3556 = vunpack.c.0.s8 %v3555
    %v3557 = vlaneseq
    %v3558 = vshrl.u32 %v3557, 7
    %v3559 = vsub.s32 %v3556, %v3558
    %v3560 = vrot.slane %v3546, %v3559
    %v3561 = vcombine.low %v3553, %v3560
    %v3563 = vunpack.c.l.s4 1935823168
    %v3564 = vunpack.c.0.s8 %v3563
    %v3565 = vlaneseq
    %v3566 = vshrl.u32 %v3565, 7
    %v3567 = vsub.s32 %v3564, %v3566
    %v3568 = vrot.slane %v3561, %v3567
    %v3569 = vcombine.low %v3261, %v3263
    %v3570 = vcombine.low %v3262, %v3264
    %v3572 = vunpack.c.l.s4 1935823168
    %v3573 = vunpack.c.0.s8 %v3572
    %v3574 = vlaneseq
    %v3575 = vshrl.u32 %v3574, 7
    %v3576 = vsub.s32 %v3573, %v3575
    %v3577 = vrot.slane %v3569, %v3576
    %v3579 = vunpack.c.l.s4 1935823168
    %v3580 = vunpack.c.0.s8 %v3579
    %v3581 = vlaneseq
    %v3582 = vshrl.u32 %v3581, 7
    %v3583 = vsub.s32 %v3580, %v3582
    %v3584 = vrot.slane %v3570, %v3583
    %v3585 = vcombine.low %v3577, %v3584
    %v3587 = vunpack.c.l.s4 1935823168
    %v3588 = vunpack.c.0.s8 %v3587
    %v3589 = vlaneseq
    %v3590 = vshrl.u32 %v3589, 7
    %v3591 = vsub.s32 %v3588, %v3590
    %v3592 = vrot.slane %v3585, %v3591
    %v3593 = vcombine.low %v3265, %v3267
    %v3594 = vcombine.low %v3266, %v3268
    %v3596 = vunpack.c.l.s4 1935823168
    %v3597 = vunpack.c.0.s8 %v3596
    %v3598 = vlaneseq
    %v3599 = vshrl.u32 %v3598, 7
    %v3600 = vsub.s32 %v3597, %v3599
    %v3601 = vrot.slane %v3593, %v3600
    %v3603 = vunpack.c.l.s4 1935823168
    %v3604 = vunpack.c.0.s8 %v3603
    %v3605 = vlaneseq
    %v3606 = vshrl.u32 %v3605, 7
    %v3607 = vsub.s32 %v3604, %v3606
    %v3608 = vrot.slane %v3594, %v3607
    %v3609 = vcombine.low %v3601, %v3608
    %v3611 = vunpack.c.l.s4 1935823168
    %v3612 = vunpack.c.0.s8 %v3611
    %v3613 = vlaneseq
    %v3614 = vshrl.u32 %v3613, 7
    %v3615 = vsub.s32 %v3612, %v3614
    %v3616 = vrot.slane %v3609, %v3615
    %v3617 = vcombine.low %v3269, %v3271
    %v3618 = vcombine.low %v3270, %v3272
    %v3620 = vunpack.c.l.s4 1935823168
    %v3621 = vunpack.c.0.s8 %v3620
    %v3622 = vlaneseq
    %v3623 = vshrl.u32 %v3622, 7
    %v3624 = vsub.s32 %v3621, %v3623
    %v3625 = vrot.slane %v3617, %v3624
    %v3627 = vunpack.c.l.s4 1935823168
    %v3628 = vunpack.c.0.s8 %v3627
    %v3629 = vlaneseq
    %v3630 = vshrl.u32 %v3629, 7
    %v3631 = vsub.s32 %v3628, %v3630
    %v3632 = vrot.slane %v3618, %v3631
    %v3633 = vcombine.low %v3625, %v3632
    %v3635 = vunpack.c.l.s4 1935823168
    %v3636 = vunpack.c.0.s8 %v3635
    %v3637 = vlaneseq
    %v3638 = vshrl.u32 %v3637, 7
    %v3639 = vsub.s32 %v3636, %v3638
    %v3640 = vrot.slane %v3633, %v3639
    %v3641 = vcombine.low %v3273, %v3275
    %v3642 = vcombine.low %v3274, %v3276
    %v3644 = vunpack.c.l.s4 1935823168
    %v3645 = vunpack.c.0.s8 %v3644
    %v3646 = vlaneseq
    %v3647 = vshrl.u32 %v3646, 7
    %v3648 = vsub.s32 %v3645, %v3647
    %v3649 = vrot.slane %v3641, %v3648
    %v3651 = vunpack.c.l.s4 1935823168
    %v3652 = vunpack.c.0.s8 %v3651
    %v3653 = vlaneseq
    %v3654 = vshrl.u32 %v3653, 7
    %v3655 = vsub.s32 %v3652, %v3654
    %v3656 = vrot.slane %v3642, %v3655
    %v3657 = vcombine.low %v3649, %v3656
    %v3659 = vunpack.c.l.s4 1935823168
    %v3660 = vunpack.c.0.s8 %v3659
    %v3661 = vlaneseq
    %v3662 = vshrl.u32 %v3661, 7
    %v3663 = vsub.s32 %v3660, %v3662
    %v3664 = vrot.slane %v3657, %v3663
    %v3665 = vcombine.low %v3277, %v3279
    %v3666 = vcombine.low %v3278, %v3280
    %v3668 = vunpack.c.l.s4 1935823168
    %v3669 = vunpack.c.0.s8 %v3668
    %v3670 = vlaneseq
    %v3671 = vshrl.u32 %v3670, 7
    %v3672 = vsub.s32 %v3669, %v3671
    %v3673 = vrot.slane %v3665, %v3672
    %v3675 = vunpack.c.l.s4 1935823168
    %v3676 = vunpack.c.0.s8 %v3675
    %v3677 = vlaneseq
    %v3678 = vshrl.u32 %v3677, 7
    %v3679 = vsub.s32 %v3676, %v3678
    %v3680 = vrot.slane %v3666, %v3679
    %v3681 = vcombine.low %v3673, %v3680
    %v3683 = vunpack.c.l.s4 1935823168
    %v3684 = vunpack.c.0.s8 %v3683
    %v3685 = vlaneseq
    %v3686 = vshrl.u32 %v3685, 7
    %v3687 = vsub.s32 %v3684, %v3686
    %v3688 = vrot.slane %v3681, %v3687
    %v3689 = vcombine.low %v3281, %v3283
    %v3690 = vcombine.low %v3282, %v3284
    %v3692 = vunpack.c.l.s4 1935823168
    %v3693 = vunpack.c.0.s8 %v3692
    %v3694 = vlaneseq
    %v3695 = vshrl.u32 %v3694, 7
    %v3696 = vsub.s32 %v3693, %v3695
    %v3697 = vrot.slane %v3689, %v3696
    %v3699 = vunpack.c.l.s4 1935823168
    %v3700 = vunpack.c.0.s8 %v3699
    %v3701 = vlaneseq
    %v3702 = vshrl.u32 %v3701, 7
    %v3703 = vsub.s32 %v3700, %v3702
    %v3704 = vrot.slane %v3690, %v3703
    %v3705 = vcombine.low %v3697, %v3704
    %v3707 = vunpack.c.l.s4 1935823168
    %v3708 = vunpack.c.0.s8 %v3707
    %v3709 = vlaneseq
    %v3710 = vshrl.u32 %v3709, 7
    %v3711 = vsub.s32 %v3708, %v3710
    %v3712 = vrot.slane %v3705, %v3711
    %v3713 = vcombine.low %v3285, %v3287
    %v3714 = vcombine.low %v3286, %v3288
    %v3716 = vunpack.c.l.s4 1935823168
    %v3717 = vunpack.c.0.s8 %v3716
    %v3718 = vlaneseq
    %v3719 = vshrl.u32 %v3718, 7
    %v3720 = vsub.s32 %v3717, %v3719
    %v3721 = vrot.slane %v3713, %v3720
    %v3723 = vunpack.c.l.s4 1935823168
    %v3724 = vunpack.c.0.s8 %v3723
    %v3725 = vlaneseq
    %v3726 = vshrl.u32 %v3725, 7
    %v3727 = vsub.s32 %v3724, %v3726
    %v3728 = vrot.slane %v3714, %v3727
    %v3729 = vcombine.low %v3721, %v3728
    %v3731 = vunpack.c.l.s4 1935823168
    %v3732 = vunpack.c.0.s8 %v3731
    %v3733 = vlaneseq
    %v3734 = vshrl.u32 %v3733, 7
    %v3735 = vsub.s32 %v3732, %v3734
    %v3736 = vrot.slane %v3729, %v3735
    %3753 = vst [vmem:[#allocation3 + $0x14] sm:$0xf] %v3376
    %3754 = vst [vmem:[#allocation3 + $0x38] sm:$0xf] %v3400
    %3755 = vst [vmem:[#allocation3 + $0x5c] sm:$0xf] %v3424
    %3756 = vst [vmem:[#allocation3 + $0x80] sm:$0xf] %v3448
    %3757 = vst [vmem:[#allocation3 + $0xa4] sm:$0xf] %v3472
    %3758 = vst [vmem:[#allocation3 + $0xc8] sm:$0xf] %v3496
    %3759 = vst [vmem:[#allocation3 + $0xec] sm:$0xf] %v3520
    %3760 = vst [vmem:[#allocation3 + $0x110] sm:$0xf] %v3544
    %3761 = vst [vmem:[#allocation3 + $0x134] sm:$0xf] %v3568
    %3762 = vst [vmem:[#allocation3 + $0x158] sm:$0xf] %v3592
    %3763 = vst [vmem:[#allocation3 + $0x17c] sm:$0xf] %v3616
    %3764 = vst [vmem:[#allocation3 + $0x1a0] sm:$0xf] %v3640
    %3765 = vst [vmem:[#allocation3 + $0x1c4] sm:$0xf] %v3664
    %3766 = vst [vmem:[#allocation3 + $0x1e8] sm:$0xf] %v3688
    %3767 = vst [vmem:[#allocation3 + $0x20c] sm:$0xf] %v3712
    %3768 = vst [vmem:[#allocation3 + $0x230] sm:$0xf] %v3736
    %s3769 = scalar_lea.vmem [#allocation2], 20
    %v3770 = vld [vmem:[%s3769] sm:$0x1]
    %v3771 = vld [vmem:[%s3769 + $0x1] sm:$0x1]
    %v3772 = vld [vmem:[%s3769 + $0x2] sm:$0x1]
    %v3773 = vld [vmem:[%s3769 + $0x3] sm:$0x1]
    %v3774 = vld [vmem:[%s3769 + $0x4] sm:$0x1]
    %v3775 = vld [vmem:[%s3769 + $0x5] sm:$0x1]
    %v3776 = vld [vmem:[%s3769 + $0x6] sm:$0x1]
    %v3777 = vld [vmem:[%s3769 + $0x7] sm:$0x1]
    %v3778 = vld [vmem:[%s3769 + $0xa] sm:$0x1]
    %v3779 = vld [vmem:[%s3769 + $0xb] sm:$0x1]
    %v3780 = vld [vmem:[%s3769 + $0xc] sm:$0x1]
    %v3781 = vld [vmem:[%s3769 + $0xd] sm:$0x1]
    %v3782 = vld [vmem:[%s3769 + $0xe] sm:$0x1]
    %v3783 = vld [vmem:[%s3769 + $0xf] sm:$0x1]
    %v3784 = vld [vmem:[%s3769 + $0x10] sm:$0x1]
    %v3785 = vld [vmem:[%s3769 + $0x11] sm:$0x1]
    %v3786 = vld [vmem:[%s3769 + $0x14] sm:$0x1]
    %v3787 = vld [vmem:[%s3769 + $0x15] sm:$0x1]
    %v3788 = vld [vmem:[%s3769 + $0x16] sm:$0x1]
    %v3789 = vld [vmem:[%s3769 + $0x17] sm:$0x1]
    %v3790 = vld [vmem:[%s3769 + $0x18] sm:$0x1]
    %v3791 = vld [vmem:[%s3769 + $0x19] sm:$0x1]
    %v3792 = vld [vmem:[%s3769 + $0x1a] sm:$0x1]
    %v3793 = vld [vmem:[%s3769 + $0x1b] sm:$0x1]
    %v3794 = vld [vmem:[%s3769 + $0x1e] sm:$0x1]
    %v3795 = vld [vmem:[%s3769 + $0x1f] sm:$0x1]
    %v3796 = vld [vmem:[%s3769 + $0x20] sm:$0x1]
    %v3797 = vld [vmem:[%s3769 + $0x21] sm:$0x1]
    %v3798 = vld [vmem:[%s3769 + $0x22] sm:$0x1]
    %v3799 = vld [vmem:[%s3769 + $0x23] sm:$0x1]
    %v3800 = vld [vmem:[%s3769 + $0x24] sm:$0x1]
    %v3801 = vld [vmem:[%s3769 + $0x25] sm:$0x1]
    %v3802 = vld [vmem:[%s3769 + $0x28] sm:$0x1]
    %v3803 = vld [vmem:[%s3769 + $0x29] sm:$0x1]
    %v3804 = vld [vmem:[%s3769 + $0x2a] sm:$0x1]
    %v3805 = vld [vmem:[%s3769 + $0x2b] sm:$0x1]
    %v3806 = vld [vmem:[%s3769 + $0x2c] sm:$0x1]
    %v3807 = vld [vmem:[%s3769 + $0x2d] sm:$0x1]
    %v3808 = vld [vmem:[%s3769 + $0x2e] sm:$0x1]
    %v3809 = vld [vmem:[%s3769 + $0x2f] sm:$0x1]
    %v3810 = vld [vmem:[%s3769 + $0x32] sm:$0x1]
    %v3811 = vld [vmem:[%s3769 + $0x33] sm:$0x1]
    %v3812 = vld [vmem:[%s3769 + $0x34] sm:$0x1]
    %v3813 = vld [vmem:[%s3769 + $0x35] sm:$0x1]
    %v3814 = vld [vmem:[%s3769 + $0x36] sm:$0x1]
    %v3815 = vld [vmem:[%s3769 + $0x37] sm:$0x1]
    %v3816 = vld [vmem:[%s3769 + $0x38] sm:$0x1]
    %v3817 = vld [vmem:[%s3769 + $0x39] sm:$0x1]
    %v3818 = vld [vmem:[%s3769 + $0x3c] sm:$0x1]
    %v3819 = vld [vmem:[%s3769 + $0x3d] sm:$0x1]
    %v3820 = vld [vmem:[%s3769 + $0x3e] sm:$0x1]
    %v3821 = vld [vmem:[%s3769 + $0x3f] sm:$0x1]
    %v3822 = vld [vmem:[%s3769 + $0x40] sm:$0x1]
    %v3823 = vld [vmem:[%s3769 + $0x41] sm:$0x1]
    %v3824 = vld [vmem:[%s3769 + $0x42] sm:$0x1]
    %v3825 = vld [vmem:[%s3769 + $0x43] sm:$0x1]
    %v3826 = vld [vmem:[%s3769 + $0x46] sm:$0x1]
    %v3827 = vld [vmem:[%s3769 + $0x47] sm:$0x1]
    %v3828 = vld [vmem:[%s3769 + $0x48] sm:$0x1]
    %v3829 = vld [vmem:[%s3769 + $0x49] sm:$0x1]
    %v3830 = vld [vmem:[%s3769 + $0x4a] sm:$0x1]
    %v3831 = vld [vmem:[%s3769 + $0x4b] sm:$0x1]
    %v3832 = vld [vmem:[%s3769 + $0x4c] sm:$0x1]
    %v3833 = vld [vmem:[%s3769 + $0x4d] sm:$0x1]
    %v3898 = vcombine.low %v3770, %v3772
    %v3899 = vcombine.low %v3771, %v3773
    %v3901 = vunpack.c.l.s4 1935823168
    %v3902 = vunpack.c.0.s8 %v3901
    %v3903 = vlaneseq
    %v3904 = vshrl.u32 %v3903, 7
    %v3905 = vsub.s32 %v3902, %v3904
    %v3906 = vrot.slane %v3898, %v3905
    %v3908 = vunpack.c.l.s4 1935823168
    %v3909 = vunpack.c.0.s8 %v3908
    %v3910 = vlaneseq
    %v3911 = vshrl.u32 %v3910, 7
    %v3912 = vsub.s32 %v3909, %v3911
    %v3913 = vrot.slane %v3899, %v3912
    %v3914 = vcombine.low %v3906, %v3913
    %v3916 = vunpack.c.l.s4 1935823168
    %v3917 = vunpack.c.0.s8 %v3916
    %v3918 = vlaneseq
    %v3919 = vshrl.u32 %v3918, 7
    %v3920 = vsub.s32 %v3917, %v3919
    %v3921 = vrot.slane %v3914, %v3920
    %v3922 = vcombine.low %v3774, %v3776
    %v3923 = vcombine.low %v3775, %v3777
    %v3925 = vunpack.c.l.s4 1935823168
    %v3926 = vunpack.c.0.s8 %v3925
    %v3927 = vlaneseq
    %v3928 = vshrl.u32 %v3927, 7
    %v3929 = vsub.s32 %v3926, %v3928
    %v3930 = vrot.slane %v3922, %v3929
    %v3932 = vunpack.c.l.s4 1935823168
    %v3933 = vunpack.c.0.s8 %v3932
    %v3934 = vlaneseq
    %v3935 = vshrl.u32 %v3934, 7
    %v3936 = vsub.s32 %v3933, %v3935
    %v3937 = vrot.slane %v3923, %v3936
    %v3938 = vcombine.low %v3930, %v3937
    %v3940 = vunpack.c.l.s4 1935823168
    %v3941 = vunpack.c.0.s8 %v3940
    %v3942 = vlaneseq
    %v3943 = vshrl.u32 %v3942, 7
    %v3944 = vsub.s32 %v3941, %v3943
    %v3945 = vrot.slane %v3938, %v3944
    %v3946 = vcombine.low %v3778, %v3780
    %v3947 = vcombine.low %v3779, %v3781
    %v3949 = vunpack.c.l.s4 1935823168
    %v3950 = vunpack.c.0.s8 %v3949
    %v3951 = vlaneseq
    %v3952 = vshrl.u32 %v3951, 7
    %v3953 = vsub.s32 %v3950, %v3952
    %v3954 = vrot.slane %v3946, %v3953
    %v3956 = vunpack.c.l.s4 1935823168
    %v3957 = vunpack.c.0.s8 %v3956
    %v3958 = vlaneseq
    %v3959 = vshrl.u32 %v3958, 7
    %v3960 = vsub.s32 %v3957, %v3959
    %v3961 = vrot.slane %v3947, %v3960
    %v3962 = vcombine.low %v3954, %v3961
    %v3964 = vunpack.c.l.s4 1935823168
    %v3965 = vunpack.c.0.s8 %v3964
    %v3966 = vlaneseq
    %v3967 = vshrl.u32 %v3966, 7
    %v3968 = vsub.s32 %v3965, %v3967
    %v3969 = vrot.slane %v3962, %v3968
    %v3970 = vcombine.low %v3782, %v3784
    %v3971 = vcombine.low %v3783, %v3785
    %v3973 = vunpack.c.l.s4 1935823168
    %v3974 = vunpack.c.0.s8 %v3973
    %v3975 = vlaneseq
    %v3976 = vshrl.u32 %v3975, 7
    %v3977 = vsub.s32 %v3974, %v3976
    %v3978 = vrot.slane %v3970, %v3977
    %v3980 = vunpack.c.l.s4 1935823168
    %v3981 = vunpack.c.0.s8 %v3980
    %v3982 = vlaneseq
    %v3983 = vshrl.u32 %v3982, 7
    %v3984 = vsub.s32 %v3981, %v3983
    %v3985 = vrot.slane %v3971, %v3984
    %v3986 = vcombine.low %v3978, %v3985
    %v3988 = vunpack.c.l.s4 1935823168
    %v3989 = vunpack.c.0.s8 %v3988
    %v3990 = vlaneseq
    %v3991 = vshrl.u32 %v3990, 7
    %v3992 = vsub.s32 %v3989, %v3991
    %v3993 = vrot.slane %v3986, %v3992
    %v3994 = vcombine.low %v3786, %v3788
    %v3995 = vcombine.low %v3787, %v3789
    %v3997 = vunpack.c.l.s4 1935823168
    %v3998 = vunpack.c.0.s8 %v3997
    %v3999 = vlaneseq
    %v4000 = vshrl.u32 %v3999, 7
    %v4001 = vsub.s32 %v3998, %v4000
    %v4002 = vrot.slane %v3994, %v4001
    %v4004 = vunpack.c.l.s4 1935823168
    %v4005 = vunpack.c.0.s8 %v4004
    %v4006 = vlaneseq
    %v4007 = vshrl.u32 %v4006, 7
    %v4008 = vsub.s32 %v4005, %v4007
    %v4009 = vrot.slane %v3995, %v4008
    %v4010 = vcombine.low %v4002, %v4009
    %v4012 = vunpack.c.l.s4 1935823168
    %v4013 = vunpack.c.0.s8 %v4012
    %v4014 = vlaneseq
    %v4015 = vshrl.u32 %v4014, 7
    %v4016 = vsub.s32 %v4013, %v4015
    %v4017 = vrot.slane %v4010, %v4016
    %v4018 = vcombine.low %v3790, %v3792
    %v4019 = vcombine.low %v3791, %v3793
    %v4021 = vunpack.c.l.s4 1935823168
    %v4022 = vunpack.c.0.s8 %v4021
    %v4023 = vlaneseq
    %v4024 = vshrl.u32 %v4023, 7
    %v4025 = vsub.s32 %v4022, %v4024
    %v4026 = vrot.slane %v4018, %v4025
    %v4028 = vunpack.c.l.s4 1935823168
    %v4029 = vunpack.c.0.s8 %v4028
    %v4030 = vlaneseq
    %v4031 = vshrl.u32 %v4030, 7
    %v4032 = vsub.s32 %v4029, %v4031
    %v4033 = vrot.slane %v4019, %v4032
    %v4034 = vcombine.low %v4026, %v4033
    %v4036 = vunpack.c.l.s4 1935823168
    %v4037 = vunpack.c.0.s8 %v4036
    %v4038 = vlaneseq
    %v4039 = vshrl.u32 %v4038, 7
    %v4040 = vsub.s32 %v4037, %v4039
    %v4041 = vrot.slane %v4034, %v4040
    %v4042 = vcombine.low %v3794, %v3796
    %v4043 = vcombine.low %v3795, %v3797
    %v4045 = vunpack.c.l.s4 1935823168
    %v4046 = vunpack.c.0.s8 %v4045
    %v4047 = vlaneseq
    %v4048 = vshrl.u32 %v4047, 7
    %v4049 = vsub.s32 %v4046, %v4048
    %v4050 = vrot.slane %v4042, %v4049
    %v4052 = vunpack.c.l.s4 1935823168
    %v4053 = vunpack.c.0.s8 %v4052
    %v4054 = vlaneseq
    %v4055 = vshrl.u32 %v4054, 7
    %v4056 = vsub.s32 %v4053, %v4055
    %v4057 = vrot.slane %v4043, %v4056
    %v4058 = vcombine.low %v4050, %v4057
    %v4060 = vunpack.c.l.s4 1935823168
    %v4061 = vunpack.c.0.s8 %v4060
    %v4062 = vlaneseq
    %v4063 = vshrl.u32 %v4062, 7
    %v4064 = vsub.s32 %v4061, %v4063
    %v4065 = vrot.slane %v4058, %v4064
    %v4066 = vcombine.low %v3798, %v3800
    %v4067 = vcombine.low %v3799, %v3801
    %v4069 = vunpack.c.l.s4 1935823168
    %v4070 = vunpack.c.0.s8 %v4069
    %v4071 = vlaneseq
    %v4072 = vshrl.u32 %v4071, 7
    %v4073 = vsub.s32 %v4070, %v4072
    %v4074 = vrot.slane %v4066, %v4073
    %v4076 = vunpack.c.l.s4 1935823168
    %v4077 = vunpack.c.0.s8 %v4076
    %v4078 = vlaneseq
    %v4079 = vshrl.u32 %v4078, 7
    %v4080 = vsub.s32 %v4077, %v4079
    %v4081 = vrot.slane %v4067, %v4080
    %v4082 = vcombine.low %v4074, %v4081
    %v4084 = vunpack.c.l.s4 1935823168
    %v4085 = vunpack.c.0.s8 %v4084
    %v4086 = vlaneseq
    %v4087 = vshrl.u32 %v4086, 7
    %v4088 = vsub.s32 %v4085, %v4087
    %v4089 = vrot.slane %v4082, %v4088
    %v4090 = vcombine.low %v3802, %v3804
    %v4091 = vcombine.low %v3803, %v3805
    %v4093 = vunpack.c.l.s4 1935823168
    %v4094 = vunpack.c.0.s8 %v4093
    %v4095 = vlaneseq
    %v4096 = vshrl.u32 %v4095, 7
    %v4097 = vsub.s32 %v4094, %v4096
    %v4098 = vrot.slane %v4090, %v4097
    %v4100 = vunpack.c.l.s4 1935823168
    %v4101 = vunpack.c.0.s8 %v4100
    %v4102 = vlaneseq
    %v4103 = vshrl.u32 %v4102, 7
    %v4104 = vsub.s32 %v4101, %v4103
    %v4105 = vrot.slane %v4091, %v4104
    %v4106 = vcombine.low %v4098, %v4105
    %v4108 = vunpack.c.l.s4 1935823168
    %v4109 = vunpack.c.0.s8 %v4108
    %v4110 = vlaneseq
    %v4111 = vshrl.u32 %v4110, 7
    %v4112 = vsub.s32 %v4109, %v4111
    %v4113 = vrot.slane %v4106, %v4112
    %v4114 = vcombine.low %v3806, %v3808
    %v4115 = vcombine.low %v3807, %v3809
    %v4117 = vunpack.c.l.s4 1935823168
    %v4118 = vunpack.c.0.s8 %v4117
    %v4119 = vlaneseq
    %v4120 = vshrl.u32 %v4119, 7
    %v4121 = vsub.s32 %v4118, %v4120
    %v4122 = vrot.slane %v4114, %v4121
    %v4124 = vunpack.c.l.s4 1935823168
    %v4125 = vunpack.c.0.s8 %v4124
    %v4126 = vlaneseq
    %v4127 = vshrl.u32 %v4126, 7
    %v4128 = vsub.s32 %v4125, %v4127
    %v4129 = vrot.slane %v4115, %v4128
    %v4130 = vcombine.low %v4122, %v4129
    %v4132 = vunpack.c.l.s4 1935823168
    %v4133 = vunpack.c.0.s8 %v4132
    %v4134 = vlaneseq
    %v4135 = vshrl.u32 %v4134, 7
    %v4136 = vsub.s32 %v4133, %v4135
    %v4137 = vrot.slane %v4130, %v4136
    %v4138 = vcombine.low %v3810, %v3812
    %v4139 = vcombine.low %v3811, %v3813
    %v4141 = vunpack.c.l.s4 1935823168
    %v4142 = vunpack.c.0.s8 %v4141
    %v4143 = vlaneseq
    %v4144 = vshrl.u32 %v4143, 7
    %v4145 = vsub.s32 %v4142, %v4144
    %v4146 = vrot.slane %v4138, %v4145
    %v4148 = vunpack.c.l.s4 1935823168
    %v4149 = vunpack.c.0.s8 %v4148
    %v4150 = vlaneseq
    %v4151 = vshrl.u32 %v4150, 7
    %v4152 = vsub.s32 %v4149, %v4151
    %v4153 = vrot.slane %v4139, %v4152
    %v4154 = vcombine.low %v4146, %v4153
    %v4156 = vunpack.c.l.s4 1935823168
    %v4157 = vunpack.c.0.s8 %v4156
    %v4158 = vlaneseq
    %v4159 = vshrl.u32 %v4158, 7
    %v4160 = vsub.s32 %v4157, %v4159
    %v4161 = vrot.slane %v4154, %v4160
    %v4162 = vcombine.low %v3814, %v3816
    %v4163 = vcombine.low %v3815, %v3817
    %v4165 = vunpack.c.l.s4 1935823168
    %v4166 = vunpack.c.0.s8 %v4165
    %v4167 = vlaneseq
    %v4168 = vshrl.u32 %v4167, 7
    %v4169 = vsub.s32 %v4166, %v4168
    %v4170 = vrot.slane %v4162, %v4169
    %v4172 = vunpack.c.l.s4 1935823168
    %v4173 = vunpack.c.0.s8 %v4172
    %v4174 = vlaneseq
    %v4175 = vshrl.u32 %v4174, 7
    %v4176 = vsub.s32 %v4173, %v4175
    %v4177 = vrot.slane %v4163, %v4176
    %v4178 = vcombine.low %v4170, %v4177
    %v4180 = vunpack.c.l.s4 1935823168
    %v4181 = vunpack.c.0.s8 %v4180
    %v4182 = vlaneseq
    %v4183 = vshrl.u32 %v4182, 7
    %v4184 = vsub.s32 %v4181, %v4183
    %v4185 = vrot.slane %v4178, %v4184
    %v4186 = vcombine.low %v3818, %v3820
    %v4187 = vcombine.low %v3819, %v3821
    %v4189 = vunpack.c.l.s4 1935823168
    %v4190 = vunpack.c.0.s8 %v4189
    %v4191 = vlaneseq
    %v4192 = vshrl.u32 %v4191, 7
    %v4193 = vsub.s32 %v4190, %v4192
    %v4194 = vrot.slane %v4186, %v4193
    %v4196 = vunpack.c.l.s4 1935823168
    %v4197 = vunpack.c.0.s8 %v4196
    %v4198 = vlaneseq
    %v4199 = vshrl.u32 %v4198, 7
    %v4200 = vsub.s32 %v4197, %v4199
    %v4201 = vrot.slane %v4187, %v4200
    %v4202 = vcombine.low %v4194, %v4201
    %v4204 = vunpack.c.l.s4 1935823168
    %v4205 = vunpack.c.0.s8 %v4204
    %v4206 = vlaneseq
    %v4207 = vshrl.u32 %v4206, 7
    %v4208 = vsub.s32 %v4205, %v4207
    %v4209 = vrot.slane %v4202, %v4208
    %v4210 = vcombine.low %v3822, %v3824
    %v4211 = vcombine.low %v3823, %v3825
    %v4213 = vunpack.c.l.s4 1935823168
    %v4214 = vunpack.c.0.s8 %v4213
    %v4215 = vlaneseq
    %v4216 = vshrl.u32 %v4215, 7
    %v4217 = vsub.s32 %v4214, %v4216
    %v4218 = vrot.slane %v4210, %v4217
    %v4220 = vunpack.c.l.s4 1935823168
    %v4221 = vunpack.c.0.s8 %v4220
    %v4222 = vlaneseq
    %v4223 = vshrl.u32 %v4222, 7
    %v4224 = vsub.s32 %v4221, %v4223
    %v4225 = vrot.slane %v4211, %v4224
    %v4226 = vcombine.low %v4218, %v4225
    %v4228 = vunpack.c.l.s4 1935823168
    %v4229 = vunpack.c.0.s8 %v4228
    %v4230 = vlaneseq
    %v4231 = vshrl.u32 %v4230, 7
    %v4232 = vsub.s32 %v4229, %v4231
    %v4233 = vrot.slane %v4226, %v4232
    %v4234 = vcombine.low %v3826, %v3828
    %v4235 = vcombine.low %v3827, %v3829
    %v4237 = vunpack.c.l.s4 1935823168
    %v4238 = vunpack.c.0.s8 %v4237
    %v4239 = vlaneseq
    %v4240 = vshrl.u32 %v4239, 7
    %v4241 = vsub.s32 %v4238, %v4240
    %v4242 = vrot.slane %v4234, %v4241
    %v4244 = vunpack.c.l.s4 1935823168
    %v4245 = vunpack.c.0.s8 %v4244
    %v4246 = vlaneseq
    %v4247 = vshrl.u32 %v4246, 7
    %v4248 = vsub.s32 %v4245, %v4247
    %v4249 = vrot.slane %v4235, %v4248
    %v4250 = vcombine.low %v4242, %v4249
    %v4252 = vunpack.c.l.s4 1935823168
    %v4253 = vunpack.c.0.s8 %v4252
    %v4254 = vlaneseq
    %v4255 = vshrl.u32 %v4254, 7
    %v4256 = vsub.s32 %v4253, %v4255
    %v4257 = vrot.slane %v4250, %v4256
    %v4258 = vcombine.low %v3830, %v3832
    %v4259 = vcombine.low %v3831, %v3833
    %v4261 = vunpack.c.l.s4 1935823168
    %v4262 = vunpack.c.0.s8 %v4261
    %v4263 = vlaneseq
    %v4264 = vshrl.u32 %v4263, 7
    %v4265 = vsub.s32 %v4262, %v4264
    %v4266 = vrot.slane %v4258, %v4265
    %v4268 = vunpack.c.l.s4 1935823168
    %v4269 = vunpack.c.0.s8 %v4268
    %v4270 = vlaneseq
    %v4271 = vshrl.u32 %v4270, 7
    %v4272 = vsub.s32 %v4269, %v4271
    %v4273 = vrot.slane %v4259, %v4272
    %v4274 = vcombine.low %v4266, %v4273
    %v4276 = vunpack.c.l.s4 1935823168
    %v4277 = vunpack.c.0.s8 %v4276
    %v4278 = vlaneseq
    %v4279 = vshrl.u32 %v4278, 7
    %v4280 = vsub.s32 %v4277, %v4279
    %v4281 = vrot.slane %v4274, %v4280
    %4298 = vst [vmem:[#allocation3 + $0x18] sm:$0xf] %v3921
    %4299 = vst [vmem:[#allocation3 + $0x3c] sm:$0xf] %v3945
    %4300 = vst [vmem:[#allocation3 + $0x60] sm:$0xf] %v3969
    %4301 = vst [vmem:[#allocation3 + $0x84] sm:$0xf] %v3993
    %4302 = vst [vmem:[#allocation3 + $0xa8] sm:$0xf] %v4017
    %4303 = vst [vmem:[#allocation3 + $0xcc] sm:$0xf] %v4041
    %4304 = vst [vmem:[#allocation3 + $0xf0] sm:$0xf] %v4065
    %4305 = vst [vmem:[#allocation3 + $0x114] sm:$0xf] %v4089
    %4306 = vst [vmem:[#allocation3 + $0x138] sm:$0xf] %v4113
    %4307 = vst [vmem:[#allocation3 + $0x15c] sm:$0xf] %v4137
    %4308 = vst [vmem:[#allocation3 + $0x180] sm:$0xf] %v4161
    %4309 = vst [vmem:[#allocation3 + $0x1a4] sm:$0xf] %v4185
    %4310 = vst [vmem:[#allocation3 + $0x1c8] sm:$0xf] %v4209
    %4311 = vst [vmem:[#allocation3 + $0x1ec] sm:$0xf] %v4233
    %4312 = vst [vmem:[#allocation3 + $0x210] sm:$0xf] %v4257
    %4313 = vst [vmem:[#allocation3 + $0x234] sm:$0xf] %v4281
    %s4314 = scalar_lea.vmem [#allocation2], 21
    %v4315 = vld [vmem:[%s4314] sm:$0x1]
    %v4316 = vld [vmem:[%s4314 + $0x1] sm:$0x1]
    %v4317 = vld [vmem:[%s4314 + $0x2] sm:$0x1]
    %v4318 = vld [vmem:[%s4314 + $0x3] sm:$0x1]
    %v4319 = vld [vmem:[%s4314 + $0x4] sm:$0x1]
    %v4320 = vld [vmem:[%s4314 + $0x5] sm:$0x1]
    %v4321 = vld [vmem:[%s4314 + $0x6] sm:$0x1]
    %v4322 = vld [vmem:[%s4314 + $0x7] sm:$0x1]
    %v4323 = vld [vmem:[%s4314 + $0xa] sm:$0x1]
    %v4324 = vld [vmem:[%s4314 + $0xb] sm:$0x1]
    %v4325 = vld [vmem:[%s4314 + $0xc] sm:$0x1]
    %v4326 = vld [vmem:[%s4314 + $0xd] sm:$0x1]
    %v4327 = vld [vmem:[%s4314 + $0xe] sm:$0x1]
    %v4328 = vld [vmem:[%s4314 + $0xf] sm:$0x1]
    %v4329 = vld [vmem:[%s4314 + $0x10] sm:$0x1]
    %v4330 = vld [vmem:[%s4314 + $0x11] sm:$0x1]
    %v4331 = vld [vmem:[%s4314 + $0x14] sm:$0x1]
    %v4332 = vld [vmem:[%s4314 + $0x15] sm:$0x1]
    %v4333 = vld [vmem:[%s4314 + $0x16] sm:$0x1]
    %v4334 = vld [vmem:[%s4314 + $0x17] sm:$0x1]
    %v4335 = vld [vmem:[%s4314 + $0x18] sm:$0x1]
    %v4336 = vld [vmem:[%s4314 + $0x19] sm:$0x1]
    %v4337 = vld [vmem:[%s4314 + $0x1a] sm:$0x1]
    %v4338 = vld [vmem:[%s4314 + $0x1b] sm:$0x1]
    %v4339 = vld [vmem:[%s4314 + $0x1e] sm:$0x1]
    %v4340 = vld [vmem:[%s4314 + $0x1f] sm:$0x1]
    %v4341 = vld [vmem:[%s4314 + $0x20] sm:$0x1]
    %v4342 = vld [vmem:[%s4314 + $0x21] sm:$0x1]
    %v4343 = vld [vmem:[%s4314 + $0x22] sm:$0x1]
    %v4344 = vld [vmem:[%s4314 + $0x23] sm:$0x1]
    %v4345 = vld [vmem:[%s4314 + $0x24] sm:$0x1]
    %v4346 = vld [vmem:[%s4314 + $0x25] sm:$0x1]
    %v4347 = vld [vmem:[%s4314 + $0x28] sm:$0x1]
    %v4348 = vld [vmem:[%s4314 + $0x29] sm:$0x1]
    %v4349 = vld [vmem:[%s4314 + $0x2a] sm:$0x1]
    %v4350 = vld [vmem:[%s4314 + $0x2b] sm:$0x1]
    %v4351 = vld [vmem:[%s4314 + $0x2c] sm:$0x1]
    %v4352 = vld [vmem:[%s4314 + $0x2d] sm:$0x1]
    %v4353 = vld [vmem:[%s4314 + $0x2e] sm:$0x1]
    %v4354 = vld [vmem:[%s4314 + $0x2f] sm:$0x1]
    %v4355 = vld [vmem:[%s4314 + $0x32] sm:$0x1]
    %v4356 = vld [vmem:[%s4314 + $0x33] sm:$0x1]
    %v4357 = vld [vmem:[%s4314 + $0x34] sm:$0x1]
    %v4358 = vld [vmem:[%s4314 + $0x35] sm:$0x1]
    %v4359 = vld [vmem:[%s4314 + $0x36] sm:$0x1]
    %v4360 = vld [vmem:[%s4314 + $0x37] sm:$0x1]
    %v4361 = vld [vmem:[%s4314 + $0x38] sm:$0x1]
    %v4362 = vld [vmem:[%s4314 + $0x39] sm:$0x1]
    %v4363 = vld [vmem:[%s4314 + $0x3c] sm:$0x1]
    %v4364 = vld [vmem:[%s4314 + $0x3d] sm:$0x1]
    %v4365 = vld [vmem:[%s4314 + $0x3e] sm:$0x1]
    %v4366 = vld [vmem:[%s4314 + $0x3f] sm:$0x1]
    %v4367 = vld [vmem:[%s4314 + $0x40] sm:$0x1]
    %v4368 = vld [vmem:[%s4314 + $0x41] sm:$0x1]
    %v4369 = vld [vmem:[%s4314 + $0x42] sm:$0x1]
    %v4370 = vld [vmem:[%s4314 + $0x43] sm:$0x1]
    %v4371 = vld [vmem:[%s4314 + $0x46] sm:$0x1]
    %v4372 = vld [vmem:[%s4314 + $0x47] sm:$0x1]
    %v4373 = vld [vmem:[%s4314 + $0x48] sm:$0x1]
    %v4374 = vld [vmem:[%s4314 + $0x49] sm:$0x1]
    %v4375 = vld [vmem:[%s4314 + $0x4a] sm:$0x1]
    %v4376 = vld [vmem:[%s4314 + $0x4b] sm:$0x1]
    %v4377 = vld [vmem:[%s4314 + $0x4c] sm:$0x1]
    %v4378 = vld [vmem:[%s4314 + $0x4d] sm:$0x1]
    %v4443 = vcombine.low %v4315, %v4317
    %v4444 = vcombine.low %v4316, %v4318
    %v4446 = vunpack.c.l.s4 1935823168
    %v4447 = vunpack.c.0.s8 %v4446
    %v4448 = vlaneseq
    %v4449 = vshrl.u32 %v4448, 7
    %v4450 = vsub.s32 %v4447, %v4449
    %v4451 = vrot.slane %v4443, %v4450
    %v4453 = vunpack.c.l.s4 1935823168
    %v4454 = vunpack.c.0.s8 %v4453
    %v4455 = vlaneseq
    %v4456 = vshrl.u32 %v4455, 7
    %v4457 = vsub.s32 %v4454, %v4456
    %v4458 = vrot.slane %v4444, %v4457
    %v4459 = vcombine.low %v4451, %v4458
    %v4461 = vunpack.c.l.s4 1935823168
    %v4462 = vunpack.c.0.s8 %v4461
    %v4463 = vlaneseq
    %v4464 = vshrl.u32 %v4463, 7
    %v4465 = vsub.s32 %v4462, %v4464
    %v4466 = vrot.slane %v4459, %v4465
    %v4467 = vcombine.low %v4319, %v4321
    %v4468 = vcombine.low %v4320, %v4322
    %v4470 = vunpack.c.l.s4 1935823168
    %v4471 = vunpack.c.0.s8 %v4470
    %v4472 = vlaneseq
    %v4473 = vshrl.u32 %v4472, 7
    %v4474 = vsub.s32 %v4471, %v4473
    %v4475 = vrot.slane %v4467, %v4474
    %v4477 = vunpack.c.l.s4 1935823168
    %v4478 = vunpack.c.0.s8 %v4477
    %v4479 = vlaneseq
    %v4480 = vshrl.u32 %v4479, 7
    %v4481 = vsub.s32 %v4478, %v4480
    %v4482 = vrot.slane %v4468, %v4481
    %v4483 = vcombine.low %v4475, %v4482
    %v4485 = vunpack.c.l.s4 1935823168
    %v4486 = vunpack.c.0.s8 %v4485
    %v4487 = vlaneseq
    %v4488 = vshrl.u32 %v4487, 7
    %v4489 = vsub.s32 %v4486, %v4488
    %v4490 = vrot.slane %v4483, %v4489
    %v4491 = vcombine.low %v4323, %v4325
    %v4492 = vcombine.low %v4324, %v4326
    %v4494 = vunpack.c.l.s4 1935823168
    %v4495 = vunpack.c.0.s8 %v4494
    %v4496 = vlaneseq
    %v4497 = vshrl.u32 %v4496, 7
    %v4498 = vsub.s32 %v4495, %v4497
    %v4499 = vrot.slane %v4491, %v4498
    %v4501 = vunpack.c.l.s4 1935823168
    %v4502 = vunpack.c.0.s8 %v4501
    %v4503 = vlaneseq
    %v4504 = vshrl.u32 %v4503, 7
    %v4505 = vsub.s32 %v4502, %v4504
    %v4506 = vrot.slane %v4492, %v4505
    %v4507 = vcombine.low %v4499, %v4506
    %v4509 = vunpack.c.l.s4 1935823168
    %v4510 = vunpack.c.0.s8 %v4509
    %v4511 = vlaneseq
    %v4512 = vshrl.u32 %v4511, 7
    %v4513 = vsub.s32 %v4510, %v4512
    %v4514 = vrot.slane %v4507, %v4513
    %v4515 = vcombine.low %v4327, %v4329
    %v4516 = vcombine.low %v4328, %v4330
    %v4518 = vunpack.c.l.s4 1935823168
    %v4519 = vunpack.c.0.s8 %v4518
    %v4520 = vlaneseq
    %v4521 = vshrl.u32 %v4520, 7
    %v4522 = vsub.s32 %v4519, %v4521
    %v4523 = vrot.slane %v4515, %v4522
    %v4525 = vunpack.c.l.s4 1935823168
    %v4526 = vunpack.c.0.s8 %v4525
    %v4527 = vlaneseq
    %v4528 = vshrl.u32 %v4527, 7
    %v4529 = vsub.s32 %v4526, %v4528
    %v4530 = vrot.slane %v4516, %v4529
    %v4531 = vcombine.low %v4523, %v4530
    %v4533 = vunpack.c.l.s4 1935823168
    %v4534 = vunpack.c.0.s8 %v4533
    %v4535 = vlaneseq
    %v4536 = vshrl.u32 %v4535, 7
    %v4537 = vsub.s32 %v4534, %v4536
    %v4538 = vrot.slane %v4531, %v4537
    %v4539 = vcombine.low %v4331, %v4333
    %v4540 = vcombine.low %v4332, %v4334
    %v4542 = vunpack.c.l.s4 1935823168
    %v4543 = vunpack.c.0.s8 %v4542
    %v4544 = vlaneseq
    %v4545 = vshrl.u32 %v4544, 7
    %v4546 = vsub.s32 %v4543, %v4545
    %v4547 = vrot.slane %v4539, %v4546
    %v4549 = vunpack.c.l.s4 1935823168
    %v4550 = vunpack.c.0.s8 %v4549
    %v4551 = vlaneseq
    %v4552 = vshrl.u32 %v4551, 7
    %v4553 = vsub.s32 %v4550, %v4552
    %v4554 = vrot.slane %v4540, %v4553
    %v4555 = vcombine.low %v4547, %v4554
    %v4557 = vunpack.c.l.s4 1935823168
    %v4558 = vunpack.c.0.s8 %v4557
    %v4559 = vlaneseq
    %v4560 = vshrl.u32 %v4559, 7
    %v4561 = vsub.s32 %v4558, %v4560
    %v4562 = vrot.slane %v4555, %v4561
    %v4563 = vcombine.low %v4335, %v4337
    %v4564 = vcombine.low %v4336, %v4338
    %v4566 = vunpack.c.l.s4 1935823168
    %v4567 = vunpack.c.0.s8 %v4566
    %v4568 = vlaneseq
    %v4569 = vshrl.u32 %v4568, 7
    %v4570 = vsub.s32 %v4567, %v4569
    %v4571 = vrot.slane %v4563, %v4570
    %v4573 = vunpack.c.l.s4 1935823168
    %v4574 = vunpack.c.0.s8 %v4573
    %v4575 = vlaneseq
    %v4576 = vshrl.u32 %v4575, 7
    %v4577 = vsub.s32 %v4574, %v4576
    %v4578 = vrot.slane %v4564, %v4577
    %v4579 = vcombine.low %v4571, %v4578
    %v4581 = vunpack.c.l.s4 1935823168
    %v4582 = vunpack.c.0.s8 %v4581
    %v4583 = vlaneseq
    %v4584 = vshrl.u32 %v4583, 7
    %v4585 = vsub.s32 %v4582, %v4584
    %v4586 = vrot.slane %v4579, %v4585
    %v4587 = vcombine.low %v4339, %v4341
    %v4588 = vcombine.low %v4340, %v4342
    %v4590 = vunpack.c.l.s4 1935823168
    %v4591 = vunpack.c.0.s8 %v4590
    %v4592 = vlaneseq
    %v4593 = vshrl.u32 %v4592, 7
    %v4594 = vsub.s32 %v4591, %v4593
    %v4595 = vrot.slane %v4587, %v4594
    %v4597 = vunpack.c.l.s4 1935823168
    %v4598 = vunpack.c.0.s8 %v4597
    %v4599 = vlaneseq
    %v4600 = vshrl.u32 %v4599, 7
    %v4601 = vsub.s32 %v4598, %v4600
    %v4602 = vrot.slane %v4588, %v4601
    %v4603 = vcombine.low %v4595, %v4602
    %v4605 = vunpack.c.l.s4 1935823168
    %v4606 = vunpack.c.0.s8 %v4605
    %v4607 = vlaneseq
    %v4608 = vshrl.u32 %v4607, 7
    %v4609 = vsub.s32 %v4606, %v4608
    %v4610 = vrot.slane %v4603, %v4609
    %v4611 = vcombine.low %v4343, %v4345
    %v4612 = vcombine.low %v4344, %v4346
    %v4614 = vunpack.c.l.s4 1935823168
    %v4615 = vunpack.c.0.s8 %v4614
    %v4616 = vlaneseq
    %v4617 = vshrl.u32 %v4616, 7
    %v4618 = vsub.s32 %v4615, %v4617
    %v4619 = vrot.slane %v4611, %v4618
    %v4621 = vunpack.c.l.s4 1935823168
    %v4622 = vunpack.c.0.s8 %v4621
    %v4623 = vlaneseq
    %v4624 = vshrl.u32 %v4623, 7
    %v4625 = vsub.s32 %v4622, %v4624
    %v4626 = vrot.slane %v4612, %v4625
    %v4627 = vcombine.low %v4619, %v4626
    %v4629 = vunpack.c.l.s4 1935823168
    %v4630 = vunpack.c.0.s8 %v4629
    %v4631 = vlaneseq
    %v4632 = vshrl.u32 %v4631, 7
    %v4633 = vsub.s32 %v4630, %v4632
    %v4634 = vrot.slane %v4627, %v4633
    %v4635 = vcombine.low %v4347, %v4349
    %v4636 = vcombine.low %v4348, %v4350
    %v4638 = vunpack.c.l.s4 1935823168
    %v4639 = vunpack.c.0.s8 %v4638
    %v4640 = vlaneseq
    %v4641 = vshrl.u32 %v4640, 7
    %v4642 = vsub.s32 %v4639, %v4641
    %v4643 = vrot.slane %v4635, %v4642
    %v4645 = vunpack.c.l.s4 1935823168
    %v4646 = vunpack.c.0.s8 %v4645
    %v4647 = vlaneseq
    %v4648 = vshrl.u32 %v4647, 7
    %v4649 = vsub.s32 %v4646, %v4648
    %v4650 = vrot.slane %v4636, %v4649
    %v4651 = vcombine.low %v4643, %v4650
    %v4653 = vunpack.c.l.s4 1935823168
    %v4654 = vunpack.c.0.s8 %v4653
    %v4655 = vlaneseq
    %v4656 = vshrl.u32 %v4655, 7
    %v4657 = vsub.s32 %v4654, %v4656
    %v4658 = vrot.slane %v4651, %v4657
    %v4659 = vcombine.low %v4351, %v4353
    %v4660 = vcombine.low %v4352, %v4354
    %v4662 = vunpack.c.l.s4 1935823168
    %v4663 = vunpack.c.0.s8 %v4662
    %v4664 = vlaneseq
    %v4665 = vshrl.u32 %v4664, 7
    %v4666 = vsub.s32 %v4663, %v4665
    %v4667 = vrot.slane %v4659, %v4666
    %v4669 = vunpack.c.l.s4 1935823168
    %v4670 = vunpack.c.0.s8 %v4669
    %v4671 = vlaneseq
    %v4672 = vshrl.u32 %v4671, 7
    %v4673 = vsub.s32 %v4670, %v4672
    %v4674 = vrot.slane %v4660, %v4673
    %v4675 = vcombine.low %v4667, %v4674
    %v4677 = vunpack.c.l.s4 1935823168
    %v4678 = vunpack.c.0.s8 %v4677
    %v4679 = vlaneseq
    %v4680 = vshrl.u32 %v4679, 7
    %v4681 = vsub.s32 %v4678, %v4680
    %v4682 = vrot.slane %v4675, %v4681
    %v4683 = vcombine.low %v4355, %v4357
    %v4684 = vcombine.low %v4356, %v4358
    %v4686 = vunpack.c.l.s4 1935823168
    %v4687 = vunpack.c.0.s8 %v4686
    %v4688 = vlaneseq
    %v4689 = vshrl.u32 %v4688, 7
    %v4690 = vsub.s32 %v4687, %v4689
    %v4691 = vrot.slane %v4683, %v4690
    %v4693 = vunpack.c.l.s4 1935823168
    %v4694 = vunpack.c.0.s8 %v4693
    %v4695 = vlaneseq
    %v4696 = vshrl.u32 %v4695, 7
    %v4697 = vsub.s32 %v4694, %v4696
    %v4698 = vrot.slane %v4684, %v4697
    %v4699 = vcombine.low %v4691, %v4698
    %v4701 = vunpack.c.l.s4 1935823168
    %v4702 = vunpack.c.0.s8 %v4701
    %v4703 = vlaneseq
    %v4704 = vshrl.u32 %v4703, 7
    %v4705 = vsub.s32 %v4702, %v4704
    %v4706 = vrot.slane %v4699, %v4705
    %v4707 = vcombine.low %v4359, %v4361
    %v4708 = vcombine.low %v4360, %v4362
    %v4710 = vunpack.c.l.s4 1935823168
    %v4711 = vunpack.c.0.s8 %v4710
    %v4712 = vlaneseq
    %v4713 = vshrl.u32 %v4712, 7
    %v4714 = vsub.s32 %v4711, %v4713
    %v4715 = vrot.slane %v4707, %v4714
    %v4717 = vunpack.c.l.s4 1935823168
    %v4718 = vunpack.c.0.s8 %v4717
    %v4719 = vlaneseq
    %v4720 = vshrl.u32 %v4719, 7
    %v4721 = vsub.s32 %v4718, %v4720
    %v4722 = vrot.slane %v4708, %v4721
    %v4723 = vcombine.low %v4715, %v4722
    %v4725 = vunpack.c.l.s4 1935823168
    %v4726 = vunpack.c.0.s8 %v4725
    %v4727 = vlaneseq
    %v4728 = vshrl.u32 %v4727, 7
    %v4729 = vsub.s32 %v4726, %v4728
    %v4730 = vrot.slane %v4723, %v4729
    %v4731 = vcombine.low %v4363, %v4365
    %v4732 = vcombine.low %v4364, %v4366
    %v4734 = vunpack.c.l.s4 1935823168
    %v4735 = vunpack.c.0.s8 %v4734
    %v4736 = vlaneseq
    %v4737 = vshrl.u32 %v4736, 7
    %v4738 = vsub.s32 %v4735, %v4737
    %v4739 = vrot.slane %v4731, %v4738
    %v4741 = vunpack.c.l.s4 1935823168
    %v4742 = vunpack.c.0.s8 %v4741
    %v4743 = vlaneseq
    %v4744 = vshrl.u32 %v4743, 7
    %v4745 = vsub.s32 %v4742, %v4744
    %v4746 = vrot.slane %v4732, %v4745
    %v4747 = vcombine.low %v4739, %v4746
    %v4749 = vunpack.c.l.s4 1935823168
    %v4750 = vunpack.c.0.s8 %v4749
    %v4751 = vlaneseq
    %v4752 = vshrl.u32 %v4751, 7
    %v4753 = vsub.s32 %v4750, %v4752
    %v4754 = vrot.slane %v4747, %v4753
    %v4755 = vcombine.low %v4367, %v4369
    %v4756 = vcombine.low %v4368, %v4370
    %v4758 = vunpack.c.l.s4 1935823168
    %v4759 = vunpack.c.0.s8 %v4758
    %v4760 = vlaneseq
    %v4761 = vshrl.u32 %v4760, 7
    %v4762 = vsub.s32 %v4759, %v4761
    %v4763 = vrot.slane %v4755, %v4762
    %v4765 = vunpack.c.l.s4 1935823168
    %v4766 = vunpack.c.0.s8 %v4765
    %v4767 = vlaneseq
    %v4768 = vshrl.u32 %v4767, 7
    %v4769 = vsub.s32 %v4766, %v4768
    %v4770 = vrot.slane %v4756, %v4769
    %v4771 = vcombine.low %v4763, %v4770
    %v4773 = vunpack.c.l.s4 1935823168
    %v4774 = vunpack.c.0.s8 %v4773
    %v4775 = vlaneseq
    %v4776 = vshrl.u32 %v4775, 7
    %v4777 = vsub.s32 %v4774, %v4776
    %v4778 = vrot.slane %v4771, %v4777
    %v4779 = vcombine.low %v4371, %v4373
    %v4780 = vcombine.low %v4372, %v4374
    %v4782 = vunpack.c.l.s4 1935823168
    %v4783 = vunpack.c.0.s8 %v4782
    %v4784 = vlaneseq
    %v4785 = vshrl.u32 %v4784, 7
    %v4786 = vsub.s32 %v4783, %v4785
    %v4787 = vrot.slane %v4779, %v4786
    %v4789 = vunpack.c.l.s4 1935823168
    %v4790 = vunpack.c.0.s8 %v4789
    %v4791 = vlaneseq
    %v4792 = vshrl.u32 %v4791, 7
    %v4793 = vsub.s32 %v4790, %v4792
    %v4794 = vrot.slane %v4780, %v4793
    %v4795 = vcombine.low %v4787, %v4794
    %v4797 = vunpack.c.l.s4 1935823168
    %v4798 = vunpack.c.0.s8 %v4797
    %v4799 = vlaneseq
    %v4800 = vshrl.u32 %v4799, 7
    %v4801 = vsub.s32 %v4798, %v4800
    %v4802 = vrot.slane %v4795, %v4801
    %v4803 = vcombine.low %v4375, %v4377
    %v4804 = vcombine.low %v4376, %v4378
    %v4806 = vunpack.c.l.s4 1935823168
    %v4807 = vunpack.c.0.s8 %v4806
    %v4808 = vlaneseq
    %v4809 = vshrl.u32 %v4808, 7
    %v4810 = vsub.s32 %v4807, %v4809
    %v4811 = vrot.slane %v4803, %v4810
    %v4813 = vunpack.c.l.s4 1935823168
    %v4814 = vunpack.c.0.s8 %v4813
    %v4815 = vlaneseq
    %v4816 = vshrl.u32 %v4815, 7
    %v4817 = vsub.s32 %v4814, %v4816
    %v4818 = vrot.slane %v4804, %v4817
    %v4819 = vcombine.low %v4811, %v4818
    %v4821 = vunpack.c.l.s4 1935823168
    %v4822 = vunpack.c.0.s8 %v4821
    %v4823 = vlaneseq
    %v4824 = vshrl.u32 %v4823, 7
    %v4825 = vsub.s32 %v4822, %v4824
    %v4826 = vrot.slane %v4819, %v4825
    %4843 = vst [vmem:[#allocation3 + $0x1c] sm:$0xf] %v4466
    %4844 = vst [vmem:[#allocation3 + $0x40] sm:$0xf] %v4490
    %4845 = vst [vmem:[#allocation3 + $0x64] sm:$0xf] %v4514
    %4846 = vst [vmem:[#allocation3 + $0x88] sm:$0xf] %v4538
    %4847 = vst [vmem:[#allocation3 + $0xac] sm:$0xf] %v4562
    %4848 = vst [vmem:[#allocation3 + $0xd0] sm:$0xf] %v4586
    %4849 = vst [vmem:[#allocation3 + $0xf4] sm:$0xf] %v4610
    %4850 = vst [vmem:[#allocation3 + $0x118] sm:$0xf] %v4634
    %4851 = vst [vmem:[#allocation3 + $0x13c] sm:$0xf] %v4658
    %4852 = vst [vmem:[#allocation3 + $0x160] sm:$0xf] %v4682
    %4853 = vst [vmem:[#allocation3 + $0x184] sm:$0xf] %v4706
    %4854 = vst [vmem:[#allocation3 + $0x1a8] sm:$0xf] %v4730
    %4855 = vst [vmem:[#allocation3 + $0x1cc] sm:$0xf] %v4754
    %4856 = vst [vmem:[#allocation3 + $0x1f0] sm:$0xf] %v4778
    %4857 = vst [vmem:[#allocation3 + $0x214] sm:$0xf] %v4802
    %4858 = vst [vmem:[#allocation3 + $0x238] sm:$0xf] %v4826
    %s4859 = scalar_lea.vmem [#allocation2], 22
    %v4860 = vld [vmem:[%s4859] sm:$0x1]
    %v4861 = vld [vmem:[%s4859 + $0x1] sm:$0x1]
    %v4862 = vld [vmem:[%s4859 + $0x2] sm:$0x1]
    %v4863 = vld [vmem:[%s4859 + $0x3] sm:$0x1]
    %v4864 = vld [vmem:[%s4859 + $0x4] sm:$0x1]
    %v4865 = vld [vmem:[%s4859 + $0x5] sm:$0x1]
    %v4866 = vld [vmem:[%s4859 + $0x6] sm:$0x1]
    %v4867 = vld [vmem:[%s4859 + $0x7] sm:$0x1]
    %v4868 = vld [vmem:[%s4859 + $0xa] sm:$0x1]
    %v4869 = vld [vmem:[%s4859 + $0xb] sm:$0x1]
    %v4870 = vld [vmem:[%s4859 + $0xc] sm:$0x1]
    %v4871 = vld [vmem:[%s4859 + $0xd] sm:$0x1]
    %v4872 = vld [vmem:[%s4859 + $0xe] sm:$0x1]
    %v4873 = vld [vmem:[%s4859 + $0xf] sm:$0x1]
    %v4874 = vld [vmem:[%s4859 + $0x10] sm:$0x1]
    %v4875 = vld [vmem:[%s4859 + $0x11] sm:$0x1]
    %v4876 = vld [vmem:[%s4859 + $0x14] sm:$0x1]
    %v4877 = vld [vmem:[%s4859 + $0x15] sm:$0x1]
    %v4878 = vld [vmem:[%s4859 + $0x16] sm:$0x1]
    %v4879 = vld [vmem:[%s4859 + $0x17] sm:$0x1]
    %v4880 = vld [vmem:[%s4859 + $0x18] sm:$0x1]
    %v4881 = vld [vmem:[%s4859 + $0x19] sm:$0x1]
    %v4882 = vld [vmem:[%s4859 + $0x1a] sm:$0x1]
    %v4883 = vld [vmem:[%s4859 + $0x1b] sm:$0x1]
    %v4884 = vld [vmem:[%s4859 + $0x1e] sm:$0x1]
    %v4885 = vld [vmem:[%s4859 + $0x1f] sm:$0x1]
    %v4886 = vld [vmem:[%s4859 + $0x20] sm:$0x1]
    %v4887 = vld [vmem:[%s4859 + $0x21] sm:$0x1]
    %v4888 = vld [vmem:[%s4859 + $0x22] sm:$0x1]
    %v4889 = vld [vmem:[%s4859 + $0x23] sm:$0x1]
    %v4890 = vld [vmem:[%s4859 + $0x24] sm:$0x1]
    %v4891 = vld [vmem:[%s4859 + $0x25] sm:$0x1]
    %v4892 = vld [vmem:[%s4859 + $0x28] sm:$0x1]
    %v4893 = vld [vmem:[%s4859 + $0x29] sm:$0x1]
    %v4894 = vld [vmem:[%s4859 + $0x2a] sm:$0x1]
    %v4895 = vld [vmem:[%s4859 + $0x2b] sm:$0x1]
    %v4896 = vld [vmem:[%s4859 + $0x2c] sm:$0x1]
    %v4897 = vld [vmem:[%s4859 + $0x2d] sm:$0x1]
    %v4898 = vld [vmem:[%s4859 + $0x2e] sm:$0x1]
    %v4899 = vld [vmem:[%s4859 + $0x2f] sm:$0x1]
    %v4900 = vld [vmem:[%s4859 + $0x32] sm:$0x1]
    %v4901 = vld [vmem:[%s4859 + $0x33] sm:$0x1]
    %v4902 = vld [vmem:[%s4859 + $0x34] sm:$0x1]
    %v4903 = vld [vmem:[%s4859 + $0x35] sm:$0x1]
    %v4904 = vld [vmem:[%s4859 + $0x36] sm:$0x1]
    %v4905 = vld [vmem:[%s4859 + $0x37] sm:$0x1]
    %v4906 = vld [vmem:[%s4859 + $0x38] sm:$0x1]
    %v4907 = vld [vmem:[%s4859 + $0x39] sm:$0x1]
    %v4908 = vld [vmem:[%s4859 + $0x3c] sm:$0x1]
    %v4909 = vld [vmem:[%s4859 + $0x3d] sm:$0x1]
    %v4910 = vld [vmem:[%s4859 + $0x3e] sm:$0x1]
    %v4911 = vld [vmem:[%s4859 + $0x3f] sm:$0x1]
    %v4912 = vld [vmem:[%s4859 + $0x40] sm:$0x1]
    %v4913 = vld [vmem:[%s4859 + $0x41] sm:$0x1]
    %v4914 = vld [vmem:[%s4859 + $0x42] sm:$0x1]
    %v4915 = vld [vmem:[%s4859 + $0x43] sm:$0x1]
    %v4916 = vld [vmem:[%s4859 + $0x46] sm:$0x1]
    %v4917 = vld [vmem:[%s4859 + $0x47] sm:$0x1]
    %v4918 = vld [vmem:[%s4859 + $0x48] sm:$0x1]
    %v4919 = vld [vmem:[%s4859 + $0x49] sm:$0x1]
    %v4920 = vld [vmem:[%s4859 + $0x4a] sm:$0x1]
    %v4921 = vld [vmem:[%s4859 + $0x4b] sm:$0x1]
    %v4922 = vld [vmem:[%s4859 + $0x4c] sm:$0x1]
    %v4923 = vld [vmem:[%s4859 + $0x4d] sm:$0x1]
    %v4988 = vcombine.low %v4860, %v4862
    %v4989 = vcombine.low %v4861, %v4863
    %v4991 = vunpack.c.l.s4 1935823168
    %v4992 = vunpack.c.0.s8 %v4991
    %v4993 = vlaneseq
    %v4994 = vshrl.u32 %v4993, 7
    %v4995 = vsub.s32 %v4992, %v4994
    %v4996 = vrot.slane %v4988, %v4995
    %v4998 = vunpack.c.l.s4 1935823168
    %v4999 = vunpack.c.0.s8 %v4998
    %v5000 = vlaneseq
    %v5001 = vshrl.u32 %v5000, 7
    %v5002 = vsub.s32 %v4999, %v5001
    %v5003 = vrot.slane %v4989, %v5002
    %v5004 = vcombine.low %v4996, %v5003
    %v5006 = vunpack.c.l.s4 1935823168
    %v5007 = vunpack.c.0.s8 %v5006
    %v5008 = vlaneseq
    %v5009 = vshrl.u32 %v5008, 7
    %v5010 = vsub.s32 %v5007, %v5009
    %v5011 = vrot.slane %v5004, %v5010
    %v5012 = vcombine.low %v4864, %v4866
    %v5013 = vcombine.low %v4865, %v4867
    %v5015 = vunpack.c.l.s4 1935823168
    %v5016 = vunpack.c.0.s8 %v5015
    %v5017 = vlaneseq
    %v5018 = vshrl.u32 %v5017, 7
    %v5019 = vsub.s32 %v5016, %v5018
    %v5020 = vrot.slane %v5012, %v5019
    %v5022 = vunpack.c.l.s4 1935823168
    %v5023 = vunpack.c.0.s8 %v5022
    %v5024 = vlaneseq
    %v5025 = vshrl.u32 %v5024, 7
    %v5026 = vsub.s32 %v5023, %v5025
    %v5027 = vrot.slane %v5013, %v5026
    %v5028 = vcombine.low %v5020, %v5027
    %v5030 = vunpack.c.l.s4 1935823168
    %v5031 = vunpack.c.0.s8 %v5030
    %v5032 = vlaneseq
    %v5033 = vshrl.u32 %v5032, 7
    %v5034 = vsub.s32 %v5031, %v5033
    %v5035 = vrot.slane %v5028, %v5034
    %v5036 = vcombine.low %v4868, %v4870
    %v5037 = vcombine.low %v4869, %v4871
    %v5039 = vunpack.c.l.s4 1935823168
    %v5040 = vunpack.c.0.s8 %v5039
    %v5041 = vlaneseq
    %v5042 = vshrl.u32 %v5041, 7
    %v5043 = vsub.s32 %v5040, %v5042
    %v5044 = vrot.slane %v5036, %v5043
    %v5046 = vunpack.c.l.s4 1935823168
    %v5047 = vunpack.c.0.s8 %v5046
    %v5048 = vlaneseq
    %v5049 = vshrl.u32 %v5048, 7
    %v5050 = vsub.s32 %v5047, %v5049
    %v5051 = vrot.slane %v5037, %v5050
    %v5052 = vcombine.low %v5044, %v5051
    %v5054 = vunpack.c.l.s4 1935823168
    %v5055 = vunpack.c.0.s8 %v5054
    %v5056 = vlaneseq
    %v5057 = vshrl.u32 %v5056, 7
    %v5058 = vsub.s32 %v5055, %v5057
    %v5059 = vrot.slane %v5052, %v5058
    %v5060 = vcombine.low %v4872, %v4874
    %v5061 = vcombine.low %v4873, %v4875
    %v5063 = vunpack.c.l.s4 1935823168
    %v5064 = vunpack.c.0.s8 %v5063
    %v5065 = vlaneseq
    %v5066 = vshrl.u32 %v5065, 7
    %v5067 = vsub.s32 %v5064, %v5066
    %v5068 = vrot.slane %v5060, %v5067
    %v5070 = vunpack.c.l.s4 1935823168
    %v5071 = vunpack.c.0.s8 %v5070
    %v5072 = vlaneseq
    %v5073 = vshrl.u32 %v5072, 7
    %v5074 = vsub.s32 %v5071, %v5073
    %v5075 = vrot.slane %v5061, %v5074
    %v5076 = vcombine.low %v5068, %v5075
    %v5078 = vunpack.c.l.s4 1935823168
    %v5079 = vunpack.c.0.s8 %v5078
    %v5080 = vlaneseq
    %v5081 = vshrl.u32 %v5080, 7
    %v5082 = vsub.s32 %v5079, %v5081
    %v5083 = vrot.slane %v5076, %v5082
    %v5084 = vcombine.low %v4876, %v4878
    %v5085 = vcombine.low %v4877, %v4879
    %v5087 = vunpack.c.l.s4 1935823168
    %v5088 = vunpack.c.0.s8 %v5087
    %v5089 = vlaneseq
    %v5090 = vshrl.u32 %v5089, 7
    %v5091 = vsub.s32 %v5088, %v5090
    %v5092 = vrot.slane %v5084, %v5091
    %v5094 = vunpack.c.l.s4 1935823168
    %v5095 = vunpack.c.0.s8 %v5094
    %v5096 = vlaneseq
    %v5097 = vshrl.u32 %v5096, 7
    %v5098 = vsub.s32 %v5095, %v5097
    %v5099 = vrot.slane %v5085, %v5098
    %v5100 = vcombine.low %v5092, %v5099
    %v5102 = vunpack.c.l.s4 1935823168
    %v5103 = vunpack.c.0.s8 %v5102
    %v5104 = vlaneseq
    %v5105 = vshrl.u32 %v5104, 7
    %v5106 = vsub.s32 %v5103, %v5105
    %v5107 = vrot.slane %v5100, %v5106
    %v5108 = vcombine.low %v4880, %v4882
    %v5109 = vcombine.low %v4881, %v4883
    %v5111 = vunpack.c.l.s4 1935823168
    %v5112 = vunpack.c.0.s8 %v5111
    %v5113 = vlaneseq
    %v5114 = vshrl.u32 %v5113, 7
    %v5115 = vsub.s32 %v5112, %v5114
    %v5116 = vrot.slane %v5108, %v5115
    %v5118 = vunpack.c.l.s4 1935823168
    %v5119 = vunpack.c.0.s8 %v5118
    %v5120 = vlaneseq
    %v5121 = vshrl.u32 %v5120, 7
    %v5122 = vsub.s32 %v5119, %v5121
    %v5123 = vrot.slane %v5109, %v5122
    %v5124 = vcombine.low %v5116, %v5123
    %v5126 = vunpack.c.l.s4 1935823168
    %v5127 = vunpack.c.0.s8 %v5126
    %v5128 = vlaneseq
    %v5129 = vshrl.u32 %v5128, 7
    %v5130 = vsub.s32 %v5127, %v5129
    %v5131 = vrot.slane %v5124, %v5130
    %v5132 = vcombine.low %v4884, %v4886
    %v5133 = vcombine.low %v4885, %v4887
    %v5135 = vunpack.c.l.s4 1935823168
    %v5136 = vunpack.c.0.s8 %v5135
    %v5137 = vlaneseq
    %v5138 = vshrl.u32 %v5137, 7
    %v5139 = vsub.s32 %v5136, %v5138
    %v5140 = vrot.slane %v5132, %v5139
    %v5142 = vunpack.c.l.s4 1935823168
    %v5143 = vunpack.c.0.s8 %v5142
    %v5144 = vlaneseq
    %v5145 = vshrl.u32 %v5144, 7
    %v5146 = vsub.s32 %v5143, %v5145
    %v5147 = vrot.slane %v5133, %v5146
    %v5148 = vcombine.low %v5140, %v5147
    %v5150 = vunpack.c.l.s4 1935823168
    %v5151 = vunpack.c.0.s8 %v5150
    %v5152 = vlaneseq
    %v5153 = vshrl.u32 %v5152, 7
    %v5154 = vsub.s32 %v5151, %v5153
    %v5155 = vrot.slane %v5148, %v5154
    %v5156 = vcombine.low %v4888, %v4890
    %v5157 = vcombine.low %v4889, %v4891
    %v5159 = vunpack.c.l.s4 1935823168
    %v5160 = vunpack.c.0.s8 %v5159
    %v5161 = vlaneseq
    %v5162 = vshrl.u32 %v5161, 7
    %v5163 = vsub.s32 %v5160, %v5162
    %v5164 = vrot.slane %v5156, %v5163
    %v5166 = vunpack.c.l.s4 1935823168
    %v5167 = vunpack.c.0.s8 %v5166
    %v5168 = vlaneseq
    %v5169 = vshrl.u32 %v5168, 7
    %v5170 = vsub.s32 %v5167, %v5169
    %v5171 = vrot.slane %v5157, %v5170
    %v5172 = vcombine.low %v5164, %v5171
    %v5174 = vunpack.c.l.s4 1935823168
    %v5175 = vunpack.c.0.s8 %v5174
    %v5176 = vlaneseq
    %v5177 = vshrl.u32 %v5176, 7
    %v5178 = vsub.s32 %v5175, %v5177
    %v5179 = vrot.slane %v5172, %v5178
    %v5180 = vcombine.low %v4892, %v4894
    %v5181 = vcombine.low %v4893, %v4895
    %v5183 = vunpack.c.l.s4 1935823168
    %v5184 = vunpack.c.0.s8 %v5183
    %v5185 = vlaneseq
    %v5186 = vshrl.u32 %v5185, 7
    %v5187 = vsub.s32 %v5184, %v5186
    %v5188 = vrot.slane %v5180, %v5187
    %v5190 = vunpack.c.l.s4 1935823168
    %v5191 = vunpack.c.0.s8 %v5190
    %v5192 = vlaneseq
    %v5193 = vshrl.u32 %v5192, 7
    %v5194 = vsub.s32 %v5191, %v5193
    %v5195 = vrot.slane %v5181, %v5194
    %v5196 = vcombine.low %v5188, %v5195
    %v5198 = vunpack.c.l.s4 1935823168
    %v5199 = vunpack.c.0.s8 %v5198
    %v5200 = vlaneseq
    %v5201 = vshrl.u32 %v5200, 7
    %v5202 = vsub.s32 %v5199, %v5201
    %v5203 = vrot.slane %v5196, %v5202
    %v5204 = vcombine.low %v4896, %v4898
    %v5205 = vcombine.low %v4897, %v4899
    %v5207 = vunpack.c.l.s4 1935823168
    %v5208 = vunpack.c.0.s8 %v5207
    %v5209 = vlaneseq
    %v5210 = vshrl.u32 %v5209, 7
    %v5211 = vsub.s32 %v5208, %v5210
    %v5212 = vrot.slane %v5204, %v5211
    %v5214 = vunpack.c.l.s4 1935823168
    %v5215 = vunpack.c.0.s8 %v5214
    %v5216 = vlaneseq
    %v5217 = vshrl.u32 %v5216, 7
    %v5218 = vsub.s32 %v5215, %v5217
    %v5219 = vrot.slane %v5205, %v5218
    %v5220 = vcombine.low %v5212, %v5219
    %v5222 = vunpack.c.l.s4 1935823168
    %v5223 = vunpack.c.0.s8 %v5222
    %v5224 = vlaneseq
    %v5225 = vshrl.u32 %v5224, 7
    %v5226 = vsub.s32 %v5223, %v5225
    %v5227 = vrot.slane %v5220, %v5226
    %v5228 = vcombine.low %v4900, %v4902
    %v5229 = vcombine.low %v4901, %v4903
    %v5231 = vunpack.c.l.s4 1935823168
    %v5232 = vunpack.c.0.s8 %v5231
    %v5233 = vlaneseq
    %v5234 = vshrl.u32 %v5233, 7
    %v5235 = vsub.s32 %v5232, %v5234
    %v5236 = vrot.slane %v5228, %v5235
    %v5238 = vunpack.c.l.s4 1935823168
    %v5239 = vunpack.c.0.s8 %v5238
    %v5240 = vlaneseq
    %v5241 = vshrl.u32 %v5240, 7
    %v5242 = vsub.s32 %v5239, %v5241
    %v5243 = vrot.slane %v5229, %v5242
    %v5244 = vcombine.low %v5236, %v5243
    %v5246 = vunpack.c.l.s4 1935823168
    %v5247 = vunpack.c.0.s8 %v5246
    %v5248 = vlaneseq
    %v5249 = vshrl.u32 %v5248, 7
    %v5250 = vsub.s32 %v5247, %v5249
    %v5251 = vrot.slane %v5244, %v5250
    %v5252 = vcombine.low %v4904, %v4906
    %v5253 = vcombine.low %v4905, %v4907
    %v5255 = vunpack.c.l.s4 1935823168
    %v5256 = vunpack.c.0.s8 %v5255
    %v5257 = vlaneseq
    %v5258 = vshrl.u32 %v5257, 7
    %v5259 = vsub.s32 %v5256, %v5258
    %v5260 = vrot.slane %v5252, %v5259
    %v5262 = vunpack.c.l.s4 1935823168
    %v5263 = vunpack.c.0.s8 %v5262
    %v5264 = vlaneseq
    %v5265 = vshrl.u32 %v5264, 7
    %v5266 = vsub.s32 %v5263, %v5265
    %v5267 = vrot.slane %v5253, %v5266
    %v5268 = vcombine.low %v5260, %v5267
    %v5270 = vunpack.c.l.s4 1935823168
    %v5271 = vunpack.c.0.s8 %v5270
    %v5272 = vlaneseq
    %v5273 = vshrl.u32 %v5272, 7
    %v5274 = vsub.s32 %v5271, %v5273
    %v5275 = vrot.slane %v5268, %v5274
    %v5276 = vcombine.low %v4908, %v4910
    %v5277 = vcombine.low %v4909, %v4911
    %v5279 = vunpack.c.l.s4 1935823168
    %v5280 = vunpack.c.0.s8 %v5279
    %v5281 = vlaneseq
    %v5282 = vshrl.u32 %v5281, 7
    %v5283 = vsub.s32 %v5280, %v5282
    %v5284 = vrot.slane %v5276, %v5283
    %v5286 = vunpack.c.l.s4 1935823168
    %v5287 = vunpack.c.0.s8 %v5286
    %v5288 = vlaneseq
    %v5289 = vshrl.u32 %v5288, 7
    %v5290 = vsub.s32 %v5287, %v5289
    %v5291 = vrot.slane %v5277, %v5290
    %v5292 = vcombine.low %v5284, %v5291
    %v5294 = vunpack.c.l.s4 1935823168
    %v5295 = vunpack.c.0.s8 %v5294
    %v5296 = vlaneseq
    %v5297 = vshrl.u32 %v5296, 7
    %v5298 = vsub.s32 %v5295, %v5297
    %v5299 = vrot.slane %v5292, %v5298
    %v5300 = vcombine.low %v4912, %v4914
    %v5301 = vcombine.low %v4913, %v4915
    %v5303 = vunpack.c.l.s4 1935823168
    %v5304 = vunpack.c.0.s8 %v5303
    %v5305 = vlaneseq
    %v5306 = vshrl.u32 %v5305, 7
    %v5307 = vsub.s32 %v5304, %v5306
    %v5308 = vrot.slane %v5300, %v5307
    %v5310 = vunpack.c.l.s4 1935823168
    %v5311 = vunpack.c.0.s8 %v5310
    %v5312 = vlaneseq
    %v5313 = vshrl.u32 %v5312, 7
    %v5314 = vsub.s32 %v5311, %v5313
    %v5315 = vrot.slane %v5301, %v5314
    %v5316 = vcombine.low %v5308, %v5315
    %v5318 = vunpack.c.l.s4 1935823168
    %v5319 = vunpack.c.0.s8 %v5318
    %v5320 = vlaneseq
    %v5321 = vshrl.u32 %v5320, 7
    %v5322 = vsub.s32 %v5319, %v5321
    %v5323 = vrot.slane %v5316, %v5322
    %v5324 = vcombine.low %v4916, %v4918
    %v5325 = vcombine.low %v4917, %v4919
    %v5327 = vunpack.c.l.s4 1935823168
    %v5328 = vunpack.c.0.s8 %v5327
    %v5329 = vlaneseq
    %v5330 = vshrl.u32 %v5329, 7
    %v5331 = vsub.s32 %v5328, %v5330
    %v5332 = vrot.slane %v5324, %v5331
    %v5334 = vunpack.c.l.s4 1935823168
    %v5335 = vunpack.c.0.s8 %v5334
    %v5336 = vlaneseq
    %v5337 = vshrl.u32 %v5336, 7
    %v5338 = vsub.s32 %v5335, %v5337
    %v5339 = vrot.slane %v5325, %v5338
    %v5340 = vcombine.low %v5332, %v5339
    %v5342 = vunpack.c.l.s4 1935823168
    %v5343 = vunpack.c.0.s8 %v5342
    %v5344 = vlaneseq
    %v5345 = vshrl.u32 %v5344, 7
    %v5346 = vsub.s32 %v5343, %v5345
    %v5347 = vrot.slane %v5340, %v5346
    %v5348 = vcombine.low %v4920, %v4922
    %v5349 = vcombine.low %v4921, %v4923
    %v5351 = vunpack.c.l.s4 1935823168
    %v5352 = vunpack.c.0.s8 %v5351
    %v5353 = vlaneseq
    %v5354 = vshrl.u32 %v5353, 7
    %v5355 = vsub.s32 %v5352, %v5354
    %v5356 = vrot.slane %v5348, %v5355
    %v5358 = vunpack.c.l.s4 1935823168
    %v5359 = vunpack.c.0.s8 %v5358
    %v5360 = vlaneseq
    %v5361 = vshrl.u32 %v5360, 7
    %v5362 = vsub.s32 %v5359, %v5361
    %v5363 = vrot.slane %v5349, %v5362
    %v5364 = vcombine.low %v5356, %v5363
    %v5366 = vunpack.c.l.s4 1935823168
    %v5367 = vunpack.c.0.s8 %v5366
    %v5368 = vlaneseq
    %v5369 = vshrl.u32 %v5368, 7
    %v5370 = vsub.s32 %v5367, %v5369
    %v5371 = vrot.slane %v5364, %v5370
    %5388 = vst [vmem:[#allocation3 + $0x20] sm:$0xf] %v5011
    %5389 = vst [vmem:[#allocation3 + $0x44] sm:$0xf] %v5035
    %5390 = vst [vmem:[#allocation3 + $0x68] sm:$0xf] %v5059
    %5391 = vst [vmem:[#allocation3 + $0x8c] sm:$0xf] %v5083
    %5392 = vst [vmem:[#allocation3 + $0xb0] sm:$0xf] %v5107
    %5393 = vst [vmem:[#allocation3 + $0xd4] sm:$0xf] %v5131
    %5394 = vst [vmem:[#allocation3 + $0xf8] sm:$0xf] %v5155
    %5395 = vst [vmem:[#allocation3 + $0x11c] sm:$0xf] %v5179
    %5396 = vst [vmem:[#allocation3 + $0x140] sm:$0xf] %v5203
    %5397 = vst [vmem:[#allocation3 + $0x164] sm:$0xf] %v5227
    %5398 = vst [vmem:[#allocation3 + $0x188] sm:$0xf] %v5251
    %5399 = vst [vmem:[#allocation3 + $0x1ac] sm:$0xf] %v5275
    %5400 = vst [vmem:[#allocation3 + $0x1d0] sm:$0xf] %v5299
    %5401 = vst [vmem:[#allocation3 + $0x1f4] sm:$0xf] %v5323
    %5402 = vst [vmem:[#allocation3 + $0x218] sm:$0xf] %v5347
    %5403 = vst [vmem:[#allocation3 + $0x23c] sm:$0xf] %v5371
    %v5404 = vld [vmem:[#allocation3] sm:$0xff]
    %v5405 = vld [vmem:[#allocation3 + $0x8] sm:$0xff]
    %v5406 = vld [vmem:[#allocation3 + $0x10] sm:$0xff]
    %v5407 = vld [vmem:[#allocation3 + $0x18] sm:$0xff]
    %v5408 = vld [vmem:[#allocation3 + $0x20] sm:$0xf]
    %v5409 = vld [vmem:[#allocation3 + $0x24] sm:$0xff]
    %v5410 = vld [vmem:[#allocation3 + $0x2c] sm:$0xff]
    %v5411 = vld [vmem:[#allocation3 + $0x34] sm:$0xff]
    %v5412 = vld [vmem:[#allocation3 + $0x3c] sm:$0xff]
    %v5413 = vld [vmem:[#allocation3 + $0x44] sm:$0xf]
    %v5414 = vld [vmem:[#allocation3 + $0x48] sm:$0xff]
    %v5415 = vld [vmem:[#allocation3 + $0x50] sm:$0xff]
    %v5416 = vld [vmem:[#allocation3 + $0x58] sm:$0xff]
    %v5417 = vld [vmem:[#allocation3 + $0x60] sm:$0xff]
    %v5418 = vld [vmem:[#allocation3 + $0x68] sm:$0xf]
    %v5419 = vld [vmem:[#allocation3 + $0x6c] sm:$0xff]
    %v5420 = vld [vmem:[#allocation3 + $0x74] sm:$0xff]
    %v5421 = vld [vmem:[#allocation3 + $0x7c] sm:$0xff]
    %v5422 = vld [vmem:[#allocation3 + $0x84] sm:$0xff]
    %v5423 = vld [vmem:[#allocation3 + $0x8c] sm:$0xf]
    %v5424 = vld [vmem:[#allocation3 + $0x90] sm:$0xff]
    %v5425 = vld [vmem:[#allocation3 + $0x98] sm:$0xff]
    %v5426 = vld [vmem:[#allocation3 + $0xa0] sm:$0xff]
    %v5427 = vld [vmem:[#allocation3 + $0xa8] sm:$0xff]
    %v5428 = vld [vmem:[#allocation3 + $0xb0] sm:$0xf]
    %v5429 = vld [vmem:[#allocation3 + $0xb4] sm:$0xff]
    %v5430 = vld [vmem:[#allocation3 + $0xbc] sm:$0xff]
    %v5431 = vld [vmem:[#allocation3 + $0xc4] sm:$0xff]
    %v5432 = vld [vmem:[#allocation3 + $0xcc] sm:$0xff]
    %v5433 = vld [vmem:[#allocation3 + $0xd4] sm:$0xf]
    %v5434 = vld [vmem:[#allocation3 + $0xd8] sm:$0xff]
    %v5435 = vld [vmem:[#allocation3 + $0xe0] sm:$0xff]
    %v5436 = vld [vmem:[#allocation3 + $0xe8] sm:$0xff]
    %v5437 = vld [vmem:[#allocation3 + $0xf0] sm:$0xff]
    %v5438 = vld [vmem:[#allocation3 + $0xf8] sm:$0xf]
    %v5439 = vld [vmem:[#allocation3 + $0xfc] sm:$0xff]
    %v5440 = vld [vmem:[#allocation3 + $0x104] sm:$0xff]
    %v5441 = vld [vmem:[#allocation3 + $0x10c] sm:$0xff]
    %v5442 = vld [vmem:[#allocation3 + $0x114] sm:$0xff]
    %v5443 = vld [vmem:[#allocation3 + $0x11c] sm:$0xf]
    %v5444 = vld [vmem:[#allocation3 + $0x120] sm:$0xff]
    %v5445 = vld [vmem:[#allocation3 + $0x128] sm:$0xff]
    %v5446 = vld [vmem:[#allocation3 + $0x130] sm:$0xff]
    %v5447 = vld [vmem:[#allocation3 + $0x138] sm:$0xff]
    %v5448 = vld [vmem:[#allocation3 + $0x140] sm:$0xf]
    %v5449 = vld [vmem:[#allocation3 + $0x144] sm:$0xff]
    %v5450 = vld [vmem:[#allocation3 + $0x14c] sm:$0xff]
    %v5451 = vld [vmem:[#allocation3 + $0x154] sm:$0xff]
    %v5452 = vld [vmem:[#allocation3 + $0x15c] sm:$0xff]
    %v5453 = vld [vmem:[#allocation3 + $0x164] sm:$0xf]
    %v5454 = vld [vmem:[#allocation3 + $0x168] sm:$0xff]
    %v5455 = vld [vmem:[#allocation3 + $0x170] sm:$0xff]
    %v5456 = vld [vmem:[#allocation3 + $0x178] sm:$0xff]
    %v5457 = vld [vmem:[#allocation3 + $0x180] sm:$0xff]
    %v5458 = vld [vmem:[#allocation3 + $0x188] sm:$0xf]
    %v5459 = vld [vmem:[#allocation3 + $0x18c] sm:$0xff]
    %v5460 = vld [vmem:[#allocation3 + $0x194] sm:$0xff]
    %v5461 = vld [vmem:[#allocation3 + $0x19c] sm:$0xff]
    %v5462 = vld [vmem:[#allocation3 + $0x1a4] sm:$0xff]
    %v5463 = vld [vmem:[#allocation3 + $0x1ac] sm:$0xf]
    %v5464 = vld [vmem:[#allocation3 + $0x1b0] sm:$0xff]
    %v5465 = vld [vmem:[#allocation3 + $0x1b8] sm:$0xff]
    %v5466 = vld [vmem:[#allocation3 + $0x1c0] sm:$0xff]
    %v5467 = vld [vmem:[#allocation3 + $0x1c8] sm:$0xff]
    %v5468 = vld [vmem:[#allocation3 + $0x1d0] sm:$0xf]
    %v5469 = vld [vmem:[#allocation3 + $0x1d4] sm:$0xff]
    %v5470 = vld [vmem:[#allocation3 + $0x1dc] sm:$0xff]
    %v5471 = vld [vmem:[#allocation3 + $0x1e4] sm:$0xff]
    %v5472 = vld [vmem:[#allocation3 + $0x1ec] sm:$0xff]
    %v5473 = vld [vmem:[#allocation3 + $0x1f4] sm:$0xf]
    %v5474 = vld [vmem:[#allocation3 + $0x1f8] sm:$0xff]
    %v5475 = vld [vmem:[#allocation3 + $0x200] sm:$0xff]
    %v5476 = vld [vmem:[#allocation3 + $0x208] sm:$0xff]
    %v5477 = vld [vmem:[#allocation3 + $0x210] sm:$0xff]
    %v5478 = vld [vmem:[#allocation3 + $0x218] sm:$0xf]
    %v5479 = vld [vmem:[#allocation3 + $0x21c] sm:$0xff]
    %v5480 = vld [vmem:[#allocation3 + $0x224] sm:$0xff]
    %v5481 = vld [vmem:[#allocation3 + $0x22c] sm:$0xff]
    %v5482 = vld [vmem:[#allocation3 + $0x234] sm:$0xff]
    %v5483 = vld [vmem:[#allocation3 + $0x23c] sm:$0xf]
    %v5484 = vld [vmem:[#allocation9] sm:$0xf]
    %v5485 = vld [vmem:[#allocation9 + $0x4] sm:$0xf]
    %v5486 = vld [vmem:[#allocation9 + $0x8] sm:$0xf]
    %v5487 = vld [vmem:[#allocation9 + $0xc] sm:$0xf]
    %v5488 = vld [vmem:[#allocation9 + $0x10] sm:$0xf]
    %v5489 = vld [vmem:[#allocation9 + $0x14] sm:$0xf]
    %v5490 = vld [vmem:[#allocation9 + $0x18] sm:$0xf]
    %v5491 = vld [vmem:[#allocation9 + $0x1c] sm:$0xf]
    %v5492 = vld [vmem:[#allocation9 + $0x20] sm:$0xf]
    %v5493 = vld [vmem:[#allocation9 + $0x24] sm:$0xf]
    %v5494 = vld [vmem:[#allocation9 + $0x28] sm:$0xf]
    %v5495 = vld [vmem:[#allocation9 + $0x2c] sm:$0xf]
    %v5496 = vld [vmem:[#allocation9 + $0x30] sm:$0xf]
    %v5497 = vld [vmem:[#allocation9 + $0x34] sm:$0xf]
    %v5498 = vld [vmem:[#allocation9 + $0x38] sm:$0xf]
    %v5499 = vld [vmem:[#allocation9 + $0x3c] sm:$0xf]
    %v5500 = vld [vmem:[#allocation9 + $0x40] sm:$0xf]
    %v5501 = vld [vmem:[#allocation9 + $0x44] sm:$0xf]
    %v5502 = vld [vmem:[#allocation9 + $0x48] sm:$0xf]
    %v5503 = vld [vmem:[#allocation9 + $0x4c] sm:$0xf]
    %v5504 = vld [vmem:[#allocation9 + $0x50] sm:$0xf]
    %v5505 = vld [vmem:[#allocation9 + $0x54] sm:$0xf]
    %v5506 = vld [vmem:[#allocation9 + $0x58] sm:$0xf]
    %v5507 = vld [vmem:[#allocation9 + $0x5c] sm:$0xf]
    %v5508 = vld [vmem:[#allocation9 + $0x60] sm:$0xf]
    %v5509 = vld [vmem:[#allocation9 + $0x64] sm:$0xf]
    %v5510 = vld [vmem:[#allocation9 + $0x68] sm:$0xf]
    %v5511 = vld [vmem:[#allocation9 + $0x6c] sm:$0xf]
    %v5512 = vld [vmem:[#allocation9 + $0x70] sm:$0xf]
    %v5513 = vld [vmem:[#allocation9 + $0x74] sm:$0xf]
    %v5514 = vld [vmem:[#allocation9 + $0x78] sm:$0xf]
    %v5515 = vld [vmem:[#allocation9 + $0x7c] sm:$0xf]
    %v5516 = vld [vmem:[#allocation9 + $0x80] sm:$0xf]
    %v5517 = vld [vmem:[#allocation9 + $0x84] sm:$0xf]
    %v5518 = vld [vmem:[#allocation9 + $0x88] sm:$0xf]
    %v5519 = vld [vmem:[#allocation9 + $0x8c] sm:$0xf]
    %v5520 = vld [vmem:[#allocation9 + $0x90] sm:$0xf]
    %v5521 = vld [vmem:[#allocation9 + $0x94] sm:$0xf]
    %v5522 = vld [vmem:[#allocation9 + $0x98] sm:$0xf]
    %v5523 = vld [vmem:[#allocation9 + $0x9c] sm:$0xf]
    %v5524 = vld [vmem:[#allocation9 + $0xa0] sm:$0xf]
    %v5525 = vld [vmem:[#allocation9 + $0xa4] sm:$0xf]
    %v5526 = vld [vmem:[#allocation9 + $0xa8] sm:$0xf]
    %v5527 = vld [vmem:[#allocation9 + $0xac] sm:$0xf]
    %v5528 = vld [vmem:[#allocation9 + $0xb0] sm:$0xf]
    %v5529 = vld [vmem:[#allocation9 + $0xb4] sm:$0xf]
    %v5530 = vld [vmem:[#allocation9 + $0xb8] sm:$0xf]
    %v5531 = vld [vmem:[#allocation9 + $0xbc] sm:$0xf]
    %v5532 = vld [vmem:[#allocation9 + $0xc0] sm:$0xf]
    %v5533 = vld [vmem:[#allocation9 + $0xc4] sm:$0xf]
    %v5534 = vld [vmem:[#allocation9 + $0xc8] sm:$0xf]
    %v5535 = vld [vmem:[#allocation9 + $0xcc] sm:$0xf]
    %v5536 = vld [vmem:[#allocation9 + $0xd0] sm:$0xf]
    %v5537 = vld [vmem:[#allocation9 + $0xd4] sm:$0xf]
    %v5538 = vld [vmem:[#allocation9 + $0xd8] sm:$0xf]
    %v5539 = vld [vmem:[#allocation9 + $0xdc] sm:$0xf]
    %v5540 = vld [vmem:[#allocation9 + $0xe0] sm:$0xf]
    %v5541 = vld [vmem:[#allocation9 + $0xe4] sm:$0xf]
    %v5542 = vld [vmem:[#allocation9 + $0xe8] sm:$0xf]
    %v5543 = vld [vmem:[#allocation9 + $0xec] sm:$0xf]
    %v5544 = vld [vmem:[#allocation9 + $0xf0] sm:$0xf]
    %v5545 = vld [vmem:[#allocation9 + $0xf4] sm:$0xf]
    %v5546 = vld [vmem:[#allocation9 + $0xf8] sm:$0xf]
    %v5547 = vld [vmem:[#allocation9 + $0xfc] sm:$0xf]
    %v5548 = vld [vmem:[#allocation9 + $0x100] sm:$0xf]
    %v5549 = vld [vmem:[#allocation9 + $0x104] sm:$0xf]
    %v5550 = vld [vmem:[#allocation9 + $0x108] sm:$0xf]
    %v5551 = vld [vmem:[#allocation9 + $0x10c] sm:$0xf]
    %v5552 = vld [vmem:[#allocation9 + $0x110] sm:$0xf]
    %v5553 = vld [vmem:[#allocation9 + $0x114] sm:$0xf]
    %v5554 = vld [vmem:[#allocation9 + $0x118] sm:$0xf]
    %v5555 = vld [vmem:[#allocation9 + $0x11c] sm:$0xf]
    %v5556 = vld [vmem:[#allocation9 + $0x120] sm:$0xf]
    %v5557 = vld [vmem:[#allocation9 + $0x124] sm:$0xf]
    %v5558 = vld [vmem:[#allocation9 + $0x128] sm:$0xf]
    %v5559 = vld [vmem:[#allocation9 + $0x12c] sm:$0xf]
    %v5560 = vld [vmem:[#allocation9 + $0x130] sm:$0xf]
    %v5561 = vld [vmem:[#allocation9 + $0x134] sm:$0xf]
    %v5562 = vld [vmem:[#allocation9 + $0x138] sm:$0xf]
    %v5563 = vld [vmem:[#allocation9 + $0x13c] sm:$0xf]
    %v5564 = vld [vmem:[#allocation9 + $0x140] sm:$0xf]
    %v5565 = vld [vmem:[#allocation9 + $0x144] sm:$0xf]
    %v5566 = vld [vmem:[#allocation9 + $0x148] sm:$0xf]
    %v5567 = vld [vmem:[#allocation9 + $0x14c] sm:$0xf]
    %v5568 = vld [vmem:[#allocation9 + $0x150] sm:$0xf]
    %v5569 = vld [vmem:[#allocation9 + $0x154] sm:$0xf]
    %v5570 = vld [vmem:[#allocation9 + $0x158] sm:$0xf]
    %v5571 = vld [vmem:[#allocation9 + $0x15c] sm:$0xf]
    %v5572 = vld [vmem:[#allocation9 + $0x160] sm:$0xf]
    %v5573 = vld [vmem:[#allocation9 + $0x164] sm:$0xf]
    %v5574 = vld [vmem:[#allocation9 + $0x168] sm:$0xf]
    %v5575 = vld [vmem:[#allocation9 + $0x16c] sm:$0xf]
    %v5576 = vld [vmem:[#allocation9 + $0x170] sm:$0xf]
    %v5577 = vld [vmem:[#allocation9 + $0x174] sm:$0xf]
    %v5578 = vld [vmem:[#allocation9 + $0x178] sm:$0xf]
    %v5579 = vld [vmem:[#allocation9 + $0x17c] sm:$0xf]
    %v5580 = vld [vmem:[#allocation9 + $0x180] sm:$0xf]
    %v5581 = vld [vmem:[#allocation9 + $0x184] sm:$0xf]
    %v5582 = vld [vmem:[#allocation9 + $0x188] sm:$0xf]
    %v5583 = vld [vmem:[#allocation9 + $0x18c] sm:$0xf]
    %v5584 = vld [vmem:[#allocation9 + $0x190] sm:$0xf]
    %v5585 = vld [vmem:[#allocation9 + $0x194] sm:$0xf]
    %v5586 = vld [vmem:[#allocation9 + $0x198] sm:$0xf]
    %v5587 = vld [vmem:[#allocation9 + $0x19c] sm:$0xf]
    %v5588 = vld [vmem:[#allocation9 + $0x1a0] sm:$0xf]
    %v5589 = vld [vmem:[#allocation9 + $0x1a4] sm:$0xf]
    %v5590 = vld [vmem:[#allocation9 + $0x1a8] sm:$0xf]
    %v5591 = vld [vmem:[#allocation9 + $0x1ac] sm:$0xf]
    %v5592 = vld [vmem:[#allocation9 + $0x1b0] sm:$0xf]
    %v5593 = vld [vmem:[#allocation9 + $0x1b4] sm:$0xf]
    %v5594 = vld [vmem:[#allocation9 + $0x1b8] sm:$0xf]
    %v5595 = vld [vmem:[#allocation9 + $0x1bc] sm:$0xf]
    %v5596 = vld [vmem:[#allocation9 + $0x1c0] sm:$0xf]
    %v5597 = vld [vmem:[#allocation9 + $0x1c4] sm:$0xf]
    %v5598 = vld [vmem:[#allocation9 + $0x1c8] sm:$0xf]
    %v5599 = vld [vmem:[#allocation9 + $0x1cc] sm:$0xf]
    %v5600 = vld [vmem:[#allocation9 + $0x1d0] sm:$0xf]
    %v5601 = vld [vmem:[#allocation9 + $0x1d4] sm:$0xf]
    %v5602 = vld [vmem:[#allocation9 + $0x1d8] sm:$0xf]
    %v5603 = vld [vmem:[#allocation9 + $0x1dc] sm:$0xf]
    %v5604 = vld [vmem:[#allocation9 + $0x1e0] sm:$0xf]
    %v5605 = vld [vmem:[#allocation9 + $0x1e4] sm:$0xf]
    %v5606 = vld [vmem:[#allocation9 + $0x1e8] sm:$0xf]
    %v5607 = vld [vmem:[#allocation9 + $0x1ec] sm:$0xf]
    %v5608 = vld [vmem:[#allocation9 + $0x1f0] sm:$0xf]
    %v5609 = vld [vmem:[#allocation9 + $0x1f4] sm:$0xf]
    %v5610 = vld [vmem:[#allocation9 + $0x1f8] sm:$0xf]
    %v5611 = vld [vmem:[#allocation9 + $0x1fc] sm:$0xf]
    %v5612 = vld [vmem:[#allocation9 + $0x200] sm:$0xf]
    %v5613 = vld [vmem:[#allocation9 + $0x204] sm:$0xf]
    %v5614 = vld [vmem:[#allocation9 + $0x208] sm:$0xf]
    %v5615 = vld [vmem:[#allocation9 + $0x20c] sm:$0xf]
    %v5616 = vld [vmem:[#allocation9 + $0x210] sm:$0xf]
    %v5617 = vld [vmem:[#allocation9 + $0x214] sm:$0xf]
    %v5618 = vld [vmem:[#allocation9 + $0x218] sm:$0xf]
    %v5619 = vld [vmem:[#allocation9 + $0x21c] sm:$0xf]
    %v5620 = vld [vmem:[#allocation9 + $0x220] sm:$0xf]
    %v5621 = vld [vmem:[#allocation9 + $0x224] sm:$0xf]
    %v5622 = vld [vmem:[#allocation9 + $0x228] sm:$0xf]
    %v5623 = vld [vmem:[#allocation9 + $0x22c] sm:$0xf]
    %v5624 = vld [vmem:[#allocation9 + $0x230] sm:$0xf]
    %v5625 = vld [vmem:[#allocation9 + $0x234] sm:$0xf]
    %v5626 = vld [vmem:[#allocation9 + $0x238] sm:$0xf]
    %v5627 = vld [vmem:[#allocation9 + $0x23c] sm:$0xf]
    %v5708 = vunpack.c.l.b16 %v5404
    %v5709 = vunpack.c.h.b16 %v5404
    %v5710 = vunpack.c.l.b16 %v5405
    %v5711 = vunpack.c.h.b16 %v5405
    %v5712 = vunpack.c.l.b16 %v5406
    %v5713 = vunpack.c.h.b16 %v5406
    %v5714 = vunpack.c.l.b16 %v5407
    %v5715 = vunpack.c.h.b16 %v5407
    %v5716 = vunpack.c.l.b16 %v5408
    %v5717 = vunpack.c.l.b16 %v5409
    %v5718 = vunpack.c.h.b16 %v5409
    %v5719 = vunpack.c.l.b16 %v5410
    %v5720 = vunpack.c.h.b16 %v5410
    %v5721 = vunpack.c.l.b16 %v5411
    %v5722 = vunpack.c.h.b16 %v5411
    %v5723 = vunpack.c.l.b16 %v5412
    %v5724 = vunpack.c.h.b16 %v5412
    %v5725 = vunpack.c.l.b16 %v5413
    %v5726 = vunpack.c.l.b16 %v5414
    %v5727 = vunpack.c.h.b16 %v5414
    %v5728 = vunpack.c.l.b16 %v5415
    %v5729 = vunpack.c.h.b16 %v5415
    %v5730 = vunpack.c.l.b16 %v5416
    %v5731 = vunpack.c.h.b16 %v5416
    %v5732 = vunpack.c.l.b16 %v5417
    %v5733 = vunpack.c.h.b16 %v5417
    %v5734 = vunpack.c.l.b16 %v5418
    %v5735 = vunpack.c.l.b16 %v5419
    %v5736 = vunpack.c.h.b16 %v5419
    %v5737 = vunpack.c.l.b16 %v5420
    %v5738 = vunpack.c.h.b16 %v5420
    %v5739 = vunpack.c.l.b16 %v5421
    %v5740 = vunpack.c.h.b16 %v5421
    %v5741 = vunpack.c.l.b16 %v5422
    %v5742 = vunpack.c.h.b16 %v5422
    %v5743 = vunpack.c.l.b16 %v5423
    %v5744 = vunpack.c.l.b16 %v5424
    %v5745 = vunpack.c.h.b16 %v5424
    %v5746 = vunpack.c.l.b16 %v5425
    %v5747 = vunpack.c.h.b16 %v5425
    %v5748 = vunpack.c.l.b16 %v5426
    %v5749 = vunpack.c.h.b16 %v5426
    %v5750 = vunpack.c.l.b16 %v5427
    %v5751 = vunpack.c.h.b16 %v5427
    %v5752 = vunpack.c.l.b16 %v5428
    %v5753 = vunpack.c.l.b16 %v5429
    %v5754 = vunpack.c.h.b16 %v5429
    %v5755 = vunpack.c.l.b16 %v5430
    %v5756 = vunpack.c.h.b16 %v5430
    %v5757 = vunpack.c.l.b16 %v5431
    %v5758 = vunpack.c.h.b16 %v5431
    %v5759 = vunpack.c.l.b16 %v5432
    %v5760 = vunpack.c.h.b16 %v5432
    %v5761 = vunpack.c.l.b16 %v5433
    %v5762 = vunpack.c.l.b16 %v5434
    %v5763 = vunpack.c.h.b16 %v5434
    %v5764 = vunpack.c.l.b16 %v5435
    %v5765 = vunpack.c.h.b16 %v5435
    %v5766 = vunpack.c.l.b16 %v5436
    %v5767 = vunpack.c.h.b16 %v5436
    %v5768 = vunpack.c.l.b16 %v5437
    %v5769 = vunpack.c.h.b16 %v5437
    %v5770 = vunpack.c.l.b16 %v5438
    %v5771 = vunpack.c.l.b16 %v5439
    %v5772 = vunpack.c.h.b16 %v5439
    %v5773 = vunpack.c.l.b16 %v5440
    %v5774 = vunpack.c.h.b16 %v5440
    %v5775 = vunpack.c.l.b16 %v5441
    %v5776 = vunpack.c.h.b16 %v5441
    %v5777 = vunpack.c.l.b16 %v5442
    %v5778 = vunpack.c.h.b16 %v5442
    %v5779 = vunpack.c.l.b16 %v5443
    %v5780 = vunpack.c.l.b16 %v5444
    %v5781 = vunpack.c.h.b16 %v5444
    %v5782 = vunpack.c.l.b16 %v5445
    %v5783 = vunpack.c.h.b16 %v5445
    %v5784 = vunpack.c.l.b16 %v5446
    %v5785 = vunpack.c.h.b16 %v5446
    %v5786 = vunpack.c.l.b16 %v5447
    %v5787 = vunpack.c.h.b16 %v5447
    %v5788 = vunpack.c.l.b16 %v5448
    %v5789 = vunpack.c.l.b16 %v5449
    %v5790 = vunpack.c.h.b16 %v5449
    %v5791 = vunpack.c.l.b16 %v5450
    %v5792 = vunpack.c.h.b16 %v5450
    %v5793 = vunpack.c.l.b16 %v5451
    %v5794 = vunpack.c.h.b16 %v5451
    %v5795 = vunpack.c.l.b16 %v5452
    %v5796 = vunpack.c.h.b16 %v5452
    %v5797 = vunpack.c.l.b16 %v5453
    %v5798 = vunpack.c.l.b16 %v5454
    %v5799 = vunpack.c.h.b16 %v5454
    %v5800 = vunpack.c.l.b16 %v5455
    %v5801 = vunpack.c.h.b16 %v5455
    %v5802 = vunpack.c.l.b16 %v5456
    %v5803 = vunpack.c.h.b16 %v5456
    %v5804 = vunpack.c.l.b16 %v5457
    %v5805 = vunpack.c.h.b16 %v5457
    %v5806 = vunpack.c.l.b16 %v5458
    %v5807 = vunpack.c.l.b16 %v5459
    %v5808 = vunpack.c.h.b16 %v5459
    %v5809 = vunpack.c.l.b16 %v5460
    %v5810 = vunpack.c.h.b16 %v5460
    %v5811 = vunpack.c.l.b16 %v5461
    %v5812 = vunpack.c.h.b16 %v5461
    %v5813 = vunpack.c.l.b16 %v5462
    %v5814 = vunpack.c.h.b16 %v5462
    %v5815 = vunpack.c.l.b16 %v5463
    %v5816 = vunpack.c.l.b16 %v5464
    %v5817 = vunpack.c.h.b16 %v5464
    %v5818 = vunpack.c.l.b16 %v5465
    %v5819 = vunpack.c.h.b16 %v5465
    %v5820 = vunpack.c.l.b16 %v5466
    %v5821 = vunpack.c.h.b16 %v5466
    %v5822 = vunpack.c.l.b16 %v5467
    %v5823 = vunpack.c.h.b16 %v5467
    %v5824 = vunpack.c.l.b16 %v5468
    %v5825 = vunpack.c.l.b16 %v5469
    %v5826 = vunpack.c.h.b16 %v5469
    %v5827 = vunpack.c.l.b16 %v5470
    %v5828 = vunpack.c.h.b16 %v5470
    %v5829 = vunpack.c.l.b16 %v5471
    %v5830 = vunpack.c.h.b16 %v5471
    %v5831 = vunpack.c.l.b16 %v5472
    %v5832 = vunpack.c.h.b16 %v5472
    %v5833 = vunpack.c.l.b16 %v5473
    %v5834 = vunpack.c.l.b16 %v5474
    %v5835 = vunpack.c.h.b16 %v5474
    %v5836 = vunpack.c.l.b16 %v5475
    %v5837 = vunpack.c.h.b16 %v5475
    %v5838 = vunpack.c.l.b16 %v5476
    %v5839 = vunpack.c.h.b16 %v5476
    %v5840 = vunpack.c.l.b16 %v5477
    %v5841 = vunpack.c.h.b16 %v5477
    %v5842 = vunpack.c.l.b16 %v5478
    %v5843 = vunpack.c.l.b16 %v5479
    %v5844 = vunpack.c.h.b16 %v5479
    %v5845 = vunpack.c.l.b16 %v5480
    %v5846 = vunpack.c.h.b16 %v5480
    %v5847 = vunpack.c.l.b16 %v5481
    %v5848 = vunpack.c.h.b16 %v5481
    %v5849 = vunpack.c.l.b16 %v5482
    %v5850 = vunpack.c.h.b16 %v5482
    %v5851 = vunpack.c.l.b16 %v5483
    %v5852 = vpack.c.b16 %v5717, %v5708
    %v5853 = vpack.c.b16 %v5718, %v5709
    %v5854 = vpack.c.b16 %v5719, %v5710
    %v5855 = vpack.c.b16 %v5720, %v5711
    %v5856 = vpack.c.b16 %v5721, %v5712
    %v5857 = vpack.c.b16 %v5722, %v5713
    %v5858 = vpack.c.b16 %v5723, %v5714
    %v5859 = vpack.c.b16 %v5724, %v5715
    %v5860 = vpack.c.b16 %v5725, %v5716
    %v5861 = vpack.c.b16 %v5735, %v5726
    %v5862 = vpack.c.b16 %v5736, %v5727
    %v5863 = vpack.c.b16 %v5737, %v5728
    %v5864 = vpack.c.b16 %v5738, %v5729
    %v5865 = vpack.c.b16 %v5739, %v5730
    %v5866 = vpack.c.b16 %v5740, %v5731
    %v5867 = vpack.c.b16 %v5741, %v5732
    %v5868 = vpack.c.b16 %v5742, %v5733
    %v5869 = vpack.c.b16 %v5743, %v5734
    %v5870 = vpack.c.b16 %v5753, %v5744
    %v5871 = vpack.c.b16 %v5754, %v5745
    %v5872 = vpack.c.b16 %v5755, %v5746
    %v5873 = vpack.c.b16 %v5756, %v5747
    %v5874 = vpack.c.b16 %v5757, %v5748
    %v5875 = vpack.c.b16 %v5758, %v5749
    %v5876 = vpack.c.b16 %v5759, %v5750
    %v5877 = vpack.c.b16 %v5760, %v5751
    %v5878 = vpack.c.b16 %v5761, %v5752
    %v5879 = vpack.c.b16 %v5771, %v5762
    %v5880 = vpack.c.b16 %v5772, %v5763
    %v5881 = vpack.c.b16 %v5773, %v5764
    %v5882 = vpack.c.b16 %v5774, %v5765
    %v5883 = vpack.c.b16 %v5775, %v5766
    %v5884 = vpack.c.b16 %v5776, %v5767
    %v5885 = vpack.c.b16 %v5777, %v5768
    %v5886 = vpack.c.b16 %v5778, %v5769
    %v5887 = vpack.c.b16 %v5779, %v5770
    %v5888 = vpack.c.b16 %v5789, %v5780
    %v5889 = vpack.c.b16 %v5790, %v5781
    %v5890 = vpack.c.b16 %v5791, %v5782
    %v5891 = vpack.c.b16 %v5792, %v5783
    %v5892 = vpack.c.b16 %v5793, %v5784
    %v5893 = vpack.c.b16 %v5794, %v5785
    %v5894 = vpack.c.b16 %v5795, %v5786
    %v5895 = vpack.c.b16 %v5796, %v5787
    %v5896 = vpack.c.b16 %v5797, %v5788
    %v5897 = vpack.c.b16 %v5807, %v5798
    %v5898 = vpack.c.b16 %v5808, %v5799
    %v5899 = vpack.c.b16 %v5809, %v5800
    %v5900 = vpack.c.b16 %v5810, %v5801
    %v5901 = vpack.c.b16 %v5811, %v5802
    %v5902 = vpack.c.b16 %v5812, %v5803
    %v5903 = vpack.c.b16 %v5813, %v5804
    %v5904 = vpack.c.b16 %v5814, %v5805
    %v5905 = vpack.c.b16 %v5815, %v5806
    %v5906 = vpack.c.b16 %v5825, %v5816
    %v5907 = vpack.c.b16 %v5826, %v5817
    %v5908 = vpack.c.b16 %v5827, %v5818
    %v5909 = vpack.c.b16 %v5828, %v5819
    %v5910 = vpack.c.b16 %v5829, %v5820
    %v5911 = vpack.c.b16 %v5830, %v5821
    %v5912 = vpack.c.b16 %v5831, %v5822
    %v5913 = vpack.c.b16 %v5832, %v5823
    %v5914 = vpack.c.b16 %v5833, %v5824
    %v5915 = vpack.c.b16 %v5843, %v5834
    %v5916 = vpack.c.b16 %v5844, %v5835
    %v5917 = vpack.c.b16 %v5845, %v5836
    %v5918 = vpack.c.b16 %v5846, %v5837
    %v5919 = vpack.c.b16 %v5847, %v5838
    %v5920 = vpack.c.b16 %v5848, %v5839
    %v5921 = vpack.c.b16 %v5849, %v5840
    %v5922 = vpack.c.b16 %v5850, %v5841
    %v5923 = vpack.c.b16 %v5851, %v5842
    %v6140 = vunpack.c.l.b16 %v5484
    %v6141 = vunpack.c.l.b16 %v5485
    %v6142 = vunpack.c.l.b16 %v5486
    %v6143 = vunpack.c.l.b16 %v5487
    %v6144 = vunpack.c.l.b16 %v5488
    %v6145 = vunpack.c.l.b16 %v5489
    %v6146 = vunpack.c.l.b16 %v5490
    %v6147 = vunpack.c.l.b16 %v5491
    %v6148 = vunpack.c.l.b16 %v5492
    %v6149 = vunpack.c.l.b16 %v5493
    %v6150 = vunpack.c.l.b16 %v5494
    %v6151 = vunpack.c.l.b16 %v5495
    %v6152 = vunpack.c.l.b16 %v5496
    %v6153 = vunpack.c.l.b16 %v5497
    %v6154 = vunpack.c.l.b16 %v5498
    %v6155 = vunpack.c.l.b16 %v5499
    %v6156 = vunpack.c.l.b16 %v5500
    %v6157 = vunpack.c.l.b16 %v5501
    %v6158 = vunpack.c.l.b16 %v5502
    %v6159 = vunpack.c.l.b16 %v5503
    %v6160 = vunpack.c.l.b16 %v5504
    %v6161 = vunpack.c.l.b16 %v5505
    %v6162 = vunpack.c.l.b16 %v5506
    %v6163 = vunpack.c.l.b16 %v5507
    %v6164 = vunpack.c.l.b16 %v5508
    %v6165 = vunpack.c.l.b16 %v5509
    %v6166 = vunpack.c.l.b16 %v5510
    %v6167 = vunpack.c.l.b16 %v5511
    %v6168 = vunpack.c.l.b16 %v5512
    %v6169 = vunpack.c.l.b16 %v5513
    %v6170 = vunpack.c.l.b16 %v5514
    %v6171 = vunpack.c.l.b16 %v5515
    %v6172 = vunpack.c.l.b16 %v5516
    %v6173 = vunpack.c.l.b16 %v5517
    %v6174 = vunpack.c.l.b16 %v5518
    %v6175 = vunpack.c.l.b16 %v5519
    %v6176 = vunpack.c.l.b16 %v5520
    %v6177 = vunpack.c.l.b16 %v5521
    %v6178 = vunpack.c.l.b16 %v5522
    %v6179 = vunpack.c.l.b16 %v5523
    %v6180 = vunpack.c.l.b16 %v5524
    %v6181 = vunpack.c.l.b16 %v5525
    %v6182 = vunpack.c.l.b16 %v5526
    %v6183 = vunpack.c.l.b16 %v5527
    %v6184 = vunpack.c.l.b16 %v5528
    %v6185 = vunpack.c.l.b16 %v5529
    %v6186 = vunpack.c.l.b16 %v5530
    %v6187 = vunpack.c.l.b16 %v5531
    %v6188 = vunpack.c.l.b16 %v5532
    %v6189 = vunpack.c.l.b16 %v5533
    %v6190 = vunpack.c.l.b16 %v5534
    %v6191 = vunpack.c.l.b16 %v5535
    %v6192 = vunpack.c.l.b16 %v5536
    %v6193 = vunpack.c.l.b16 %v5537
    %v6194 = vunpack.c.l.b16 %v5538
    %v6195 = vunpack.c.l.b16 %v5539
    %v6196 = vunpack.c.l.b16 %v5540
    %v6197 = vunpack.c.l.b16 %v5541
    %v6198 = vunpack.c.l.b16 %v5542
    %v6199 = vunpack.c.l.b16 %v5543
    %v6200 = vunpack.c.l.b16 %v5544
    %v6201 = vunpack.c.l.b16 %v5545
    %v6202 = vunpack.c.l.b16 %v5546
    %v6203 = vunpack.c.l.b16 %v5547
    %v6204 = vunpack.c.l.b16 %v5548
    %v6205 = vunpack.c.l.b16 %v5549
    %v6206 = vunpack.c.l.b16 %v5550
    %v6207 = vunpack.c.l.b16 %v5551
    %v6208 = vunpack.c.l.b16 %v5552
    %v6209 = vunpack.c.l.b16 %v5553
    %v6210 = vunpack.c.l.b16 %v5554
    %v6211 = vunpack.c.l.b16 %v5555
    %v6212 = vunpack.c.l.b16 %v5556
    %v6213 = vunpack.c.l.b16 %v5557
    %v6214 = vunpack.c.l.b16 %v5558
    %v6215 = vunpack.c.l.b16 %v5559
    %v6216 = vunpack.c.l.b16 %v5560
    %v6217 = vunpack.c.l.b16 %v5561
    %v6218 = vunpack.c.l.b16 %v5562
    %v6219 = vunpack.c.l.b16 %v5563
    %v6220 = vunpack.c.l.b16 %v5564
    %v6221 = vunpack.c.l.b16 %v5565
    %v6222 = vunpack.c.l.b16 %v5566
    %v6223 = vunpack.c.l.b16 %v5567
    %v6224 = vunpack.c.l.b16 %v5568
    %v6225 = vunpack.c.l.b16 %v5569
    %v6226 = vunpack.c.l.b16 %v5570
    %v6227 = vunpack.c.l.b16 %v5571
    %v6228 = vunpack.c.l.b16 %v5572
    %v6229 = vunpack.c.l.b16 %v5573
    %v6230 = vunpack.c.l.b16 %v5574
    %v6231 = vunpack.c.l.b16 %v5575
    %v6232 = vunpack.c.l.b16 %v5576
    %v6233 = vunpack.c.l.b16 %v5577
    %v6234 = vunpack.c.l.b16 %v5578
    %v6235 = vunpack.c.l.b16 %v5579
    %v6236 = vunpack.c.l.b16 %v5580
    %v6237 = vunpack.c.l.b16 %v5581
    %v6238 = vunpack.c.l.b16 %v5582
    %v6239 = vunpack.c.l.b16 %v5583
    %v6240 = vunpack.c.l.b16 %v5584
    %v6241 = vunpack.c.l.b16 %v5585
    %v6242 = vunpack.c.l.b16 %v5586
    %v6243 = vunpack.c.l.b16 %v5587
    %v6244 = vunpack.c.l.b16 %v5588
    %v6245 = vunpack.c.l.b16 %v5589
    %v6246 = vunpack.c.l.b16 %v5590
    %v6247 = vunpack.c.l.b16 %v5591
    %v6248 = vunpack.c.l.b16 %v5592
    %v6249 = vunpack.c.l.b16 %v5593
    %v6250 = vunpack.c.l.b16 %v5594
    %v6251 = vunpack.c.l.b16 %v5595
    %v6252 = vunpack.c.l.b16 %v5596
    %v6253 = vunpack.c.l.b16 %v5597
    %v6254 = vunpack.c.l.b16 %v5598
    %v6255 = vunpack.c.l.b16 %v5599
    %v6256 = vunpack.c.l.b16 %v5600
    %v6257 = vunpack.c.l.b16 %v5601
    %v6258 = vunpack.c.l.b16 %v5602
    %v6259 = vunpack.c.l.b16 %v5603
    %v6260 = vunpack.c.l.b16 %v5604
    %v6261 = vunpack.c.l.b16 %v5605
    %v6262 = vunpack.c.l.b16 %v5606
    %v6263 = vunpack.c.l.b16 %v5607
    %v6264 = vunpack.c.l.b16 %v5608
    %v6265 = vunpack.c.l.b16 %v5609
    %v6266 = vunpack.c.l.b16 %v5610
    %v6267 = vunpack.c.l.b16 %v5611
    %v6268 = vunpack.c.l.b16 %v5612
    %v6269 = vunpack.c.l.b16 %v5613
    %v6270 = vunpack.c.l.b16 %v5614
    %v6271 = vunpack.c.l.b16 %v5615
    %v6272 = vunpack.c.l.b16 %v5616
    %v6273 = vunpack.c.l.b16 %v5617
    %v6274 = vunpack.c.l.b16 %v5618
    %v6275 = vunpack.c.l.b16 %v5619
    %v6276 = vunpack.c.l.b16 %v5620
    %v6277 = vunpack.c.l.b16 %v5621
    %v6278 = vunpack.c.l.b16 %v5622
    %v6279 = vunpack.c.l.b16 %v5623
    %v6280 = vunpack.c.l.b16 %v5624
    %v6281 = vunpack.c.l.b16 %v5625
    %v6282 = vunpack.c.l.b16 %v5626
    %v6283 = vunpack.c.l.b16 %v5627
    %v6284 = vpack.c.b16 %v6141, %v6140
    %v6285 = vpack.c.b16 %v6143, %v6142
    %v6286 = vpack.c.b16 %v6145, %v6144
    %v6287 = vpack.c.b16 %v6147, %v6146
    %v6288 = vpack.c.b16 %v6149, %v6148
    %v6289 = vpack.c.b16 %v6151, %v6150
    %v6290 = vpack.c.b16 %v6153, %v6152
    %v6291 = vpack.c.b16 %v6155, %v6154
    %v6292 = vpack.c.b16 %v6157, %v6156
    %v6293 = vpack.c.b16 %v6159, %v6158
    %v6294 = vpack.c.b16 %v6161, %v6160
    %v6295 = vpack.c.b16 %v6163, %v6162
    %v6296 = vpack.c.b16 %v6165, %v6164
    %v6297 = vpack.c.b16 %v6167, %v6166
    %v6298 = vpack.c.b16 %v6169, %v6168
    %v6299 = vpack.c.b16 %v6171, %v6170
    %v6300 = vpack.c.b16 %v6173, %v6172
    %v6301 = vpack.c.b16 %v6175, %v6174
    %v6302 = vpack.c.b16 %v6177, %v6176
    %v6303 = vpack.c.b16 %v6179, %v6178
    %v6304 = vpack.c.b16 %v6181, %v6180
    %v6305 = vpack.c.b16 %v6183, %v6182
    %v6306 = vpack.c.b16 %v6185, %v6184
    %v6307 = vpack.c.b16 %v6187, %v6186
    %v6308 = vpack.c.b16 %v6189, %v6188
    %v6309 = vpack.c.b16 %v6191, %v6190
    %v6310 = vpack.c.b16 %v6193, %v6192
    %v6311 = vpack.c.b16 %v6195, %v6194
    %v6312 = vpack.c.b16 %v6197, %v6196
    %v6313 = vpack.c.b16 %v6199, %v6198
    %v6314 = vpack.c.b16 %v6201, %v6200
    %v6315 = vpack.c.b16 %v6203, %v6202
    %v6316 = vpack.c.b16 %v6205, %v6204
    %v6317 = vpack.c.b16 %v6207, %v6206
    %v6318 = vpack.c.b16 %v6209, %v6208
    %v6319 = vpack.c.b16 %v6211, %v6210
    %v6320 = vpack.c.b16 %v6213, %v6212
    %v6321 = vpack.c.b16 %v6215, %v6214
    %v6322 = vpack.c.b16 %v6217, %v6216
    %v6323 = vpack.c.b16 %v6219, %v6218
    %v6324 = vpack.c.b16 %v6221, %v6220
    %v6325 = vpack.c.b16 %v6223, %v6222
    %v6326 = vpack.c.b16 %v6225, %v6224
    %v6327 = vpack.c.b16 %v6227, %v6226
    %v6328 = vpack.c.b16 %v6229, %v6228
    %v6329 = vpack.c.b16 %v6231, %v6230
    %v6330 = vpack.c.b16 %v6233, %v6232
    %v6331 = vpack.c.b16 %v6235, %v6234
    %v6332 = vpack.c.b16 %v6237, %v6236
    %v6333 = vpack.c.b16 %v6239, %v6238
    %v6334 = vpack.c.b16 %v6241, %v6240
    %v6335 = vpack.c.b16 %v6243, %v6242
    %v6336 = vpack.c.b16 %v6245, %v6244
    %v6337 = vpack.c.b16 %v6247, %v6246
    %v6338 = vpack.c.b16 %v6249, %v6248
    %v6339 = vpack.c.b16 %v6251, %v6250
    %v6340 = vpack.c.b16 %v6253, %v6252
    %v6341 = vpack.c.b16 %v6255, %v6254
    %v6342 = vpack.c.b16 %v6257, %v6256
    %v6343 = vpack.c.b16 %v6259, %v6258
    %v6344 = vpack.c.b16 %v6261, %v6260
    %v6345 = vpack.c.b16 %v6263, %v6262
    %v6346 = vpack.c.b16 %v6265, %v6264
    %v6347 = vpack.c.b16 %v6267, %v6266
    %v6348 = vpack.c.b16 %v6269, %v6268
    %v6349 = vpack.c.b16 %v6271, %v6270
    %v6350 = vpack.c.b16 %v6273, %v6272
    %v6351 = vpack.c.b16 %v6275, %v6274
    %v6352 = vpack.c.b16 %v6277, %v6276
    %v6353 = vpack.c.b16 %v6279, %v6278
    %v6354 = vpack.c.b16 %v6281, %v6280
    %v6355 = vpack.c.b16 %v6283, %v6282
    %6428 = vmatprep.subr.bf16.mxu0 0
    %6429 = vmatpush1.bf16.msra.mxu0 %v6291
    %6430 = vmatprep.subr.bf16.mxu0 0
    %6431 = vmatpush1.bf16.msra.mxu0 %v6290
    %6432 = vmatprep.subr.bf16.mxu0 0
    %6433 = vmatpush1.bf16.msra.mxu0 %v6289
    %6434 = vmatprep.subr.bf16.mxu0 0
    %6435 = vmatpush1.bf16.msra.mxu0 %v6288
    %6436 = vmatprep.subr.bf16.mxu0 0
    %6437 = vmatpush1.bf16.msra.mxu0 %v6287
    %6438 = vmatprep.subr.bf16.mxu0 0
    %6439 = vmatpush1.bf16.msra.mxu0 %v6286
    %6440 = vmatprep.subr.bf16.mxu0 0
    %6441 = vmatpush1.bf16.msra.mxu0 %v6285
    %6442 = vmatprep.subr.bf16.mxu0 0
    %6443 = vmatpush1.bf16.msra.mxu0 %v6284
    %6444 = vmatprep.subr.bf16.mxu0 0
    %6445 = vmatpush2.bf16.msra.mxu0 %v6299
    %6446 = vmatprep.subr.bf16.mxu0 0
    %6447 = vmatpush2.bf16.msra.mxu0 %v6298
    %6448 = vmatprep.subr.bf16.mxu0 0
    %6449 = vmatpush2.bf16.msra.mxu0 %v6297
    %6450 = vmatprep.subr.bf16.mxu0 0
    %6451 = vmatpush2.bf16.msra.mxu0 %v6296
    %6452 = vmatprep.subr.bf16.mxu0 0
    %6453 = vmatpush2.bf16.msra.mxu0 %v6295
    %6454 = vmatprep.subr.bf16.mxu0 0
    %6455 = vmatpush2.bf16.msra.mxu0 %v6294
    %6456 = vmatprep.subr.bf16.mxu0 0
    %6457 = vmatpush2.bf16.msra.mxu0 %v6293
    %6458 = vmatprep.subr.bf16.mxu0 0
    %6459 = vmatpush2.bf16.msra.mxu0 %v6292
    %6460 = vmatprep.mubr.bf16.mxu0 %v5853
    %6461 = vmatmul.mubr.bf16.gmra.mxu0 %v5852
    %v6462 = vpop.f32.mrf.mxu0
    %v6463 = vadd.f32 0.0, %v6462
    %v6464 = vpop.f32.mrf.mxu0
    %v6465 = vpop.f32.mrf.mxu0
    %v6466 = vadd.f32 0.0, %v6465
    %v6467 = vpop.f32.mrf.mxu0
    %6468 = vmatprep.mubr.bf16.mxu0 %v5862
    %6469 = vmatmul.mubr.bf16.gmra.mxu0 %v5861
    %v6470 = vpop.f32.mrf.mxu0
    %v6471 = vadd.f32 0.0, %v6470
    %v6472 = vpop.f32.mrf.mxu0
    %v6473 = vpop.f32.mrf.mxu0
    %v6474 = vadd.f32 0.0, %v6473
    %v6475 = vpop.f32.mrf.mxu0
    %6476 = vmatprep.mubr.bf16.mxu0 %v5871
    %6477 = vmatmul.mubr.bf16.gmra.mxu0 %v5870
    %v6478 = vpop.f32.mrf.mxu0
    %v6479 = vadd.f32 0.0, %v6478
    %v6480 = vpop.f32.mrf.mxu0
    %v6481 = vpop.f32.mrf.mxu0
    %v6482 = vadd.f32 0.0, %v6481
    %v6483 = vpop.f32.mrf.mxu0
    %6484 = vmatprep.mubr.bf16.mxu0 %v5880
    %6485 = vmatmul.mubr.bf16.gmra.mxu0 %v5879
    %v6486 = vpop.f32.mrf.mxu0
    %v6487 = vadd.f32 0.0, %v6486
    %v6488 = vpop.f32.mrf.mxu0
    %v6489 = vpop.f32.mrf.mxu0
    %v6490 = vadd.f32 0.0, %v6489
    %v6491 = vpop.f32.mrf.mxu0
    %6492 = vmatprep.mubr.bf16.mxu0 %v5889
    %6493 = vmatmul.mubr.bf16.gmra.mxu0 %v5888
    %v6494 = vpop.f32.mrf.mxu0
    %v6495 = vadd.f32 0.0, %v6494
    %v6496 = vpop.f32.mrf.mxu0
    %v6497 = vpop.f32.mrf.mxu0
    %v6498 = vadd.f32 0.0, %v6497
    %v6499 = vpop.f32.mrf.mxu0
    %6500 = vmatprep.mubr.bf16.mxu0 %v5898
    %6501 = vmatmul.mubr.bf16.gmra.mxu0 %v5897
    %v6502 = vpop.f32.mrf.mxu0
    %v6503 = vadd.f32 0.0, %v6502
    %v6504 = vpop.f32.mrf.mxu0
    %v6505 = vpop.f32.mrf.mxu0
    %v6506 = vadd.f32 0.0, %v6505
    %v6507 = vpop.f32.mrf.mxu0
    %6508 = vmatprep.mubr.bf16.mxu0 %v5907
    %6509 = vmatmul.mubr.bf16.gmra.mxu0 %v5906
    %v6510 = vpop.f32.mrf.mxu0
    %v6511 = vadd.f32 0.0, %v6510
    %v6512 = vpop.f32.mrf.mxu0
    %v6513 = vpop.f32.mrf.mxu0
    %v6514 = vadd.f32 0.0, %v6513
    %v6515 = vpop.f32.mrf.mxu0
    %6516 = vmatprep.mubr.bf16.mxu0 %v5916
    %6517 = vmatmul.mubr.bf16.gmra.mxu0 %v5915
    %v6518 = vpop.f32.mrf.mxu0
    %v6519 = vadd.f32 0.0, %v6518
    %v6520 = vpop.f32.mrf.mxu0
    %v6521 = vpop.f32.mrf.mxu0
    %v6522 = vadd.f32 0.0, %v6521
    %v6523 = vpop.f32.mrf.mxu0
    %6524 = vdwg.mxu0
    %6525 = vmatprep.subr.bf16.mxu0 0
    %6526 = vmatpush1.bf16.msra.mxu0 %v6307
    %6527 = vmatprep.subr.bf16.mxu0 0
    %6528 = vmatpush1.bf16.msra.mxu0 %v6306
    %6529 = vmatprep.subr.bf16.mxu0 0
    %6530 = vmatpush1.bf16.msra.mxu0 %v6305
    %6531 = vmatprep.subr.bf16.mxu0 0
    %6532 = vmatpush1.bf16.msra.mxu0 %v6304
    %6533 = vmatprep.subr.bf16.mxu0 0
    %6534 = vmatpush1.bf16.msra.mxu0 %v6303
    %6535 = vmatprep.subr.bf16.mxu0 0
    %6536 = vmatpush1.bf16.msra.mxu0 %v6302
    %6537 = vmatprep.subr.bf16.mxu0 0
    %6538 = vmatpush1.bf16.msra.mxu0 %v6301
    %6539 = vmatprep.subr.bf16.mxu0 0
    %6540 = vmatpush1.bf16.msra.mxu0 %v6300
    %6541 = vmatprep.subr.bf16.mxu0 0
    %6542 = vmatpush2.bf16.msra.mxu0 %v6315
    %6543 = vmatprep.subr.bf16.mxu0 0
    %6544 = vmatpush2.bf16.msra.mxu0 %v6314
    %6545 = vmatprep.subr.bf16.mxu0 0
    %6546 = vmatpush2.bf16.msra.mxu0 %v6313
    %6547 = vmatprep.subr.bf16.mxu0 0
    %6548 = vmatpush2.bf16.msra.mxu0 %v6312
    %6549 = vmatprep.subr.bf16.mxu0 0
    %6550 = vmatpush2.bf16.msra.mxu0 %v6311
    %6551 = vmatprep.subr.bf16.mxu0 0
    %6552 = vmatpush2.bf16.msra.mxu0 %v6310
    %6553 = vmatprep.subr.bf16.mxu0 0
    %6554 = vmatpush2.bf16.msra.mxu0 %v6309
    %6555 = vmatprep.subr.bf16.mxu0 0
    %6556 = vmatpush2.bf16.msra.mxu0 %v6308
    %6557 = vmatprep.mubr.bf16.mxu0 %v5855
    %6558 = vmatmul.mubr.bf16.gmra.mxu0 %v5854
    %v6559 = vpop.f32.mrf.mxu0
    %v6560 = vadd.f32 %v6463, %v6559
    %v6561 = vpop.f32.mrf.mxu0
    %v6562 = vpop.f32.mrf.mxu0
    %v6563 = vadd.f32 %v6466, %v6562
    %v6564 = vpop.f32.mrf.mxu0
    %6565 = vmatprep.mubr.bf16.mxu0 %v5864
    %6566 = vmatmul.mubr.bf16.gmra.mxu0 %v5863
    %v6567 = vpop.f32.mrf.mxu0
    %v6568 = vadd.f32 %v6471, %v6567
    %v6569 = vpop.f32.mrf.mxu0
    %v6570 = vpop.f32.mrf.mxu0
    %v6571 = vadd.f32 %v6474, %v6570
    %v6572 = vpop.f32.mrf.mxu0
    %6573 = vmatprep.mubr.bf16.mxu0 %v5873
    %6574 = vmatmul.mubr.bf16.gmra.mxu0 %v5872
    %v6575 = vpop.f32.mrf.mxu0
    %v6576 = vadd.f32 %v6479, %v6575
    %v6577 = vpop.f32.mrf.mxu0
    %v6578 = vpop.f32.mrf.mxu0
    %v6579 = vadd.f32 %v6482, %v6578
    %v6580 = vpop.f32.mrf.mxu0
    %6581 = vmatprep.mubr.bf16.mxu0 %v5882
    %6582 = vmatmul.mubr.bf16.gmra.mxu0 %v5881
    %v6583 = vpop.f32.mrf.mxu0
    %v6584 = vadd.f32 %v6487, %v6583
    %v6585 = vpop.f32.mrf.mxu0
    %v6586 = vpop.f32.mrf.mxu0
    %v6587 = vadd.f32 %v6490, %v6586
    %v6588 = vpop.f32.mrf.mxu0
    %6589 = vmatprep.mubr.bf16.mxu0 %v5891
    %6590 = vmatmul.mubr.bf16.gmra.mxu0 %v5890
    %v6591 = vpop.f32.mrf.mxu0
    %v6592 = vadd.f32 %v6495, %v6591
    %v6593 = vpop.f32.mrf.mxu0
    %v6594 = vpop.f32.mrf.mxu0
    %v6595 = vadd.f32 %v6498, %v6594
    %v6596 = vpop.f32.mrf.mxu0
    %6597 = vmatprep.mubr.bf16.mxu0 %v5900
    %6598 = vmatmul.mubr.bf16.gmra.mxu0 %v5899
    %v6599 = vpop.f32.mrf.mxu0
    %v6600 = vadd.f32 %v6503, %v6599
    %v6601 = vpop.f32.mrf.mxu0
    %v6602 = vpop.f32.mrf.mxu0
    %v6603 = vadd.f32 %v6506, %v6602
    %v6604 = vpop.f32.mrf.mxu0
    %6605 = vmatprep.mubr.bf16.mxu0 %v5909
    %6606 = vmatmul.mubr.bf16.gmra.mxu0 %v5908
    %v6607 = vpop.f32.mrf.mxu0
    %v6608 = vadd.f32 %v6511, %v6607
    %v6609 = vpop.f32.mrf.mxu0
    %v6610 = vpop.f32.mrf.mxu0
    %v6611 = vadd.f32 %v6514, %v6610
    %v6612 = vpop.f32.mrf.mxu0
    %6613 = vmatprep.mubr.bf16.mxu0 %v5918
    %6614 = vmatmul.mubr.bf16.gmra.mxu0 %v5917
    %v6615 = vpop.f32.mrf.mxu0
    %v6616 = vadd.f32 %v6519, %v6615
    %v6617 = vpop.f32.mrf.mxu0
    %v6618 = vpop.f32.mrf.mxu0
    %v6619 = vadd.f32 %v6522, %v6618
    %v6620 = vpop.f32.mrf.mxu0
    %6621 = vdwg.mxu0
    %6622 = vmatprep.subr.bf16.mxu0 0
    %6623 = vmatpush1.bf16.msra.mxu0 %v6323
    %6624 = vmatprep.subr.bf16.mxu0 0
    %6625 = vmatpush1.bf16.msra.mxu0 %v6322
    %6626 = vmatprep.subr.bf16.mxu0 0
    %6627 = vmatpush1.bf16.msra.mxu0 %v6321
    %6628 = vmatprep.subr.bf16.mxu0 0
    %6629 = vmatpush1.bf16.msra.mxu0 %v6320
    %6630 = vmatprep.subr.bf16.mxu0 0
    %6631 = vmatpush1.bf16.msra.mxu0 %v6319
    %6632 = vmatprep.subr.bf16.mxu0 0
    %6633 = vmatpush1.bf16.msra.mxu0 %v6318
    %6634 = vmatprep.subr.bf16.mxu0 0
    %6635 = vmatpush1.bf16.msra.mxu0 %v6317
    %6636 = vmatprep.subr.bf16.mxu0 0
    %6637 = vmatpush1.bf16.msra.mxu0 %v6316
    %6638 = vmatprep.subr.bf16.mxu0 0
    %6639 = vmatpush2.bf16.msra.mxu0 %v6331
    %6640 = vmatprep.subr.bf16.mxu0 0
    %6641 = vmatpush2.bf16.msra.mxu0 %v6330
    %6642 = vmatprep.subr.bf16.mxu0 0
    %6643 = vmatpush2.bf16.msra.mxu0 %v6329
    %6644 = vmatprep.subr.bf16.mxu0 0
    %6645 = vmatpush2.bf16.msra.mxu0 %v6328
    %6646 = vmatprep.subr.bf16.mxu0 0
    %6647 = vmatpush2.bf16.msra.mxu0 %v6327
    %6648 = vmatprep.subr.bf16.mxu0 0
    %6649 = vmatpush2.bf16.msra.mxu0 %v6326
    %6650 = vmatprep.subr.bf16.mxu0 0
    %6651 = vmatpush2.bf16.msra.mxu0 %v6325
    %6652 = vmatprep.subr.bf16.mxu0 0
    %6653 = vmatpush2.bf16.msra.mxu0 %v6324
    %6654 = vmatprep.mubr.bf16.mxu0 %v5857
    %6655 = vmatmul.mubr.bf16.gmra.mxu0 %v5856
    %v6656 = vpop.f32.mrf.mxu0
    %v6657 = vadd.f32 %v6560, %v6656
    %v6658 = vpop.f32.mrf.mxu0
    %v6659 = vpop.f32.mrf.mxu0
    %v6660 = vadd.f32 %v6563, %v6659
    %v6661 = vpop.f32.mrf.mxu0
    %6662 = vmatprep.mubr.bf16.mxu0 %v5866
    %6663 = vmatmul.mubr.bf16.gmra.mxu0 %v5865
    %v6664 = vpop.f32.mrf.mxu0
    %v6665 = vadd.f32 %v6568, %v6664
    %v6666 = vpop.f32.mrf.mxu0
    %v6667 = vpop.f32.mrf.mxu0
    %v6668 = vadd.f32 %v6571, %v6667
    %v6669 = vpop.f32.mrf.mxu0
    %6670 = vmatprep.mubr.bf16.mxu0 %v5875
    %6671 = vmatmul.mubr.bf16.gmra.mxu0 %v5874
    %v6672 = vpop.f32.mrf.mxu0
    %v6673 = vadd.f32 %v6576, %v6672
    %v6674 = vpop.f32.mrf.mxu0
    %v6675 = vpop.f32.mrf.mxu0
    %v6676 = vadd.f32 %v6579, %v6675
    %v6677 = vpop.f32.mrf.mxu0
    %6678 = vmatprep.mubr.bf16.mxu0 %v5884
    %6679 = vmatmul.mubr.bf16.gmra.mxu0 %v5883
    %v6680 = vpop.f32.mrf.mxu0
    %v6681 = vadd.f32 %v6584, %v6680
    %v6682 = vpop.f32.mrf.mxu0
    %v6683 = vpop.f32.mrf.mxu0
    %v6684 = vadd.f32 %v6587, %v6683
    %v6685 = vpop.f32.mrf.mxu0
    %6686 = vmatprep.mubr.bf16.mxu0 %v5893
    %6687 = vmatmul.mubr.bf16.gmra.mxu0 %v5892
    %v6688 = vpop.f32.mrf.mxu0
    %v6689 = vadd.f32 %v6592, %v6688
    %v6690 = vpop.f32.mrf.mxu0
    %v6691 = vpop.f32.mrf.mxu0
    %v6692 = vadd.f32 %v6595, %v6691
    %v6693 = vpop.f32.mrf.mxu0
    %6694 = vmatprep.mubr.bf16.mxu0 %v5902
    %6695 = vmatmul.mubr.bf16.gmra.mxu0 %v5901
    %v6696 = vpop.f32.mrf.mxu0
    %v6697 = vadd.f32 %v6600, %v6696
    %v6698 = vpop.f32.mrf.mxu0
    %v6699 = vpop.f32.mrf.mxu0
    %v6700 = vadd.f32 %v6603, %v6699
    %v6701 = vpop.f32.mrf.mxu0
    %6702 = vmatprep.mubr.bf16.mxu0 %v5911
    %6703 = vmatmul.mubr.bf16.gmra.mxu0 %v5910
    %v6704 = vpop.f32.mrf.mxu0
    %v6705 = vadd.f32 %v6608, %v6704
    %v6706 = vpop.f32.mrf.mxu0
    %v6707 = vpop.f32.mrf.mxu0
    %v6708 = vadd.f32 %v6611, %v6707
    %v6709 = vpop.f32.mrf.mxu0
    %6710 = vmatprep.mubr.bf16.mxu0 %v5920
    %6711 = vmatmul.mubr.bf16.gmra.mxu0 %v5919
    %v6712 = vpop.f32.mrf.mxu0
    %v6713 = vadd.f32 %v6616, %v6712
    %v6714 = vpop.f32.mrf.mxu0
    %v6715 = vpop.f32.mrf.mxu0
    %v6716 = vadd.f32 %v6619, %v6715
    %v6717 = vpop.f32.mrf.mxu0
    %6718 = vdwg.mxu0
    %6719 = vmatprep.subr.bf16.mxu0 0
    %6720 = vmatpush1.bf16.msra.mxu0 %v6339
    %6721 = vmatprep.subr.bf16.mxu0 0
    %6722 = vmatpush1.bf16.msra.mxu0 %v6338
    %6723 = vmatprep.subr.bf16.mxu0 0
    %6724 = vmatpush1.bf16.msra.mxu0 %v6337
    %6725 = vmatprep.subr.bf16.mxu0 0
    %6726 = vmatpush1.bf16.msra.mxu0 %v6336
    %6727 = vmatprep.subr.bf16.mxu0 0
    %6728 = vmatpush1.bf16.msra.mxu0 %v6335
    %6729 = vmatprep.subr.bf16.mxu0 0
    %6730 = vmatpush1.bf16.msra.mxu0 %v6334
    %6731 = vmatprep.subr.bf16.mxu0 0
    %6732 = vmatpush1.bf16.msra.mxu0 %v6333
    %6733 = vmatprep.subr.bf16.mxu0 0
    %6734 = vmatpush1.bf16.msra.mxu0 %v6332
    %6735 = vmatprep.subr.bf16.mxu0 0
    %6736 = vmatpush2.bf16.msra.mxu0 %v6347
    %6737 = vmatprep.subr.bf16.mxu0 0
    %6738 = vmatpush2.bf16.msra.mxu0 %v6346
    %6739 = vmatprep.subr.bf16.mxu0 0
    %6740 = vmatpush2.bf16.msra.mxu0 %v6345
    %6741 = vmatprep.subr.bf16.mxu0 0
    %6742 = vmatpush2.bf16.msra.mxu0 %v6344
    %6743 = vmatprep.subr.bf16.mxu0 0
    %6744 = vmatpush2.bf16.msra.mxu0 %v6343
    %6745 = vmatprep.subr.bf16.mxu0 0
    %6746 = vmatpush2.bf16.msra.mxu0 %v6342
    %6747 = vmatprep.subr.bf16.mxu0 0
    %6748 = vmatpush2.bf16.msra.mxu0 %v6341
    %6749 = vmatprep.subr.bf16.mxu0 0
    %6750 = vmatpush2.bf16.msra.mxu0 %v6340
    %6751 = vmatprep.mubr.bf16.mxu0 %v5859
    %6752 = vmatmul.mubr.bf16.gmra.mxu0 %v5858
    %v6753 = vpop.f32.mrf.mxu0
    %v6754 = vadd.f32 %v6657, %v6753
    %v6755 = vpop.f32.mrf.mxu0
    %v6756 = vpop.f32.mrf.mxu0
    %v6757 = vadd.f32 %v6660, %v6756
    %v6758 = vpop.f32.mrf.mxu0
    %6759 = vmatprep.mubr.bf16.mxu0 %v5868
    %6760 = vmatmul.mubr.bf16.gmra.mxu0 %v5867
    %v6761 = vpop.f32.mrf.mxu0
    %v6762 = vadd.f32 %v6665, %v6761
    %v6763 = vpop.f32.mrf.mxu0
    %v6764 = vpop.f32.mrf.mxu0
    %v6765 = vadd.f32 %v6668, %v6764
    %v6766 = vpop.f32.mrf.mxu0
    %6767 = vmatprep.mubr.bf16.mxu0 %v5877
    %6768 = vmatmul.mubr.bf16.gmra.mxu0 %v5876
    %v6769 = vpop.f32.mrf.mxu0
    %v6770 = vadd.f32 %v6673, %v6769
    %v6771 = vpop.f32.mrf.mxu0
    %v6772 = vpop.f32.mrf.mxu0
    %v6773 = vadd.f32 %v6676, %v6772
    %v6774 = vpop.f32.mrf.mxu0
    %6775 = vmatprep.mubr.bf16.mxu0 %v5886
    %6776 = vmatmul.mubr.bf16.gmra.mxu0 %v5885
    %v6777 = vpop.f32.mrf.mxu0
    %v6778 = vadd.f32 %v6681, %v6777
    %v6779 = vpop.f32.mrf.mxu0
    %v6780 = vpop.f32.mrf.mxu0
    %v6781 = vadd.f32 %v6684, %v6780
    %v6782 = vpop.f32.mrf.mxu0
    %6783 = vmatprep.mubr.bf16.mxu0 %v5895
    %6784 = vmatmul.mubr.bf16.gmra.mxu0 %v5894
    %v6785 = vpop.f32.mrf.mxu0
    %v6786 = vadd.f32 %v6689, %v6785
    %v6787 = vpop.f32.mrf.mxu0
    %v6788 = vpop.f32.mrf.mxu0
    %v6789 = vadd.f32 %v6692, %v6788
    %v6790 = vpop.f32.mrf.mxu0
    %6791 = vmatprep.mubr.bf16.mxu0 %v5904
    %6792 = vmatmul.mubr.bf16.gmra.mxu0 %v5903
    %v6793 = vpop.f32.mrf.mxu0
    %v6794 = vadd.f32 %v6697, %v6793
    %v6795 = vpop.f32.mrf.mxu0
    %v6796 = vpop.f32.mrf.mxu0
    %v6797 = vadd.f32 %v6700, %v6796
    %v6798 = vpop.f32.mrf.mxu0
    %6799 = vmatprep.mubr.bf16.mxu0 %v5913
    %6800 = vmatmul.mubr.bf16.gmra.mxu0 %v5912
    %v6801 = vpop.f32.mrf.mxu0
    %v6802 = vadd.f32 %v6705, %v6801
    %v6803 = vpop.f32.mrf.mxu0
    %v6804 = vpop.f32.mrf.mxu0
    %v6805 = vadd.f32 %v6708, %v6804
    %v6806 = vpop.f32.mrf.mxu0
    %6807 = vmatprep.mubr.bf16.mxu0 %v5922
    %6808 = vmatmul.mubr.bf16.gmra.mxu0 %v5921
    %v6809 = vpop.f32.mrf.mxu0
    %v6810 = vadd.f32 %v6713, %v6809
    %v6811 = vpop.f32.mrf.mxu0
    %v6812 = vpop.f32.mrf.mxu0
    %v6813 = vadd.f32 %v6716, %v6812
    %v6814 = vpop.f32.mrf.mxu0
    %6815 = vdwg.mxu0
    %6816 = vmatprep.subr.bf16.mxu0 0
    %6817 = vmatpush1.bf16.msra.mxu0 %v6355
    %6818 = vmatprep.subr.bf16.mxu0 0
    %6819 = vmatpush1.bf16.msra.mxu0 %v6354
    %6820 = vmatprep.subr.bf16.mxu0 0
    %6821 = vmatpush1.bf16.msra.mxu0 %v6353
    %6822 = vmatprep.subr.bf16.mxu0 0
    %6823 = vmatpush1.bf16.msra.mxu0 %v6352
    %6824 = vmatprep.subr.bf16.mxu0 0
    %6825 = vmatpush1.bf16.msra.mxu0 %v6351
    %6826 = vmatprep.subr.bf16.mxu0 0
    %6827 = vmatpush1.bf16.msra.mxu0 %v6350
    %6828 = vmatprep.subr.bf16.mxu0 0
    %6829 = vmatpush1.bf16.msra.mxu0 %v6349
    %6830 = vmatprep.subr.bf16.mxu0 0
    %6831 = vmatpush1.bf16.msra.mxu0 %v6348
    %6832 = vmatprep.subr.bf16.mxu0 0
    %6833 = vmatpush2.bf16.msra.mxu0 0
    %6834 = vmatprep.subr.bf16.mxu0 0
    %6835 = vmatpush2.bf16.msra.mxu0 0
    %6836 = vmatprep.subr.bf16.mxu0 0
    %6837 = vmatpush2.bf16.msra.mxu0 0
    %6838 = vmatprep.subr.bf16.mxu0 0
    %6839 = vmatpush2.bf16.msra.mxu0 0
    %6840 = vmatprep.subr.bf16.mxu0 0
    %6841 = vmatpush2.bf16.msra.mxu0 0
    %6842 = vmatprep.subr.bf16.mxu0 0
    %6843 = vmatpush2.bf16.msra.mxu0 0
    %6844 = vmatprep.subr.bf16.mxu0 0
    %6845 = vmatpush2.bf16.msra.mxu0 0
    %6846 = vmatprep.subr.bf16.mxu0 0
    %6847 = vmatpush2.bf16.msra.mxu0 0
    %6848 = vmatprep.mubr.bf16.mxu0 0
    %6849 = vmatmul.mubr.bf16.gmra.mxu0 %v5860
    %v6850 = vpop.f32.mrf.mxu0
    %v6851 = vadd.f32 %v6754, %v6850
    %v6852 = vpop.f32.mrf.mxu0
    %v6853 = vpop.f32.mrf.mxu0
    %v6854 = vadd.f32 %v6757, %v6853
    %v6855 = vpop.f32.mrf.mxu0
    %6856 = vmatprep.mubr.bf16.mxu0 0
    %6857 = vmatmul.mubr.bf16.gmra.mxu0 %v5869
    %v6858 = vpop.f32.mrf.mxu0
    %v6859 = vadd.f32 %v6762, %v6858
    %v6860 = vpop.f32.mrf.mxu0
    %v6861 = vpop.f32.mrf.mxu0
    %v6862 = vadd.f32 %v6765, %v6861
    %v6863 = vpop.f32.mrf.mxu0
    %6864 = vmatprep.mubr.bf16.mxu0 0
    %6865 = vmatmul.mubr.bf16.gmra.mxu0 %v5878
    %v6866 = vpop.f32.mrf.mxu0
    %v6867 = vadd.f32 %v6770, %v6866
    %v6868 = vpop.f32.mrf.mxu0
    %v6869 = vpop.f32.mrf.mxu0
    %v6870 = vadd.f32 %v6773, %v6869
    %v6871 = vpop.f32.mrf.mxu0
    %6872 = vmatprep.mubr.bf16.mxu0 0
    %6873 = vmatmul.mubr.bf16.gmra.mxu0 %v5887
    %v6874 = vpop.f32.mrf.mxu0
    %v6875 = vadd.f32 %v6778, %v6874
    %v6876 = vpop.f32.mrf.mxu0
    %v6877 = vpop.f32.mrf.mxu0
    %v6878 = vadd.f32 %v6781, %v6877
    %v6879 = vpop.f32.mrf.mxu0
    %6880 = vmatprep.mubr.bf16.mxu0 0
    %6881 = vmatmul.mubr.bf16.gmra.mxu0 %v5896
    %v6882 = vpop.f32.mrf.mxu0
    %v6883 = vadd.f32 %v6786, %v6882
    %v6884 = vpop.f32.mrf.mxu0
    %v6885 = vpop.f32.mrf.mxu0
    %v6886 = vadd.f32 %v6789, %v6885
    %v6887 = vpop.f32.mrf.mxu0
    %6888 = vmatprep.mubr.bf16.mxu0 0
    %6889 = vmatmul.mubr.bf16.gmra.mxu0 %v5905
    %v6890 = vpop.f32.mrf.mxu0
    %v6891 = vadd.f32 %v6794, %v6890
    %v6892 = vpop.f32.mrf.mxu0
    %v6893 = vpop.f32.mrf.mxu0
    %v6894 = vadd.f32 %v6797, %v6893
    %v6895 = vpop.f32.mrf.mxu0
    %6896 = vmatprep.mubr.bf16.mxu0 0
    %6897 = vmatmul.mubr.bf16.gmra.mxu0 %v5914
    %v6898 = vpop.f32.mrf.mxu0
    %v6899 = vadd.f32 %v6802, %v6898
    %v6900 = vpop.f32.mrf.mxu0
    %v6901 = vpop.f32.mrf.mxu0
    %v6902 = vadd.f32 %v6805, %v6901
    %v6903 = vpop.f32.mrf.mxu0
    %6904 = vmatprep.mubr.bf16.mxu0 0
    %6905 = vmatmul.mubr.bf16.gmra.mxu0 %v5923
    %v6906 = vpop.f32.mrf.mxu0
    %v6907 = vadd.f32 %v6810, %v6906
    %v6908 = vpop.f32.mrf.mxu0
    %v6909 = vpop.f32.mrf.mxu0
    %v6910 = vadd.f32 %v6813, %v6909
    %v6911 = vpop.f32.mrf.mxu0
    %6912 = vdwg.mxu0
    %v6913 = vld [vmem:[%s5] sm:$0x1]
    %v6914 = vld [vmem:[%s6] sm:$0x1]
    %v6915 = vadd.f32 %v6851, %v6854
    %v6916 = vadd.f32 %v6915, %v6859
    %v6917 = vadd.f32 %v6916, %v6862
    %v6918 = vadd.f32 %v6917, %v6867
    %v6919 = vadd.f32 %v6918, %v6870
    %v6920 = vadd.f32 %v6919, %v6875
    %v6921 = vadd.f32 %v6920, %v6878
    %v6922 = vadd.f32 %v6921, %v6883
    %v6923 = vadd.f32 %v6922, %v6886
    %v6924 = vadd.f32 %v6923, %v6891
    %v6925 = vadd.f32 %v6924, %v6894
    %v6926 = vadd.f32 %v6925, %v6899
    %v6927 = vadd.f32 %v6926, %v6902
    %v6928 = vadd.f32 %v6927, %v6907
    %v6929 = vadd.f32 %v6928, %v6910
    %v6930 = vrot.slane %v6929, 4
    %v6931 = vadd.f32 %v6929, %v6930
    %v6932 = vrot.slane %v6931, 2
    %v6933 = vadd.f32 %v6931, %v6932
    %v6934 = vrot.slane %v6933, 1
    %v6935 = vadd.f32 %v6933, %v6934
    %v6936 = vmul.f32 %v6851, %v6851
    %v6937 = vmul.f32 %v6854, %v6854
    %v6938 = vmul.f32 %v6859, %v6859
    %v6939 = vmul.f32 %v6862, %v6862
    %v6940 = vmul.f32 %v6867, %v6867
    %v6941 = vmul.f32 %v6870, %v6870
    %v6942 = vmul.f32 %v6875, %v6875
    %v6943 = vmul.f32 %v6878, %v6878
    %v6944 = vmul.f32 %v6883, %v6883
    %v6945 = vmul.f32 %v6886, %v6886
    %v6946 = vmul.f32 %v6891, %v6891
    %v6947 = vmul.f32 %v6894, %v6894
    %v6948 = vmul.f32 %v6899, %v6899
    %v6949 = vmul.f32 %v6902, %v6902
    %v6950 = vmul.f32 %v6907, %v6907
    %v6951 = vmul.f32 %v6910, %v6910
    %v6952 = vadd.f32 %v6936, %v6937
    %v6953 = vadd.f32 %v6952, %v6938
    %v6954 = vadd.f32 %v6953, %v6939
    %v6955 = vadd.f32 %v6954, %v6940
    %v6956 = vadd.f32 %v6955, %v6941
    %v6957 = vadd.f32 %v6956, %v6942
    %v6958 = vadd.f32 %v6957, %v6943
    %v6959 = vadd.f32 %v6958, %v6944
    %v6960 = vadd.f32 %v6959, %v6945
    %v6961 = vadd.f32 %v6960, %v6946
    %v6962 = vadd.f32 %v6961, %v6947
    %v6963 = vadd.f32 %v6962, %v6948
    %v6964 = vadd.f32 %v6963, %v6949
    %v6965 = vadd.f32 %v6964, %v6950
    %v6966 = vadd.f32 %v6965, %v6951
    %v6967 = vrot.slane %v6966, 4
    %v6968 = vadd.f32 %v6966, %v6967
    %v6969 = vrot.slane %v6968, 2
    %v6970 = vadd.f32 %v6968, %v6969
    %v6971 = vrot.slane %v6970, 1
    %v6972 = vadd.f32 %v6970, %v6971
    %v6973 = vmul.f32 %v6935, 0.0078125
    %v6974 = vmul.f32 %v6972, 0.0078125
    %v6975 = vmul.f32 %v6973, %v6973
    %v6976 = vsub.f32 %v6974, %v6975
    %v6977 = vadd.f32 %v6976, 1e-05
    %v6978 = vrsqrt.pop %v6977
    %v6979 = vmul.f32 %v6913, %v6978
    %v6980 = vmul.f32 %v6973, %v6979
    %v6981 = vsub.f32 %v6914, %v6980
    %v6983 = vlaneseq
    %v6984 = vshrl.u32 %v6983, 7
    %v6985 = vsub.s32 0, %v6984
    %v6986 = vrot.slane %v6979, %v6985
    %v6988 = vmul.f32 %v6851, %v6986
    %v6989 = vmul.f32 %v6854, %v6986
    %v6990 = vmul.f32 %v6859, %v6986
    %v6991 = vmul.f32 %v6862, %v6986
    %v6992 = vmul.f32 %v6867, %v6986
    %v6993 = vmul.f32 %v6870, %v6986
    %v6994 = vmul.f32 %v6875, %v6986
    %v6995 = vmul.f32 %v6878, %v6986
    %v6996 = vmul.f32 %v6883, %v6986
    %v6997 = vmul.f32 %v6886, %v6986
    %v6998 = vmul.f32 %v6891, %v6986
    %v6999 = vmul.f32 %v6894, %v6986
    %v7000 = vmul.f32 %v6899, %v6986
    %v7001 = vmul.f32 %v6902, %v6986
    %v7002 = vmul.f32 %v6907, %v6986
    %v7003 = vmul.f32 %v6910, %v6986
    %v7005 = vlaneseq
    %v7006 = vshrl.u32 %v7005, 7
    %v7007 = vsub.s32 0, %v7006
    %v7008 = vrot.slane %v6981, %v7007
    %v7010 = vadd.f32 %v6988, %v7008
    %v7011 = vadd.f32 %v6989, %v7008
    %v7012 = vadd.f32 %v6990, %v7008
    %v7013 = vadd.f32 %v6991, %v7008
    %v7014 = vadd.f32 %v6992, %v7008
    %v7015 = vadd.f32 %v6993, %v7008
    %v7016 = vadd.f32 %v6994, %v7008
    %v7017 = vadd.f32 %v6995, %v7008
    %v7018 = vadd.f32 %v6996, %v7008
    %v7019 = vadd.f32 %v6997, %v7008
    %v7020 = vadd.f32 %v6998, %v7008
    %v7021 = vadd.f32 %v6999, %v7008
    %v7022 = vadd.f32 %v7000, %v7008
    %v7023 = vadd.f32 %v7001, %v7008
    %v7024 = vadd.f32 %v7002, %v7008
    %v7025 = vadd.f32 %v7003, %v7008
    %v7026 = vmax.f32 %v7010, 0.0
    %v7027 = vmax.f32 %v7011, 0.0
    %v7028 = vmax.f32 %v7012, 0.0
    %v7029 = vmax.f32 %v7013, 0.0
    %v7030 = vmax.f32 %v7014, 0.0
    %v7031 = vmax.f32 %v7015, 0.0
    %v7032 = vmax.f32 %v7016, 0.0
    %v7033 = vmax.f32 %v7017, 0.0
    %v7034 = vmax.f32 %v7018, 0.0
    %v7035 = vmax.f32 %v7019, 0.0
    %v7036 = vmax.f32 %v7020, 0.0
    %v7037 = vmax.f32 %v7021, 0.0
    %v7038 = vmax.f32 %v7022, 0.0
    %v7039 = vmax.f32 %v7023, 0.0
    %v7040 = vmax.f32 %v7024, 0.0
    %v7041 = vmax.f32 %v7025, 0.0
    %v7042 = vpack.c.bf16 %v7027, %v7026
    %v7043 = vpack.c.bf16 %v7029, %v7028
    %v7044 = vpack.c.bf16 %v7031, %v7030
    %v7045 = vpack.c.bf16 %v7033, %v7032
    %v7046 = vpack.c.bf16 %v7035, %v7034
    %v7047 = vpack.c.bf16 %v7037, %v7036
    %v7048 = vpack.c.bf16 %v7039, %v7038
    %v7049 = vpack.c.bf16 %v7041, %v7040
    %v7050 = vld [vmem:[#allocation10] sm:$0xf]
    %v7051 = vld [vmem:[#allocation10 + $0x4] sm:$0xf]
    %v7052 = vld [vmem:[#allocation10 + $0x8] sm:$0xf]
    %v7053 = vld [vmem:[#allocation10 + $0xc] sm:$0xf]
    %v7054 = vld [vmem:[#allocation10 + $0x10] sm:$0xf]
    %v7055 = vld [vmem:[#allocation10 + $0x14] sm:$0xf]
    %v7056 = vld [vmem:[#allocation10 + $0x18] sm:$0xf]
    %v7057 = vld [vmem:[#allocation10 + $0x1c] sm:$0xf]
    %v7058 = vld [vmem:[#allocation10 + $0x20] sm:$0xf]
    %v7059 = vld [vmem:[#allocation10 + $0x24] sm:$0xf]
    %v7060 = vld [vmem:[#allocation10 + $0x28] sm:$0xf]
    %v7061 = vld [vmem:[#allocation10 + $0x2c] sm:$0xf]
    %v7062 = vld [vmem:[#allocation10 + $0x30] sm:$0xf]
    %v7063 = vld [vmem:[#allocation10 + $0x34] sm:$0xf]
    %v7064 = vld [vmem:[#allocation10 + $0x38] sm:$0xf]
    %v7065 = vld [vmem:[#allocation10 + $0x3c] sm:$0xf]
    %v7082 = vunpack.c.l.b16 %v7050
    %v7083 = vunpack.c.l.b16 %v7051
    %v7084 = vunpack.c.l.b16 %v7052
    %v7085 = vunpack.c.l.b16 %v7053
    %v7086 = vunpack.c.l.b16 %v7054
    %v7087 = vunpack.c.l.b16 %v7055
    %v7088 = vunpack.c.l.b16 %v7056
    %v7089 = vunpack.c.l.b16 %v7057
    %v7090 = vunpack.c.l.b16 %v7058
    %v7091 = vunpack.c.l.b16 %v7059
    %v7092 = vunpack.c.l.b16 %v7060
    %v7093 = vunpack.c.l.b16 %v7061
    %v7094 = vunpack.c.l.b16 %v7062
    %v7095 = vunpack.c.l.b16 %v7063
    %v7096 = vunpack.c.l.b16 %v7064
    %v7097 = vunpack.c.l.b16 %v7065
    %v7098 = vpack.c.b16 %v7083, %v7082
    %v7099 = vpack.c.b16 %v7085, %v7084
    %v7100 = vpack.c.b16 %v7087, %v7086
    %v7101 = vpack.c.b16 %v7089, %v7088
    %v7102 = vpack.c.b16 %v7091, %v7090
    %v7103 = vpack.c.b16 %v7093, %v7092
    %v7104 = vpack.c.b16 %v7095, %v7094
    %v7105 = vpack.c.b16 %v7097, %v7096
    %7114 = vmatprep.subr.bf16.mxu0 0
    %7115 = vmatpush1.bf16.msra.mxu0 %v7105
    %7116 = vmatprep.subr.bf16.mxu0 0
    %7117 = vmatpush1.bf16.msra.mxu0 %v7104
    %7118 = vmatprep.subr.bf16.mxu0 0
    %7119 = vmatpush1.bf16.msra.mxu0 %v7103
    %7120 = vmatprep.subr.bf16.mxu0 0
    %7121 = vmatpush1.bf16.msra.mxu0 %v7102
    %7122 = vmatprep.subr.bf16.mxu0 0
    %7123 = vmatpush1.bf16.msra.mxu0 %v7101
    %7124 = vmatprep.subr.bf16.mxu0 0
    %7125 = vmatpush1.bf16.msra.mxu0 %v7100
    %7126 = vmatprep.subr.bf16.mxu0 0
    %7127 = vmatpush1.bf16.msra.mxu0 %v7099
    %7128 = vmatprep.subr.bf16.mxu0 0
    %7129 = vmatpush1.bf16.msra.mxu0 %v7098
    %7130 = vmatprep.subr.bf16.mxu0 0
    %7131 = vmatpush2.bf16.msra.mxu0 0
    %7132 = vmatprep.subr.bf16.mxu0 0
    %7133 = vmatpush2.bf16.msra.mxu0 0
    %7134 = vmatprep.subr.bf16.mxu0 0
    %7135 = vmatpush2.bf16.msra.mxu0 0
    %7136 = vmatprep.subr.bf16.mxu0 0
    %7137 = vmatpush2.bf16.msra.mxu0 0
    %7138 = vmatprep.subr.bf16.mxu0 0
    %7139 = vmatpush2.bf16.msra.mxu0 0
    %7140 = vmatprep.subr.bf16.mxu0 0
    %7141 = vmatpush2.bf16.msra.mxu0 0
    %7142 = vmatprep.subr.bf16.mxu0 0
    %7143 = vmatpush2.bf16.msra.mxu0 0
    %7144 = vmatprep.subr.bf16.mxu0 0
    %7145 = vmatpush2.bf16.msra.mxu0 0
    %7146 = vmatprep.mubr.bf16.mxu0 0
    %7147 = vmatmul.mubr.bf16.gmra.mxu0 %v7042
    %v7148 = vpop.f32.mrf.mxu0
    %v7149 = vadd.f32 0.0, %v7148
    %v7150 = vpop.f32.mrf.mxu0
    %v7151 = vpop.f32.mrf.mxu0
    %v7152 = vadd.f32 0.0, %v7151
    %v7153 = vpop.f32.mrf.mxu0
    %7154 = vmatprep.mubr.bf16.mxu0 0
    %7155 = vmatmul.mubr.bf16.gmra.mxu0 %v7043
    %v7156 = vpop.f32.mrf.mxu0
    %v7157 = vadd.f32 0.0, %v7156
    %v7158 = vpop.f32.mrf.mxu0
    %v7159 = vpop.f32.mrf.mxu0
    %v7160 = vadd.f32 0.0, %v7159
    %v7161 = vpop.f32.mrf.mxu0
    %7162 = vmatprep.mubr.bf16.mxu0 0
    %7163 = vmatmul.mubr.bf16.gmra.mxu0 %v7044
    %v7164 = vpop.f32.mrf.mxu0
    %v7165 = vadd.f32 0.0, %v7164
    %v7166 = vpop.f32.mrf.mxu0
    %v7167 = vpop.f32.mrf.mxu0
    %v7168 = vadd.f32 0.0, %v7167
    %v7169 = vpop.f32.mrf.mxu0
    %7170 = vmatprep.mubr.bf16.mxu0 0
    %7171 = vmatmul.mubr.bf16.gmra.mxu0 %v7045
    %v7172 = vpop.f32.mrf.mxu0
    %v7173 = vadd.f32 0.0, %v7172
    %v7174 = vpop.f32.mrf.mxu0
    %v7175 = vpop.f32.mrf.mxu0
    %v7176 = vadd.f32 0.0, %v7175
    %v7177 = vpop.f32.mrf.mxu0
    %7178 = vmatprep.mubr.bf16.mxu0 0
    %7179 = vmatmul.mubr.bf16.gmra.mxu0 %v7046
    %v7180 = vpop.f32.mrf.mxu0
    %v7181 = vadd.f32 0.0, %v7180
    %v7182 = vpop.f32.mrf.mxu0
    %v7183 = vpop.f32.mrf.mxu0
    %v7184 = vadd.f32 0.0, %v7183
    %v7185 = vpop.f32.mrf.mxu0
    %7186 = vmatprep.mubr.bf16.mxu0 0
    %7187 = vmatmul.mubr.bf16.gmra.mxu0 %v7047
    %v7188 = vpop.f32.mrf.mxu0
    %v7189 = vadd.f32 0.0, %v7188
    %v7190 = vpop.f32.mrf.mxu0
    %v7191 = vpop.f32.mrf.mxu0
    %v7192 = vadd.f32 0.0, %v7191
    %v7193 = vpop.f32.mrf.mxu0
    %7194 = vmatprep.mubr.bf16.mxu0 0
    %7195 = vmatmul.mubr.bf16.gmra.mxu0 %v7048
    %v7196 = vpop.f32.mrf.mxu0
    %v7197 = vadd.f32 0.0, %v7196
    %v7198 = vpop.f32.mrf.mxu0
    %v7199 = vpop.f32.mrf.mxu0
    %v7200 = vadd.f32 0.0, %v7199
    %v7201 = vpop.f32.mrf.mxu0
    %7202 = vmatprep.mubr.bf16.mxu0 0
    %7203 = vmatmul.mubr.bf16.gmra.mxu0 %v7049
    %v7204 = vpop.f32.mrf.mxu0
    %v7205 = vadd.f32 0.0, %v7204
    %v7206 = vpop.f32.mrf.mxu0
    %v7207 = vpop.f32.mrf.mxu0
    %v7208 = vadd.f32 0.0, %v7207
    %v7209 = vpop.f32.mrf.mxu0
    %7210 = vdwg.mxu0
    %v7211 = vld [vmem:[%s8] sm:$0x1]
    %v7212 = vld [vmem:[%s9] sm:$0x1]
    %v7213 = vadd.f32 %v7149, %v7152
    %v7214 = vadd.f32 %v7213, %v7157
    %v7215 = vadd.f32 %v7214, %v7160
    %v7216 = vadd.f32 %v7215, %v7165
    %v7217 = vadd.f32 %v7216, %v7168
    %v7218 = vadd.f32 %v7217, %v7173
    %v7219 = vadd.f32 %v7218, %v7176
    %v7220 = vadd.f32 %v7219, %v7181
    %v7221 = vadd.f32 %v7220, %v7184
    %v7222 = vadd.f32 %v7221, %v7189
    %v7223 = vadd.f32 %v7222, %v7192
    %v7224 = vadd.f32 %v7223, %v7197
    %v7225 = vadd.f32 %v7224, %v7200
    %v7226 = vadd.f32 %v7225, %v7205
    %v7227 = vadd.f32 %v7226, %v7208
    %v7228 = vrot.slane %v7227, 4
    %v7229 = vadd.f32 %v7227, %v7228
    %v7230 = vrot.slane %v7229, 2
    %v7231 = vadd.f32 %v7229, %v7230
    %v7232 = vrot.slane %v7231, 1
    %v7233 = vadd.f32 %v7231, %v7232
    %v7234 = vmul.f32 %v7149, %v7149
    %v7235 = vmul.f32 %v7152, %v7152
    %v7236 = vmul.f32 %v7157, %v7157
    %v7237 = vmul.f32 %v7160, %v7160
    %v7238 = vmul.f32 %v7165, %v7165
    %v7239 = vmul.f32 %v7168, %v7168
    %v7240 = vmul.f32 %v7173, %v7173
    %v7241 = vmul.f32 %v7176, %v7176
    %v7242 = vmul.f32 %v7181, %v7181
    %v7243 = vmul.f32 %v7184, %v7184
    %v7244 = vmul.f32 %v7189, %v7189
    %v7245 = vmul.f32 %v7192, %v7192
    %v7246 = vmul.f32 %v7197, %v7197
    %v7247 = vmul.f32 %v7200, %v7200
    %v7248 = vmul.f32 %v7205, %v7205
    %v7249 = vmul.f32 %v7208, %v7208
    %v7250 = vadd.f32 %v7234, %v7235
    %v7251 = vadd.f32 %v7250, %v7236
    %v7252 = vadd.f32 %v7251, %v7237
    %v7253 = vadd.f32 %v7252, %v7238
    %v7254 = vadd.f32 %v7253, %v7239
    %v7255 = vadd.f32 %v7254, %v7240
    %v7256 = vadd.f32 %v7255, %v7241
    %v7257 = vadd.f32 %v7256, %v7242
    %v7258 = vadd.f32 %v7257, %v7243
    %v7259 = vadd.f32 %v7258, %v7244
    %v7260 = vadd.f32 %v7259, %v7245
    %v7261 = vadd.f32 %v7260, %v7246
    %v7262 = vadd.f32 %v7261, %v7247
    %v7263 = vadd.f32 %v7262, %v7248
    %v7264 = vadd.f32 %v7263, %v7249
    %v7265 = vrot.slane %v7264, 4
    %v7266 = vadd.f32 %v7264, %v7265
    %v7267 = vrot.slane %v7266, 2
    %v7268 = vadd.f32 %v7266, %v7267
    %v7269 = vrot.slane %v7268, 1
    %v7270 = vadd.f32 %v7268, %v7269
    %v7271 = vmul.f32 %v7233, 0.0078125
    %v7272 = vmul.f32 %v7270, 0.0078125
    %v7273 = vmul.f32 %v7271, %v7271
    %v7274 = vsub.f32 %v7272, %v7273
    %v7275 = vadd.f32 %v7274, 1e-05
    %v7276 = vrsqrt.pop %v7275
    %v7277 = vmul.f32 %v7211, %v7276
    %v7278 = vmul.f32 %v7271, %v7277
    %v7279 = vsub.f32 %v7212, %v7278
    %v7281 = vlaneseq
    %v7282 = vshrl.u32 %v7281, 7
    %v7283 = vsub.s32 0, %v7282
    %v7284 = vrot.slane %v7277, %v7283
    %v7286 = vmul.f32 %v7149, %v7284
    %v7287 = vmul.f32 %v7152, %v7284
    %v7288 = vmul.f32 %v7157, %v7284
    %v7289 = vmul.f32 %v7160, %v7284
    %v7290 = vmul.f32 %v7165, %v7284
    %v7291 = vmul.f32 %v7168, %v7284
    %v7292 = vmul.f32 %v7173, %v7284
    %v7293 = vmul.f32 %v7176, %v7284
    %v7294 = vmul.f32 %v7181, %v7284
    %v7295 = vmul.f32 %v7184, %v7284
    %v7296 = vmul.f32 %v7189, %v7284
    %v7297 = vmul.f32 %v7192, %v7284
    %v7298 = vmul.f32 %v7197, %v7284
    %v7299 = vmul.f32 %v7200, %v7284
    %v7300 = vmul.f32 %v7205, %v7284
    %v7301 = vmul.f32 %v7208, %v7284
    %v7303 = vlaneseq
    %v7304 = vshrl.u32 %v7303, 7
    %v7305 = vsub.s32 0, %v7304
    %v7306 = vrot.slane %v7279, %v7305
    %v7308 = vadd.f32 %v7286, %v7306
    %v7309 = vadd.f32 %v7287, %v7306
    %v7310 = vadd.f32 %v7288, %v7306
    %v7311 = vadd.f32 %v7289, %v7306
    %v7312 = vadd.f32 %v7290, %v7306
    %v7313 = vadd.f32 %v7291, %v7306
    %v7314 = vadd.f32 %v7292, %v7306
    %v7315 = vadd.f32 %v7293, %v7306
    %v7316 = vadd.f32 %v7294, %v7306
    %v7317 = vadd.f32 %v7295, %v7306
    %v7318 = vadd.f32 %v7296, %v7306
    %v7319 = vadd.f32 %v7297, %v7306
    %v7320 = vadd.f32 %v7298, %v7306
    %v7321 = vadd.f32 %v7299, %v7306
    %v7322 = vadd.f32 %v7300, %v7306
    %v7323 = vadd.f32 %v7301, %v7306
    %v7324 = vadd.f32 %v7308, %v92
    %v7325 = vadd.f32 %v7309, %v93
    %v7326 = vadd.f32 %v7310, %v94
    %v7327 = vadd.f32 %v7311, %v95
    %v7328 = vadd.f32 %v7312, %v96
    %v7329 = vadd.f32 %v7313, %v97
    %v7330 = vadd.f32 %v7314, %v98
    %v7331 = vadd.f32 %v7315, %v99
    %v7332 = vadd.f32 %v7316, %v100
    %v7333 = vadd.f32 %v7317, %v101
    %v7334 = vadd.f32 %v7318, %v102
    %v7335 = vadd.f32 %v7319, %v103
    %v7336 = vadd.f32 %v7320, %v104
    %v7337 = vadd.f32 %v7321, %v105
    %v7338 = vadd.f32 %v7322, %v106
    %v7339 = vadd.f32 %v7323, %v107
    %v7340 = vmax.f32 %v7324, 0.0
    %v7341 = vmax.f32 %v7325, 0.0
    %v7342 = vmax.f32 %v7326, 0.0
    %v7343 = vmax.f32 %v7327, 0.0
    %v7344 = vmax.f32 %v7328, 0.0
    %v7345 = vmax.f32 %v7329, 0.0
    %v7346 = vmax.f32 %v7330, 0.0
    %v7347 = vmax.f32 %v7331, 0.0
    %v7348 = vmax.f32 %v7332, 0.0
    %v7349 = vmax.f32 %v7333, 0.0
    %v7350 = vmax.f32 %v7334, 0.0
    %v7351 = vmax.f32 %v7335, 0.0
    %v7352 = vmax.f32 %v7336, 0.0
    %v7353 = vmax.f32 %v7337, 0.0
    %v7354 = vmax.f32 %v7338, 0.0
    %v7355 = vmax.f32 %v7339, 0.0
    %7356 = vst [vmem:[#allocation12] sm:$0xff] %v7340
    %7357 = vst [vmem:[#allocation12 + $0x8] sm:$0xff] %v7341
    %7358 = vst [vmem:[#allocation12 + $0x10] sm:$0xff] %v7342
    %7359 = vst [vmem:[#allocation12 + $0x18] sm:$0xff] %v7343
    %7360 = vst [vmem:[#allocation12 + $0x20] sm:$0xff] %v7344
    %7361 = vst [vmem:[#allocation12 + $0x28] sm:$0xff] %v7345
    %7362 = vst [vmem:[#allocation12 + $0x30] sm:$0xff] %v7346
    %7363 = vst [vmem:[#allocation12 + $0x38] sm:$0xff] %v7347
    %7364 = vst [vmem:[#allocation12 + $0x40] sm:$0xff] %v7348
    %7365 = vst [vmem:[#allocation12 + $0x48] sm:$0xff] %v7349
    %7366 = vst [vmem:[#allocation12 + $0x50] sm:$0xff] %v7350
    %7367 = vst [vmem:[#allocation12 + $0x58] sm:$0xff] %v7351
    %7368 = vst [vmem:[#allocation12 + $0x60] sm:$0xff] %v7352
    %7369 = vst [vmem:[#allocation12 + $0x68] sm:$0xff] %v7353
    %7370 = vst [vmem:[#allocation12 + $0x70] sm:$0xff] %v7354
    %7371 = vst [vmem:[#allocation12 + $0x78] sm:$0xff] %v7355
    // Predicated region
    $region58: #{tpu_custom_call.1} parent=1 // pred_check
      _
    $region59: #{tpu_custom_call.1} parent=1 // pred_check_branch
      %7373 = sbr.rel (0) target = $region61
    $region60: #{tpu_custom_call.1} parent=1 // pred_region
      %s7375 = ssub.s32 2048, 2048
      %7376 = vsyncadd [#allocation6], %s7375
      %s7377 = sshll.u32 [#allocation12], 4
      %s7378 = int_to_ptr.vmem [resolvable:$true] %s7377
      %7383 = dma.vmem_to_hbm [thread:$0]  %s7378, 2048, %s10, [#allocation6], 128, 128, 8
    $region61: #{tpu_custom_call.1} parent=1 // pred_fallthru
      _
    // Predicated region
    $region62: #{tpu_custom_call.1} parent=1 // pred_check
      _
    $region63: #{tpu_custom_call.1} parent=1 // pred_check_branch
      %7385 = sbr.rel (0) target = $region65
    $region64: #{tpu_custom_call.1} parent=1 // pred_region
      %7386 = dma.done [#allocation6], 2048
    $region65: #{tpu_custom_call.1} parent=1 // pred_fallthru
      _
    %7387 = vsyncpa [#allocation5], 1
    %7388 = vsyncpa [#allocation8], 1
    %7389 = vsyncpa [#allocation11], 1
    %7390 = vsyncpa [#allocation6], 1

</llo_original>
